<compile_context>
chip_gen: v7x
topology: tpu7x:2x2x1
jax: 0.10.0
libtpu: 0.0.40
codegen_flags: <defaults>
</compile_context>

<pallas_src>
import jax
import jax.numpy as jnp
from jax.experimental import pallas as pl
from jax.experimental.pallas import tpu as pltpu


def _round_up(v, m):
    return (v + m - 1) // m * m


# --------------- fused im2col-matmul + bias + ReLU (one 3x3 conv layer) ---------------

def _matmul_bias_relu_kernel(a_ref, w_ref, b_ref, o_ref):
    # a_ref: (TM, K)   bf16 im2col patches (one tile of output pixels)
    # w_ref: (K, Cout) bf16 flattened 3x3 weights
    # b_ref: (1, Cout) f32 bias
    # o_ref: (TM, Cout) f32
    acc = jnp.dot(a_ref[...], w_ref[...], preferred_element_type=jnp.float32)
    o_ref[...] = jnp.maximum(acc + b_ref[...], 0.0)


def _im2col_3x3(x):
    """x: (N, H, W, Cin) -> (N*H*W, 9*Cin) zero-padded 3x3 patches, (ky,kx,ci)-major."""
    N, H, W, Cin = x.shape
    xpad = jnp.pad(x, ((0, 0), (1, 1), (1, 1), (0, 0)))
    cols = [xpad[:, ky:ky + H, kx:kx + W, :] for ky in range(3) for kx in range(3)]
    return jnp.concatenate(cols, axis=-1).reshape(N * H * W, 9 * Cin)


def conv3x3_relu(x, w, b, *, tm=512):
    """3x3 conv, stride 1, zero-pad 1, fused ReLU.

    x: (N,H,W,Cin) NHWC, w: (3,3,Cin,Cout) HWIO, b: (Cout,) -> (N,H,W,Cout) f32.
    """
    N, H, W, Cin = x.shape
    Cout = w.shape[-1]
    K = 9 * Cin
    M = N * H * W

    a = _im2col_3x3(x)                              # (M, K)
    tm = min(tm, _round_up(M, 8))                   # tile of output pixels per grid step
    Mp = _round_up(M, tm)
    if Mp != M:
        a = jnp.pad(a, ((0, Mp - M), (0, 0)))       # harmless zero rows, cropped below
    a = a.astype(jnp.bfloat16)                      # bf16 MXU inputs, f32 accumulate
    wf = w.reshape(K, Cout).astype(jnp.bfloat16)    # (ky,kx,ci)-major matches im2col
    bf = b.reshape(1, Cout).astype(jnp.float32)

    y = pl.pallas_call(
        _matmul_bias_relu_kernel,
        out_shape=jax.ShapeDtypeStruct((Mp, Cout), jnp.float32),
        grid=(Mp // tm,),
        in_specs=[
            pl.BlockSpec((tm, K), lambda i: (i, 0)),
            pl.BlockSpec((K, Cout), lambda i: (0, 0)),
            pl.BlockSpec((1, Cout), lambda i: (0, 0)),
        ],
        out_specs=pl.BlockSpec((tm, Cout), lambda i: (i, 0)),
        compiler_params=pltpu.CompilerParams(
            # row tiles are independent -> shard across v7x's 2 TensorCores;
            # free on single-TC v5e/v6e.
            dimension_semantics=("parallel",),
            # well under v7x's 64 MiB physical VMEM (blocks here are ~1 MB).
            vmem_limit_bytes=48 * 1024 * 1024),
    )(a, wf, bf)
    return y[:M].reshape(N, H, W, Cout)


# --------------- VGG16 slice1 (the only live part of the forward) ---------------

VGG16_SLICE1_CFG = [(3, 64), (64, 64)]


def init_vgg16_slice1_params(key):
    # TODO(synk): real module loads torchvision pretrained VGG16 weights; not
    # reproducible in a self-contained script, so deterministic synthetic
    # weights with the exact conv shapes are used instead.
    layers = []
    for cin, cout in VGG16_SLICE1_CFG:
        key, kw, kb = jax.random.split(key, 3)
        w = 0.05 * jax.random.normal(kw, (3, 3, cin, cout), jnp.float32)
        b = 0.01 * jax.random.normal(kb, (cout,), jnp.float32)
        layers.append((w, b))
    return {"slice1": layers}


@jax.jit
def vgg16_forward(x_nchw, params):
    """Matches Vgg16.forward's return value: h1 = slice1(x) (NCHW).

    Slices 2-5 of the reference forward only produce h2..h5, which are never
    returned or used, so they are not computed (dead code elimination).
    """
    x = jnp.transpose(x_nchw, (0, 2, 3, 1))         # NCHW -> NHWC (channels on lanes)
    for (w, b) in params["slice1"]:
        x = conv3x3_relu(x, w, b)
    return jnp.transpose(x, (0, 3, 1, 2))           # h1 back to NCHW


# --------------- pure-JAX f32 reference for the returned slice1 output ---------------

def _conv_relu_ref(x, w, b):
    y = jax.lax.conv_general_dilated(
        x, w, window_strides=(1, 1), padding=((1, 1), (1, 1)),
        dimension_numbers=("NHWC", "HWIO", "NHWC"))
    return jnp.maximum(y + b, 0.0)


if __name__ == "__main__":
    key = jax.random.PRNGKey(0)
    kx, kp = jax.random.split(key)
    # small input consistent with the module: batch=2, 3 input channels, 32x32 spatial
    x = jax.random.normal(kx, (2, 3, 32, 32), jnp.float32)   # NCHW, like PyTorch
    params = init_vgg16_slice1_params(kp)

    h1 = vgg16_forward(x, params)
    h1 = jax.block_until_ready(h1)
    assert h1.shape == (2, 64, 32, 32), h1.shape

    # cross-check h1 against a pure-JAX f32 reference (kernel runs bf16 on the MXU)
    xr = jnp.transpose(x, (0, 2, 3, 1))
    for (w, b) in params["slice1"]:
        xr = _conv_relu_ref(xr, w, b)
    ref = jnp.transpose(xr, (0, 3, 1, 2))
    max_err = float(jnp.max(jnp.abs(h1 - ref)))
    assert jnp.allclose(h1, ref, atol=2e-2, rtol=2e-2), max_err

    print("KERNEL_OK")
</pallas_src>

<mosaic_0001>
module attributes {stable_mosaic.version = 11 : i64} {
  func.func @_matmul_bias_relu_kernel(%arg0: i32, %arg1: memref<512x27xbf16, #tpu.memory_space<vmem>>, %arg2: memref<27x64xbf16, #tpu.memory_space<vmem>>, %arg3: memref<1x64xf32, #tpu.memory_space<vmem>>, %arg4: memref<512x64xf32, #tpu.memory_space<vmem>>) attributes {dimension_semantics = [#tpu.dimension_semantics<parallel>], iteration_bounds = array<i64: 4>, scalar_prefetch = 0 : i64, scratch_operands = 0 : i64, tpu.core_type = #tpu.core_type<tc>, window_params = [{transform_indices = @transform_0, window_bounds = array<i64: 512, 27>}, {pipeline_mode = #tpu.pipeline_mode<synchronous>, transform_indices = @transform_1, window_bounds = array<i64: 27, 64>}, {pipeline_mode = #tpu.pipeline_mode<synchronous>, transform_indices = @transform_2, window_bounds = array<i64: 1, 64>}, {transform_indices = @transform_3, window_bounds = array<i64: 512, 64>}]} {
    %c0 = arith.constant 0 : index
    %c0_0 = arith.constant 0 : index
    %0 = vector.load %arg1[%c0, %c0_0] : memref<512x27xbf16, #tpu.memory_space<vmem>>, vector<512x27xbf16>
    %c0_1 = arith.constant 0 : index
    %c0_2 = arith.constant 0 : index
    %1 = vector.load %arg2[%c0_1, %c0_2] : memref<27x64xbf16, #tpu.memory_space<vmem>>, vector<27x64xbf16>
    %cst = arith.constant dense<0.000000e+00> : vector<512x64xf32>
    %2 = tpu.matmul %0, %1, %cst {dimension_numbers = #tpu.dot_dimension_numbers<[1], [0], [0], [1], [0, 0, 1, 1], [], []>} : vector<512x27xbf16>, vector<27x64xbf16>, vector<512x64xf32> -> vector<512x64xf32>
    %c0_3 = arith.constant 0 : index
    %c0_4 = arith.constant 0 : index
    %3 = vector.load %arg3[%c0_3, %c0_4] : memref<1x64xf32, #tpu.memory_space<vmem>>, vector<1x64xf32>
    %4 = vector.broadcast %3 : vector<1x64xf32> to vector<512x64xf32>
    %5 = arith.addf %2, %4 : vector<512x64xf32>
    %cst_5 = arith.constant 0.000000e+00 : f32
    %6 = vector.broadcast %cst_5 : f32 to vector<512x64xf32>
    %7 = arith.maximumf %5, %6 : vector<512x64xf32>
    %c0_6 = arith.constant 0 : index
    %c0_7 = arith.constant 0 : index
    %8 = vector.load %arg4[%c0_6, %c0_7] : memref<512x64xf32, #tpu.memory_space<vmem>>, vector<512x64xf32>
    tpu.vector_store %arg4[%c0_6, %c0_7], %7 {strides = array<i32>} : memref<512x64xf32, #tpu.memory_space<vmem>>, vector<512x64xf32>,
    return
  }
  func.func @transform_0(%arg0: i32) -> (i32, i32) {
    %c0_i32 = arith.constant 0 : i32
    %c0_i32_0 = arith.constant 0 : i32
    return %arg0, %c0_i32 : i32, i32
  }
  func.func @transform_1(%arg0: i32) -> (i32, i32) {
    %c0_i32 = arith.constant 0 : i32
    %c0_i32_0 = arith.constant 0 : i32
    %c0_i32_1 = arith.constant 0 : i32
    return %c0_i32, %c0_i32_0 : i32, i32
  }
  func.func @transform_2(%arg0: i32) -> (i32, i32) {
    %c0_i32 = arith.constant 0 : i32
    %c0_i32_0 = arith.constant 0 : i32
    %c0_i32_1 = arith.constant 0 : i32
    return %c0_i32, %c0_i32_0 : i32, i32
  }
  func.func @transform_3(%arg0: i32) -> (i32, i32) {
    %c0_i32 = arith.constant 0 : i32
    %c0_i32_0 = arith.constant 0 : i32
    return %arg0, %c0_i32 : i32, i32
  }
}

module attributes {stable_mosaic.version = 11 : i64} {
  func.func @_matmul_bias_relu_kernel(%arg0: i32, %arg1: memref<512x576xbf16, #tpu.memory_space<vmem>>, %arg2: memref<576x64xbf16, #tpu.memory_space<vmem>>, %arg3: memref<1x64xf32, #tpu.memory_space<vmem>>, %arg4: memref<512x64xf32, #tpu.memory_space<vmem>>) attributes {dimension_semantics = [#tpu.dimension_semantics<parallel>], iteration_bounds = array<i64: 4>, scalar_prefetch = 0 : i64, scratch_operands = 0 : i64, tpu.core_type = #tpu.core_type<tc>, window_params = [{transform_indices = @transform_0, window_bounds = array<i64: 512, 576>}, {pipeline_mode = #tpu.pipeline_mode<synchronous>, transform_indices = @transform_1, window_bounds = array<i64: 576, 64>}, {pipeline_mode = #tpu.pipeline_mode<synchronous>, transform_indices = @transform_2, window_bounds = array<i64: 1, 64>}, {transform_indices = @transform_3, window_bounds = array<i64: 512, 64>}]} {
    %c0 = arith.constant 0 : index
    %c0_0 = arith.constant 0 : index
    %0 = vector.load %arg1[%c0, %c0_0] : memref<512x576xbf16, #tpu.memory_space<vmem>>, vector<512x576xbf16>
    %c0_1 = arith.constant 0 : index
    %c0_2 = arith.constant 0 : index
    %1 = vector.load %arg2[%c0_1, %c0_2] : memref<576x64xbf16, #tpu.memory_space<vmem>>, vector<576x64xbf16>
    %cst = arith.constant dense<0.000000e+00> : vector<512x64xf32>
    %2 = tpu.matmul %0, %1, %cst {dimension_numbers = #tpu.dot_dimension_numbers<[1], [0], [0], [1], [0, 0, 1, 1], [], []>} : vector<512x576xbf16>, vector<576x64xbf16>, vector<512x64xf32> -> vector<512x64xf32>
    %c0_3 = arith.constant 0 : index
    %c0_4 = arith.constant 0 : index
    %3 = vector.load %arg3[%c0_3, %c0_4] : memref<1x64xf32, #tpu.memory_space<vmem>>, vector<1x64xf32>
    %4 = vector.broadcast %3 : vector<1x64xf32> to vector<512x64xf32>
    %5 = arith.addf %2, %4 : vector<512x64xf32>
    %cst_5 = arith.constant 0.000000e+00 : f32
    %6 = vector.broadcast %cst_5 : f32 to vector<512x64xf32>
    %7 = arith.maximumf %5, %6 : vector<512x64xf32>
    %c0_6 = arith.constant 0 : index
    %c0_7 = arith.constant 0 : index
    %8 = vector.load %arg4[%c0_6, %c0_7] : memref<512x64xf32, #tpu.memory_space<vmem>>, vector<512x64xf32>
    tpu.vector_store %arg4[%c0_6, %c0_7], %7 {strides = array<i32>} : memref<512x64xf32, #tpu.memory_space<vmem>>, vector<512x64xf32>,
    return
  }
  func.func @transform_0(%arg0: i32) -> (i32, i32) {
    %c0_i32 = arith.constant 0 : i32
    %c0_i32_0 = arith.constant 0 : i32
    return %arg0, %c0_i32 : i32, i32
  }
  func.func @transform_1(%arg0: i32) -> (i32, i32) {
    %c0_i32 = arith.constant 0 : i32
    %c0_i32_0 = arith.constant 0 : i32
    %c0_i32_1 = arith.constant 0 : i32
    return %c0_i32, %c0_i32_0 : i32, i32
  }
  func.func @transform_2(%arg0: i32) -> (i32, i32) {
    %c0_i32 = arith.constant 0 : i32
    %c0_i32_0 = arith.constant 0 : i32
    %c0_i32_1 = arith.constant 0 : i32
    return %c0_i32, %c0_i32_0 : i32, i32
  }
  func.func @transform_3(%arg0: i32) -> (i32, i32) {
    %c0_i32 = arith.constant 0 : i32
    %c0_i32_0 = arith.constant 0 : i32
    return %arg0, %c0_i32 : i32, i32
  }
}

</mosaic_0001>

<llo_original>
// kernel: vgg16_forward.2
$region0: #{vgg16_forward.2}
  #allocation0 [shape = 'u32[]', space=smem, size = 0x4, offset = 0x4, fixed_abs, tag = 'smem constant byte address 0x4 - core index']
  #allocation1 [shape = 'u32[144,128]{1,0:T(1,128)}', space=vmem, size = 0x12000, scoped, tag = 'internal scratch']
  %s0 = inlined_call_operand.vmem [shape: bf16[2048,27], index: 0, kind: input, shape index: {}]
  %s1 = inlined_call_operand.vmem [shape: bf16[27,64], index: 1, kind: input, shape index: {}]
  %s2 = inlined_call_operand.hbm [shape: f32[1,64], index: 2, kind: input, shape index: {}]
  %s3 = inlined_call_operand.vmem [shape: f32[2048,64], index: 3, kind: output, shape index: {}]
  %s4 = sld [smem:[#allocation0]]
  $region49: #{vgg16_forward.2} parent=0
    _
  %s6 = ssub.s32 1, %s4
  %s7 = scalar_select 0, %s6, %s4
  $region1: #{vgg16_forward.2} parent=0
    #allocation2 [shape = 'u8[512]{0}', space=vmem, size = 0x400, scoped, tag = 'input window, operand 2, single buffered']
    #allocation3 [shape = 's32[2]{0}', space=sflag, size = 0x8, scoped, tag = 'scoped memory for vgg16_forward.2']
    %8 = vsyncpa [#allocation3], 0
    loop: start=0, step=1, limit=6
    $region2: #{vgg16_forward.2} parent=1 // loop_pre_header
      _
    $region3: #{vgg16_forward.2} parent=1 // loop_header
      %s10 = sphi 0, %s14
      %p11 = scmp.ge.s32.totalorder %s10, 6
      %s20 = sphi 0, %s22
      %s23 = sphi 0, %s20
      %s24 = sphi 0, %s23
      %s40 = sphi 0, %s24
      %s44 = sphi 0, %s44
      %s46 = sphi 0, %s44
      %s47 = sphi 0, %s46
      %s61 = sphi 0, %s47
      %s65 = sphi 0, %s65
      %s67 = sphi 0, %s65
      %s68 = sphi 0, %s67
      %s82 = sphi 0, %s68
      %s88 = sphi 0, %s90
      %s91 = sphi 0, %s88
      %s92 = sphi 0, %s91
      %s108 = sphi 0, %s92
    $region4: #{vgg16_forward.2} parent=1 // loop_header_branch
      %13 = sbr.rel (%p11) target = $region8
    $region5: #{vgg16_forward.2} parent=1 // loop_body
      %s15 = ssub.s32 %s10, 1
      %s16 = ssub.s32 %s10, 2
      %s17 = sadd.s32 %s10, 1
      %s18 = ssub.s32 %s10, %s17
      %p19 = scmp.eq.s32.totalorder %s18, 0
      %s21 = sadd.s32 %s20, 1
      %s22 = scalar_select %p19, %s20, %s21
      %p25 = pneg %p19
      %p26 = scmp.eq.s32.totalorder %s10, 3
      %p27 = por %p25, %p26
      %p28 = scmp.ne.s32.totalorder %s20, %s23
      %p29 = scmp.eq.s32.totalorder %s10, 0
      %p30 = por %p28, %p29
      %p31 = scmp.ne.s32.totalorder %s20, %s23
      %p32 = scmp.eq.s32.totalorder %s15, 3
      %p33 = por %p31, %p32
      %p34 = scmp.ne.s32.totalorder %s23, %s24
      %p35 = scmp.eq.s32.totalorder %s15, 0
      %p36 = por %p34, %p35
      %p37 = scmp.ne.s32.totalorder %s23, %s24
      %p38 = scmp.eq.s32.totalorder %s16, 3
      %p39 = por %p37, %p38
      %p41 = scmp.ne.s32.totalorder %s24, %s40
      %p42 = scmp.eq.s32.totalorder %s16, 0
      %p43 = por %p41, %p42
      %s45 = sadd.s32 %s44, 1
      %p48 = scmp.eq.s32.totalorder %s10, 3
      %p49 = scmp.ne.s32.totalorder %s44, %s46
      %p50 = scmp.eq.s32.totalorder %s10, 0
      %p51 = por %p49, %p50
      %p52 = scmp.ne.s32.totalorder %s44, %s46
      %p53 = scmp.eq.s32.totalorder %s15, 3
      %p54 = por %p52, %p53
      %p55 = scmp.ne.s32.totalorder %s46, %s47
      %p56 = scmp.eq.s32.totalorder %s15, 0
      %p57 = por %p55, %p56
      %p58 = scmp.ne.s32.totalorder %s46, %s47
      %p59 = scmp.eq.s32.totalorder %s16, 3
      %p60 = por %p58, %p59
      %p62 = scmp.ne.s32.totalorder %s47, %s61
      %p63 = scmp.eq.s32.totalorder %s16, 0
      %p64 = por %p62, %p63
      %s66 = sadd.s32 %s65, 1
      %p69 = scmp.eq.s32.totalorder %s10, 3
      %p70 = scmp.ne.s32.totalorder %s65, %s67
      %p71 = scmp.eq.s32.totalorder %s10, 0
      %p72 = por %p70, %p71
      %p73 = scmp.ne.s32.totalorder %s65, %s67
      %p74 = scmp.eq.s32.totalorder %s15, 3
      %p75 = por %p73, %p74
      %p76 = scmp.ne.s32.totalorder %s67, %s68
      %p77 = scmp.eq.s32.totalorder %s15, 0
      %p78 = por %p76, %p77
      %p79 = scmp.ne.s32.totalorder %s67, %s68
      %p80 = scmp.eq.s32.totalorder %s16, 3
      %p81 = por %p79, %p80
      %p83 = scmp.ne.s32.totalorder %s68, %s82
      %p84 = scmp.eq.s32.totalorder %s16, 0
      %p85 = por %p83, %p84
      %s86 = ssub.s32 %s10, %s17
      %p87 = scmp.eq.s32.totalorder %s86, 0
      %s89 = sadd.s32 %s88, 1
      %s90 = scalar_select %p87, %s88, %s89
      %p93 = pneg %p87
      %p94 = scmp.eq.s32.totalorder %s10, 3
      %p95 = por %p93, %p94
      %p96 = scmp.ne.s32.totalorder %s88, %s91
      %p97 = scmp.eq.s32.totalorder %s10, 0
      %p98 = por %p96, %p97
      %p99 = scmp.ne.s32.totalorder %s88, %s91
      %p100 = scmp.eq.s32.totalorder %s15, 3
      %p101 = por %p99, %p100
      %p102 = scmp.ne.s32.totalorder %s91, %s92
      %p103 = scmp.eq.s32.totalorder %s15, 0
      %p104 = por %p102, %p103
      %p105 = scmp.ne.s32.totalorder %s91, %s92
      %p106 = scmp.eq.s32.totalorder %s16, 3
      %p107 = por %p105, %p106
      %p109 = scmp.ne.s32.totalorder %s92, %s108
      %p110 = scmp.eq.s32.totalorder %s16, 0
      %p111 = por %p109, %p110
      %p112 = scmp.le.s32.totalorder 1, %s10
      %p113 = scmp.lt.s32.totalorder %s10, 5
      %p114 = pnand %p112, %p113
      %p115 = pneg %p114
      // Predicated region
      $region9: #{vgg16_forward.2} parent=5 // pred_check
        _
      $region10: #{vgg16_forward.2} parent=5 // pred_check_branch
        %117 = sbr.rel (%p114) target = $region12
      $region11: #{vgg16_forward.2} parent=5 // pred_region
        %s118 = ssub.s32 %s10, 1
        // Predicated region
        $region13: #{vgg16_forward.2} parent=11 // pred_check
          %p119 = pneg %p57
        $region14: #{vgg16_forward.2} parent=11 // pred_check_branch
          %121 = sbr.rel (%p119) target = $region16
        $region15: #{vgg16_forward.2} parent=11 // pred_region
          _
        $region16: #{vgg16_forward.2} parent=11 // pred_fallthru
          _
        // Predicated region
        $region17: #{vgg16_forward.2} parent=11 // pred_check
          %p122 = pneg %p78
        $region18: #{vgg16_forward.2} parent=11 // pred_check_branch
          %124 = sbr.rel (%p122) target = $region20
        $region19: #{vgg16_forward.2} parent=11 // pred_region
          %s126 = ssub.s32 16, 16
          %127 = vsyncadd [#allocation3], %s126
          %s129 = sshll.u32 [#allocation2], 4
          %s130 = int_to_ptr.vmem [resolvable:$true] %s129
          %132 = dma.hbm_to_vmem [thread:$0]  %s2, 16, %s130, [#allocation3]
        $region20: #{vgg16_forward.2} parent=11 // pred_fallthru
          _
      $region12: #{vgg16_forward.2} parent=5 // pred_fallthru
        _
      %p133 = scmp.lt.s32.totalorder %s10, 4
      // Predicated region
      $region21: #{vgg16_forward.2} parent=5 // pred_check
        %p134 = pneg %p133
      $region22: #{vgg16_forward.2} parent=5 // pred_check_branch
        %136 = sbr.rel (%p134) target = $region24
      $region23: #{vgg16_forward.2} parent=5 // pred_region
        // Predicated region
        $region25: #{vgg16_forward.2} parent=23 // pred_check
          %p137 = pneg %p30
        $region26: #{vgg16_forward.2} parent=23 // pred_check_branch
          %139 = sbr.rel (%p137) target = $region28
        $region27: #{vgg16_forward.2} parent=23 // pred_region
          %s140 = smul.u32 64, %s10
          %p141 = scmp.lt.s32.totalorder %s140, 255
          %s142 = scalar_select %p141, %s140, 255
          %s143 = smul.addr %s142, 4
          %s144 = scalar_lea.vmem %s0, %s143
          %s145 = smul.u32 64, %s10
        $region28: #{vgg16_forward.2} parent=23 // pred_fallthru
          _
      $region24: #{vgg16_forward.2} parent=5 // pred_fallthru
        _
      %p146 = scmp.le.s32.totalorder 1, %s10
      %p147 = scmp.lt.s32.totalorder %s10, 5
      %p148 = pnand %p146, %p147
      %p149 = pneg %p148
      // Predicated region
      $region29: #{vgg16_forward.2} parent=5 // pred_check
        _
      $region30: #{vgg16_forward.2} parent=5 // pred_check_branch
        %151 = sbr.rel (%p148) target = $region32
      $region31: #{vgg16_forward.2} parent=5 // pred_region
        %s152 = ssub.s32 %s10, 1
        // Predicated region
        $region33: #{vgg16_forward.2} parent=31 // pred_check
          %p153 = pneg %p78
        $region34: #{vgg16_forward.2} parent=31 // pred_check_branch
          %155 = sbr.rel (%p153) target = $region36
        $region35: #{vgg16_forward.2} parent=31 // pred_region
          %156 = dma.done [#allocation3], 16
        $region36: #{vgg16_forward.2} parent=31 // pred_fallthru
          _
        %s157 = smul.u32 64, %s15
        %p158 = scmp.lt.s32.totalorder %s157, 255
        %s159 = scalar_select %p158, %s157, 255
        %s160 = smul.addr %s159, 4
        %s161 = scalar_lea.vmem %s0, %s160
        %p162 = pneg %p36
        %p163 = pneg %p33
        %p164 = pneg %p57
        %p165 = pneg %p54
        %p166 = pneg %p78
        %p167 = pneg %p75
        %p168 = pneg %p104
        %p169 = pneg %p101
        %s170 = smul.u32 64, %s15
        %p171 = scmp.lt.s32.totalorder %s170, 255
        %s172 = scalar_select %p171, %s170, 255
        %s173 = smul.addr %s172, 8
        %s174 = scalar_lea.vmem %s3, %s173
        %s175 = smul.u32 64, %s15
        %p176 = scmp.lt.s32.totalorder %s175, 255
        %s177 = scalar_select %p176, %s175, 255
        %s178 = smul.addr %s177, 4
        %s179 = scalar_lea.vmem %s0, %s178
        %s180 = smul.u32 64, %s15
        %s181 = smul.u32 64, %s15
        %p182 = scmp.lt.s32.totalorder %s181, 255
        %s183 = scalar_select %p182, %s181, 255
        %s184 = smul.addr %s183, 8
        %s185 = scalar_lea.vmem %s3, %s184
        %s186 = smul.u32 64, %s15
        %v188 = vld [vmem:[%s179] sm:$0xf]
        %v189 = vld [vmem:[%s179 + $0x4] sm:$0xf]
        %v190 = vld [vmem:[%s179 + $0x8] sm:$0xf]
        %v191 = vld [vmem:[%s179 + $0xc] sm:$0xf]
        %v192 = vld [vmem:[%s179 + $0x10] sm:$0xf]
        %v193 = vld [vmem:[%s179 + $0x14] sm:$0xf]
        %v194 = vld [vmem:[%s179 + $0x18] sm:$0xf]
        %v195 = vld [vmem:[%s179 + $0x1c] sm:$0xf]
        %v196 = vld [vmem:[%s179 + $0x20] sm:$0xf]
        %v197 = vld [vmem:[%s179 + $0x24] sm:$0xf]
        %v198 = vld [vmem:[%s179 + $0x28] sm:$0xf]
        %v199 = vld [vmem:[%s179 + $0x2c] sm:$0xf]
        %v200 = vld [vmem:[%s179 + $0x30] sm:$0xf]
        %v201 = vld [vmem:[%s179 + $0x34] sm:$0xf]
        %v202 = vld [vmem:[%s179 + $0x38] sm:$0xf]
        %v203 = vld [vmem:[%s179 + $0x3c] sm:$0xf]
        %v204 = vld [vmem:[%s179 + $0x40] sm:$0xf]
        %v205 = vld [vmem:[%s179 + $0x44] sm:$0xf]
        %v206 = vld [vmem:[%s179 + $0x48] sm:$0xf]
        %v207 = vld [vmem:[%s179 + $0x4c] sm:$0xf]
        %v208 = vld [vmem:[%s179 + $0x50] sm:$0xf]
        %v209 = vld [vmem:[%s179 + $0x54] sm:$0xf]
        %v210 = vld [vmem:[%s179 + $0x58] sm:$0xf]
        %v211 = vld [vmem:[%s179 + $0x5c] sm:$0xf]
        %v212 = vld [vmem:[%s179 + $0x60] sm:$0xf]
        %v213 = vld [vmem:[%s179 + $0x64] sm:$0xf]
        %v214 = vld [vmem:[%s179 + $0x68] sm:$0xf]
        %v215 = vld [vmem:[%s179 + $0x6c] sm:$0xf]
        %v216 = vld [vmem:[%s179 + $0x70] sm:$0xf]
        %v217 = vld [vmem:[%s179 + $0x74] sm:$0xf]
        %v218 = vld [vmem:[%s179 + $0x78] sm:$0xf]
        %v219 = vld [vmem:[%s179 + $0x7c] sm:$0xf]
        %v220 = vld [vmem:[%s179 + $0x80] sm:$0xf]
        %v221 = vld [vmem:[%s179 + $0x84] sm:$0xf]
        %v222 = vld [vmem:[%s179 + $0x88] sm:$0xf]
        %v223 = vld [vmem:[%s179 + $0x8c] sm:$0xf]
        %v224 = vld [vmem:[%s179 + $0x90] sm:$0xf]
        %v225 = vld [vmem:[%s179 + $0x94] sm:$0xf]
        %v226 = vld [vmem:[%s179 + $0x98] sm:$0xf]
        %v227 = vld [vmem:[%s179 + $0x9c] sm:$0xf]
        %v228 = vld [vmem:[%s179 + $0xa0] sm:$0xf]
        %v229 = vld [vmem:[%s179 + $0xa4] sm:$0xf]
        %v230 = vld [vmem:[%s179 + $0xa8] sm:$0xf]
        %v231 = vld [vmem:[%s179 + $0xac] sm:$0xf]
        %v232 = vld [vmem:[%s179 + $0xb0] sm:$0xf]
        %v233 = vld [vmem:[%s179 + $0xb4] sm:$0xf]
        %v234 = vld [vmem:[%s179 + $0xb8] sm:$0xf]
        %v235 = vld [vmem:[%s179 + $0xbc] sm:$0xf]
        %v236 = vld [vmem:[%s179 + $0xc0] sm:$0xf]
        %v237 = vld [vmem:[%s179 + $0xc4] sm:$0xf]
        %v238 = vld [vmem:[%s179 + $0xc8] sm:$0xf]
        %v239 = vld [vmem:[%s179 + $0xcc] sm:$0xf]
        %v240 = vld [vmem:[%s179 + $0xd0] sm:$0xf]
        %v241 = vld [vmem:[%s179 + $0xd4] sm:$0xf]
        %v242 = vld [vmem:[%s179 + $0xd8] sm:$0xf]
        %v243 = vld [vmem:[%s179 + $0xdc] sm:$0xf]
        %v244 = vld [vmem:[%s179 + $0xe0] sm:$0xf]
        %v245 = vld [vmem:[%s179 + $0xe4] sm:$0xf]
        %v246 = vld [vmem:[%s179 + $0xe8] sm:$0xf]
        %v247 = vld [vmem:[%s179 + $0xec] sm:$0xf]
        %v248 = vld [vmem:[%s179 + $0xf0] sm:$0xf]
        %v249 = vld [vmem:[%s179 + $0xf4] sm:$0xf]
        %v250 = vld [vmem:[%s179 + $0xf8] sm:$0xf]
        %v251 = vld [vmem:[%s179 + $0xfc] sm:$0xf]
        %v252 = vld [vmem:[%s1] sm:$0xf]
        %v253 = vld [vmem:[%s1 + $0x4] sm:$0xf]
        %v254 = vld [vmem:[%s1 + $0x8] sm:$0xf]
        %v255 = vld [vmem:[%s1 + $0xc] sm:$0x3]
        %v256 = vld [vmem:[#allocation2] sm:$0x1]
        %v258 = vlaneseq
        %v259 = vshrl.u32 %v258, 7
        %v260 = vsub.s32 0, %v259
        %v261 = vrot.slane %v256, %v260
        %v327 = vunpack.c.l.b16 %v188
        %v328 = vunpack.c.l.b16 %v189
        %v329 = vunpack.c.l.b16 %v190
        %v330 = vunpack.c.l.b16 %v191
        %v331 = vunpack.c.l.b16 %v192
        %v332 = vunpack.c.l.b16 %v193
        %v333 = vunpack.c.l.b16 %v194
        %v334 = vunpack.c.l.b16 %v195
        %v335 = vunpack.c.l.b16 %v196
        %v336 = vunpack.c.l.b16 %v197
        %v337 = vunpack.c.l.b16 %v198
        %v338 = vunpack.c.l.b16 %v199
        %v339 = vunpack.c.l.b16 %v200
        %v340 = vunpack.c.l.b16 %v201
        %v341 = vunpack.c.l.b16 %v202
        %v342 = vunpack.c.l.b16 %v203
        %v343 = vunpack.c.l.b16 %v204
        %v344 = vunpack.c.l.b16 %v205
        %v345 = vunpack.c.l.b16 %v206
        %v346 = vunpack.c.l.b16 %v207
        %v347 = vunpack.c.l.b16 %v208
        %v348 = vunpack.c.l.b16 %v209
        %v349 = vunpack.c.l.b16 %v210
        %v350 = vunpack.c.l.b16 %v211
        %v351 = vunpack.c.l.b16 %v212
        %v352 = vunpack.c.l.b16 %v213
        %v353 = vunpack.c.l.b16 %v214
        %v354 = vunpack.c.l.b16 %v215
        %v355 = vunpack.c.l.b16 %v216
        %v356 = vunpack.c.l.b16 %v217
        %v357 = vunpack.c.l.b16 %v218
        %v358 = vunpack.c.l.b16 %v219
        %v359 = vunpack.c.l.b16 %v220
        %v360 = vunpack.c.l.b16 %v221
        %v361 = vunpack.c.l.b16 %v222
        %v362 = vunpack.c.l.b16 %v223
        %v363 = vunpack.c.l.b16 %v224
        %v364 = vunpack.c.l.b16 %v225
        %v365 = vunpack.c.l.b16 %v226
        %v366 = vunpack.c.l.b16 %v227
        %v367 = vunpack.c.l.b16 %v228
        %v368 = vunpack.c.l.b16 %v229
        %v369 = vunpack.c.l.b16 %v230
        %v370 = vunpack.c.l.b16 %v231
        %v371 = vunpack.c.l.b16 %v232
        %v372 = vunpack.c.l.b16 %v233
        %v373 = vunpack.c.l.b16 %v234
        %v374 = vunpack.c.l.b16 %v235
        %v375 = vunpack.c.l.b16 %v236
        %v376 = vunpack.c.l.b16 %v237
        %v377 = vunpack.c.l.b16 %v238
        %v378 = vunpack.c.l.b16 %v239
        %v379 = vunpack.c.l.b16 %v240
        %v380 = vunpack.c.l.b16 %v241
        %v381 = vunpack.c.l.b16 %v242
        %v382 = vunpack.c.l.b16 %v243
        %v383 = vunpack.c.l.b16 %v244
        %v384 = vunpack.c.l.b16 %v245
        %v385 = vunpack.c.l.b16 %v246
        %v386 = vunpack.c.l.b16 %v247
        %v387 = vunpack.c.l.b16 %v248
        %v388 = vunpack.c.l.b16 %v249
        %v389 = vunpack.c.l.b16 %v250
        %v390 = vunpack.c.l.b16 %v251
        %v391 = vpack.c.b16 %v328, %v327
        %v392 = vpack.c.b16 %v330, %v329
        %v393 = vpack.c.b16 %v332, %v331
        %v394 = vpack.c.b16 %v334, %v333
        %v395 = vpack.c.b16 %v336, %v335
        %v396 = vpack.c.b16 %v338, %v337
        %v397 = vpack.c.b16 %v340, %v339
        %v398 = vpack.c.b16 %v342, %v341
        %v399 = vpack.c.b16 %v344, %v343
        %v400 = vpack.c.b16 %v346, %v345
        %v401 = vpack.c.b16 %v348, %v347
        %v402 = vpack.c.b16 %v350, %v349
        %v403 = vpack.c.b16 %v352, %v351
        %v404 = vpack.c.b16 %v354, %v353
        %v405 = vpack.c.b16 %v356, %v355
        %v406 = vpack.c.b16 %v358, %v357
        %v407 = vpack.c.b16 %v360, %v359
        %v408 = vpack.c.b16 %v362, %v361
        %v409 = vpack.c.b16 %v364, %v363
        %v410 = vpack.c.b16 %v366, %v365
        %v411 = vpack.c.b16 %v368, %v367
        %v412 = vpack.c.b16 %v370, %v369
        %v413 = vpack.c.b16 %v372, %v371
        %v414 = vpack.c.b16 %v374, %v373
        %v415 = vpack.c.b16 %v376, %v375
        %v416 = vpack.c.b16 %v378, %v377
        %v417 = vpack.c.b16 %v380, %v379
        %v418 = vpack.c.b16 %v382, %v381
        %v419 = vpack.c.b16 %v384, %v383
        %v420 = vpack.c.b16 %v386, %v385
        %v421 = vpack.c.b16 %v388, %v387
        %v422 = vpack.c.b16 %v390, %v389
        %v427 = vunpack.c.l.b16 %v252
        %v428 = vunpack.c.l.b16 %v253
        %v429 = vunpack.c.l.b16 %v254
        %v430 = vunpack.c.l.b16 %v255
        %v431 = vpack.c.b16 %v428, %v427
        %v432 = vpack.c.b16 %v430, %v429
        %vm434 = vcmask 220160
        %v436 = vsel %vm434, %v391, 0
        %v439 = vsel %vm434, %v392, 0
        %v442 = vsel %vm434, %v393, 0
        %v445 = vsel %vm434, %v394, 0
        %v448 = vsel %vm434, %v395, 0
        %v451 = vsel %vm434, %v396, 0
        %v454 = vsel %vm434, %v397, 0
        %v457 = vsel %vm434, %v398, 0
        %v460 = vsel %vm434, %v399, 0
        %v463 = vsel %vm434, %v400, 0
        %v466 = vsel %vm434, %v401, 0
        %v469 = vsel %vm434, %v402, 0
        %v472 = vsel %vm434, %v403, 0
        %v475 = vsel %vm434, %v404, 0
        %v478 = vsel %vm434, %v405, 0
        %v481 = vsel %vm434, %v406, 0
        %v484 = vsel %vm434, %v407, 0
        %v487 = vsel %vm434, %v408, 0
        %v490 = vsel %vm434, %v409, 0
        %v493 = vsel %vm434, %v410, 0
        %v496 = vsel %vm434, %v411, 0
        %v499 = vsel %vm434, %v412, 0
        %v502 = vsel %vm434, %v413, 0
        %v505 = vsel %vm434, %v414, 0
        %v508 = vsel %vm434, %v415, 0
        %v511 = vsel %vm434, %v416, 0
        %v514 = vsel %vm434, %v417, 0
        %v517 = vsel %vm434, %v418, 0
        %v520 = vsel %vm434, %v419, 0
        %v523 = vsel %vm434, %v420, 0
        %v526 = vsel %vm434, %v421, 0
        %v529 = vsel %vm434, %v422, 0
        %vm531 = vcmask 1044480
        %vm532 = vcmask 1045504
        %v533 = vsel %vm531, 4294967295, 65535
        %v534 = vsel %vm532, %v533, 0
        %v536 = vand.u32 %v432, %v534
        %538 = vmatprep.subr.bf16.mxu0 0
        %539 = vmatpush1.bf16.msra.mxu0 %v431
        %540 = vmatprep.subr.bf16.mxu0 0
        %541 = vmatpush1.bf16.msra.mxu0 %v536
        %542 = vmatprep.subr.bf16.mxu0 0
        %543 = vmatpush1.bf16.msra.mxu0 0
        %544 = vmatprep.subr.bf16.mxu0 0
        %545 = vmatpush1.bf16.msra.mxu0 0
        %546 = vmatprep.subr.bf16.mxu0 0
        %547 = vmatpush1.bf16.msra.mxu0 0
        %548 = vmatprep.subr.bf16.mxu0 0
        %549 = vmatpush1.bf16.msra.mxu0 0
        %550 = vmatprep.subr.bf16.mxu0 0
        %551 = vmatpush1.bf16.msra.mxu0 0
        %552 = vmatprep.subr.bf16.mxu0 0
        %553 = vmatpush1.bf16.msra.mxu0 0
        %554 = vmatprep.subr.bf16.mxu0 0
        %555 = vmatpush1.bf16.msra.mxu0 0
        %556 = vmatprep.subr.bf16.mxu0 0
        %557 = vmatpush1.bf16.msra.mxu0 0
        %558 = vmatprep.subr.bf16.mxu0 0
        %559 = vmatpush1.bf16.msra.mxu0 0
        %560 = vmatprep.subr.bf16.mxu0 0
        %561 = vmatpush1.bf16.msra.mxu0 0
        %562 = vmatprep.subr.bf16.mxu0 0
        %563 = vmatpush1.bf16.msra.mxu0 0
        %564 = vmatprep.subr.bf16.mxu0 0
        %565 = vmatpush1.bf16.msra.mxu0 0
        %566 = vmatprep.subr.bf16.mxu0 0
        %567 = vmatpush1.bf16.msra.mxu0 0
        %568 = vmatprep.subr.bf16.mxu0 0
        %569 = vmatpush1.bf16.msra.mxu0 0
        %570 = vmatprep.mubr.bf16.mxu0 0
        %571 = vmatmul.mubr.bf16.gmra.mrb[0].mxu0 %v436
        %v572 = vpop.f32.mrb[0].mxu0
        %v573 = vadd.f32 %v261, %v572
        %v574 = vpop.f32.mrb[0].mxu0
        %v575 = vpop.f32.mrb[0].mxu0
        %v576 = vadd.f32 %v261, %v575
        %v577 = vpop.f32.mrb[0].mxu0
        %578 = vmatprep.mubr.bf16.mxu0 0
        %579 = vmatmul.mubr.bf16.gmra.mrb[0].mxu0 %v439
        %v580 = vpop.f32.mrb[0].mxu0
        %v581 = vadd.f32 %v261, %v580
        %v582 = vpop.f32.mrb[0].mxu0
        %v583 = vpop.f32.mrb[0].mxu0
        %v584 = vadd.f32 %v261, %v583
        %v585 = vpop.f32.mrb[0].mxu0
        %586 = vmatprep.mubr.bf16.mxu0 0
        %587 = vmatmul.mubr.bf16.gmra.mrb[0].mxu0 %v442
        %v588 = vpop.f32.mrb[0].mxu0
        %v589 = vadd.f32 %v261, %v588
        %v590 = vpop.f32.mrb[0].mxu0
        %v591 = vpop.f32.mrb[0].mxu0
        %v592 = vadd.f32 %v261, %v591
        %v593 = vpop.f32.mrb[0].mxu0
        %594 = vmatprep.mubr.bf16.mxu0 0
        %595 = vmatmul.mubr.bf16.gmra.mrb[0].mxu0 %v445
        %v596 = vpop.f32.mrb[0].mxu0
        %v597 = vadd.f32 %v261, %v596
        %v598 = vpop.f32.mrb[0].mxu0
        %v599 = vpop.f32.mrb[0].mxu0
        %v600 = vadd.f32 %v261, %v599
        %v601 = vpop.f32.mrb[0].mxu0
        %602 = vmatprep.mubr.bf16.mxu0 0
        %603 = vmatmul.mubr.bf16.gmra.mrb[0].mxu0 %v448
        %v604 = vpop.f32.mrb[0].mxu0
        %v605 = vadd.f32 %v261, %v604
        %v606 = vpop.f32.mrb[0].mxu0
        %v607 = vpop.f32.mrb[0].mxu0
        %v608 = vadd.f32 %v261, %v607
        %v609 = vpop.f32.mrb[0].mxu0
        %610 = vmatprep.mubr.bf16.mxu0 0
        %611 = vmatmul.mubr.bf16.gmra.mrb[0].mxu0 %v451
        %v612 = vpop.f32.mrb[0].mxu0
        %v613 = vadd.f32 %v261, %v612
        %v614 = vpop.f32.mrb[0].mxu0
        %v615 = vpop.f32.mrb[0].mxu0
        %v616 = vadd.f32 %v261, %v615
        %v617 = vpop.f32.mrb[0].mxu0
        %618 = vmatprep.mubr.bf16.mxu0 0
        %619 = vmatmul.mubr.bf16.gmra.mrb[0].mxu0 %v454
        %v620 = vpop.f32.mrb[0].mxu0
        %v621 = vadd.f32 %v261, %v620
        %v622 = vpop.f32.mrb[0].mxu0
        %v623 = vpop.f32.mrb[0].mxu0
        %v624 = vadd.f32 %v261, %v623
        %v625 = vpop.f32.mrb[0].mxu0
        %626 = vmatprep.mubr.bf16.mxu0 0
        %627 = vmatmul.mubr.bf16.gmra.mrb[0].mxu0 %v457
        %v628 = vpop.f32.mrb[0].mxu0
        %v629 = vadd.f32 %v261, %v628
        %v630 = vpop.f32.mrb[0].mxu0
        %v631 = vpop.f32.mrb[0].mxu0
        %v632 = vadd.f32 %v261, %v631
        %v633 = vpop.f32.mrb[0].mxu0
        %634 = vmatprep.mubr.bf16.mxu0 0
        %635 = vmatmul.mubr.bf16.gmra.mrb[0].mxu0 %v460
        %v636 = vpop.f32.mrb[0].mxu0
        %v637 = vadd.f32 %v261, %v636
        %v638 = vpop.f32.mrb[0].mxu0
        %v639 = vpop.f32.mrb[0].mxu0
        %v640 = vadd.f32 %v261, %v639
        %v641 = vpop.f32.mrb[0].mxu0
        %642 = vmatprep.mubr.bf16.mxu0 0
        %643 = vmatmul.mubr.bf16.gmra.mrb[0].mxu0 %v463
        %v644 = vpop.f32.mrb[0].mxu0
        %v645 = vadd.f32 %v261, %v644
        %v646 = vpop.f32.mrb[0].mxu0
        %v647 = vpop.f32.mrb[0].mxu0
        %v648 = vadd.f32 %v261, %v647
        %v649 = vpop.f32.mrb[0].mxu0
        %650 = vmatprep.mubr.bf16.mxu0 0
        %651 = vmatmul.mubr.bf16.gmra.mrb[0].mxu0 %v466
        %v652 = vpop.f32.mrb[0].mxu0
        %v653 = vadd.f32 %v261, %v652
        %v654 = vpop.f32.mrb[0].mxu0
        %v655 = vpop.f32.mrb[0].mxu0
        %v656 = vadd.f32 %v261, %v655
        %v657 = vpop.f32.mrb[0].mxu0
        %658 = vmatprep.mubr.bf16.mxu0 0
        %659 = vmatmul.mubr.bf16.gmra.mrb[0].mxu0 %v469
        %v660 = vpop.f32.mrb[0].mxu0
        %v661 = vadd.f32 %v261, %v660
        %v662 = vpop.f32.mrb[0].mxu0
        %v663 = vpop.f32.mrb[0].mxu0
        %v664 = vadd.f32 %v261, %v663
        %v665 = vpop.f32.mrb[0].mxu0
        %666 = vmatprep.mubr.bf16.mxu0 0
        %667 = vmatmul.mubr.bf16.gmra.mrb[0].mxu0 %v472
        %v668 = vpop.f32.mrb[0].mxu0
        %v669 = vadd.f32 %v261, %v668
        %v670 = vpop.f32.mrb[0].mxu0
        %v671 = vpop.f32.mrb[0].mxu0
        %v672 = vadd.f32 %v261, %v671
        %v673 = vpop.f32.mrb[0].mxu0
        %674 = vmatprep.mubr.bf16.mxu0 0
        %675 = vmatmul.mubr.bf16.gmra.mrb[0].mxu0 %v475
        %v676 = vpop.f32.mrb[0].mxu0
        %v677 = vadd.f32 %v261, %v676
        %v678 = vpop.f32.mrb[0].mxu0
        %v679 = vpop.f32.mrb[0].mxu0
        %v680 = vadd.f32 %v261, %v679
        %v681 = vpop.f32.mrb[0].mxu0
        %682 = vmatprep.mubr.bf16.mxu0 0
        %683 = vmatmul.mubr.bf16.gmra.mrb[0].mxu0 %v478
        %v684 = vpop.f32.mrb[0].mxu0
        %v685 = vadd.f32 %v261, %v684
        %v686 = vpop.f32.mrb[0].mxu0
        %v687 = vpop.f32.mrb[0].mxu0
        %v688 = vadd.f32 %v261, %v687
        %v689 = vpop.f32.mrb[0].mxu0
        %690 = vmatprep.mubr.bf16.mxu0 0
        %691 = vmatmul.mubr.bf16.gmra.mrb[0].mxu0 %v481
        %v692 = vpop.f32.mrb[0].mxu0
        %v693 = vadd.f32 %v261, %v692
        %v694 = vpop.f32.mrb[0].mxu0
        %v695 = vpop.f32.mrb[0].mxu0
        %v696 = vadd.f32 %v261, %v695
        %v697 = vpop.f32.mrb[0].mxu0
        %698 = vmatprep.mubr.bf16.mxu0 0
        %699 = vmatmul.mubr.bf16.gmra.mrb[0].mxu0 %v484
        %v700 = vpop.f32.mrb[0].mxu0
        %v701 = vadd.f32 %v261, %v700
        %v702 = vpop.f32.mrb[0].mxu0
        %v703 = vpop.f32.mrb[0].mxu0
        %v704 = vadd.f32 %v261, %v703
        %v705 = vpop.f32.mrb[0].mxu0
        %706 = vmatprep.mubr.bf16.mxu0 0
        %707 = vmatmul.mubr.bf16.gmra.mrb[0].mxu0 %v487
        %v708 = vpop.f32.mrb[0].mxu0
        %v709 = vadd.f32 %v261, %v708
        %v710 = vpop.f32.mrb[0].mxu0
        %v711 = vpop.f32.mrb[0].mxu0
        %v712 = vadd.f32 %v261, %v711
        %v713 = vpop.f32.mrb[0].mxu0
        %714 = vmatprep.mubr.bf16.mxu0 0
        %715 = vmatmul.mubr.bf16.gmra.mrb[0].mxu0 %v490
        %v716 = vpop.f32.mrb[0].mxu0
        %v717 = vadd.f32 %v261, %v716
        %v718 = vpop.f32.mrb[0].mxu0
        %v719 = vpop.f32.mrb[0].mxu0
        %v720 = vadd.f32 %v261, %v719
        %v721 = vpop.f32.mrb[0].mxu0
        %722 = vmatprep.mubr.bf16.mxu0 0
        %723 = vmatmul.mubr.bf16.gmra.mrb[0].mxu0 %v493
        %v724 = vpop.f32.mrb[0].mxu0
        %v725 = vadd.f32 %v261, %v724
        %v726 = vpop.f32.mrb[0].mxu0
        %v727 = vpop.f32.mrb[0].mxu0
        %v728 = vadd.f32 %v261, %v727
        %v729 = vpop.f32.mrb[0].mxu0
        %730 = vmatprep.mubr.bf16.mxu0 0
        %731 = vmatmul.mubr.bf16.gmra.mrb[0].mxu0 %v496
        %v732 = vpop.f32.mrb[0].mxu0
        %v733 = vadd.f32 %v261, %v732
        %v734 = vpop.f32.mrb[0].mxu0
        %v735 = vpop.f32.mrb[0].mxu0
        %v736 = vadd.f32 %v261, %v735
        %v737 = vpop.f32.mrb[0].mxu0
        %738 = vmatprep.mubr.bf16.mxu0 0
        %739 = vmatmul.mubr.bf16.gmra.mrb[0].mxu0 %v499
        %v740 = vpop.f32.mrb[0].mxu0
        %v741 = vadd.f32 %v261, %v740
        %v742 = vpop.f32.mrb[0].mxu0
        %v743 = vpop.f32.mrb[0].mxu0
        %v744 = vadd.f32 %v261, %v743
        %v745 = vpop.f32.mrb[0].mxu0
        %746 = vmatprep.mubr.bf16.mxu0 0
        %747 = vmatmul.mubr.bf16.gmra.mrb[0].mxu0 %v502
        %v748 = vpop.f32.mrb[0].mxu0
        %v749 = vadd.f32 %v261, %v748
        %v750 = vpop.f32.mrb[0].mxu0
        %v751 = vpop.f32.mrb[0].mxu0
        %v752 = vadd.f32 %v261, %v751
        %v753 = vpop.f32.mrb[0].mxu0
        %754 = vmatprep.mubr.bf16.mxu0 0
        %755 = vmatmul.mubr.bf16.gmra.mrb[0].mxu0 %v505
        %v756 = vpop.f32.mrb[0].mxu0
        %v757 = vadd.f32 %v261, %v756
        %v758 = vpop.f32.mrb[0].mxu0
        %v759 = vpop.f32.mrb[0].mxu0
        %v760 = vadd.f32 %v261, %v759
        %v761 = vpop.f32.mrb[0].mxu0
        %762 = vmatprep.mubr.bf16.mxu0 0
        %763 = vmatmul.mubr.bf16.gmra.mrb[0].mxu0 %v508
        %v764 = vpop.f32.mrb[0].mxu0
        %v765 = vadd.f32 %v261, %v764
        %v766 = vpop.f32.mrb[0].mxu0
        %v767 = vpop.f32.mrb[0].mxu0
        %v768 = vadd.f32 %v261, %v767
        %v769 = vpop.f32.mrb[0].mxu0
        %770 = vmatprep.mubr.bf16.mxu0 0
        %771 = vmatmul.mubr.bf16.gmra.mrb[0].mxu0 %v511
        %v772 = vpop.f32.mrb[0].mxu0
        %v773 = vadd.f32 %v261, %v772
        %v774 = vpop.f32.mrb[0].mxu0
        %v775 = vpop.f32.mrb[0].mxu0
        %v776 = vadd.f32 %v261, %v775
        %v777 = vpop.f32.mrb[0].mxu0
        %778 = vmatprep.mubr.bf16.mxu0 0
        %779 = vmatmul.mubr.bf16.gmra.mrb[0].mxu0 %v514
        %v780 = vpop.f32.mrb[0].mxu0
        %v781 = vadd.f32 %v261, %v780
        %v782 = vpop.f32.mrb[0].mxu0
        %v783 = vpop.f32.mrb[0].mxu0
        %v784 = vadd.f32 %v261, %v783
        %v785 = vpop.f32.mrb[0].mxu0
        %786 = vmatprep.mubr.bf16.mxu0 0
        %787 = vmatmul.mubr.bf16.gmra.mrb[0].mxu0 %v517
        %v788 = vpop.f32.mrb[0].mxu0
        %v789 = vadd.f32 %v261, %v788
        %v790 = vpop.f32.mrb[0].mxu0
        %v791 = vpop.f32.mrb[0].mxu0
        %v792 = vadd.f32 %v261, %v791
        %v793 = vpop.f32.mrb[0].mxu0
        %794 = vmatprep.mubr.bf16.mxu0 0
        %795 = vmatmul.mubr.bf16.gmra.mrb[0].mxu0 %v520
        %v796 = vpop.f32.mrb[0].mxu0
        %v797 = vadd.f32 %v261, %v796
        %v798 = vpop.f32.mrb[0].mxu0
        %v799 = vpop.f32.mrb[0].mxu0
        %v800 = vadd.f32 %v261, %v799
        %v801 = vpop.f32.mrb[0].mxu0
        %802 = vmatprep.mubr.bf16.mxu0 0
        %803 = vmatmul.mubr.bf16.gmra.mrb[0].mxu0 %v523
        %v804 = vpop.f32.mrb[0].mxu0
        %v805 = vadd.f32 %v261, %v804
        %v806 = vpop.f32.mrb[0].mxu0
        %v807 = vpop.f32.mrb[0].mxu0
        %v808 = vadd.f32 %v261, %v807
        %v809 = vpop.f32.mrb[0].mxu0
        %810 = vmatprep.mubr.bf16.mxu0 0
        %811 = vmatmul.mubr.bf16.gmra.mrb[0].mxu0 %v526
        %v812 = vpop.f32.mrb[0].mxu0
        %v813 = vadd.f32 %v261, %v812
        %v814 = vpop.f32.mrb[0].mxu0
        %v815 = vpop.f32.mrb[0].mxu0
        %v816 = vadd.f32 %v261, %v815
        %v817 = vpop.f32.mrb[0].mxu0
        %818 = vmatprep.mubr.bf16.mxu0 0
        %819 = vmatmul.mubr.bf16.gmra.mrb[0].mxu0 %v529
        %v820 = vpop.f32.mrb[0].mxu0
        %v821 = vadd.f32 %v261, %v820
        %v822 = vpop.f32.mrb[0].mxu0
        %v823 = vpop.f32.mrb[0].mxu0
        %v824 = vadd.f32 %v261, %v823
        %v825 = vpop.f32.mrb[0].mxu0
        %826 = vdwg.mxu0
        %v827 = vmax.f32 %v573, 0.0
        %v828 = vmax.f32 %v576, 0.0
        %v829 = vmax.f32 %v581, 0.0
        %v830 = vmax.f32 %v584, 0.0
        %v831 = vmax.f32 %v589, 0.0
        %v832 = vmax.f32 %v592, 0.0
        %v833 = vmax.f32 %v597, 0.0
        %v834 = vmax.f32 %v600, 0.0
        %v835 = vmax.f32 %v605, 0.0
        %v836 = vmax.f32 %v608, 0.0
        %v837 = vmax.f32 %v613, 0.0
        %v838 = vmax.f32 %v616, 0.0
        %v839 = vmax.f32 %v621, 0.0
        %v840 = vmax.f32 %v624, 0.0
        %v841 = vmax.f32 %v629, 0.0
        %v842 = vmax.f32 %v632, 0.0
        %v843 = vmax.f32 %v637, 0.0
        %v844 = vmax.f32 %v640, 0.0
        %v845 = vmax.f32 %v645, 0.0
        %v846 = vmax.f32 %v648, 0.0
        %v847 = vmax.f32 %v653, 0.0
        %v848 = vmax.f32 %v656, 0.0
        %v849 = vmax.f32 %v661, 0.0
        %v850 = vmax.f32 %v664, 0.0
        %v851 = vmax.f32 %v669, 0.0
        %v852 = vmax.f32 %v672, 0.0
        %v853 = vmax.f32 %v677, 0.0
        %v854 = vmax.f32 %v680, 0.0
        %v855 = vmax.f32 %v685, 0.0
        %v856 = vmax.f32 %v688, 0.0
        %v857 = vmax.f32 %v693, 0.0
        %v858 = vmax.f32 %v696, 0.0
        %v859 = vmax.f32 %v701, 0.0
        %v860 = vmax.f32 %v704, 0.0
        %v861 = vmax.f32 %v709, 0.0
        %v862 = vmax.f32 %v712, 0.0
        %v863 = vmax.f32 %v717, 0.0
        %v864 = vmax.f32 %v720, 0.0
        %v865 = vmax.f32 %v725, 0.0
        %v866 = vmax.f32 %v728, 0.0
        %v867 = vmax.f32 %v733, 0.0
        %v868 = vmax.f32 %v736, 0.0
        %v869 = vmax.f32 %v741, 0.0
        %v870 = vmax.f32 %v744, 0.0
        %v871 = vmax.f32 %v749, 0.0
        %v872 = vmax.f32 %v752, 0.0
        %v873 = vmax.f32 %v757, 0.0
        %v874 = vmax.f32 %v760, 0.0
        %v875 = vmax.f32 %v765, 0.0
        %v876 = vmax.f32 %v768, 0.0
        %v877 = vmax.f32 %v773, 0.0
        %v878 = vmax.f32 %v776, 0.0
        %v879 = vmax.f32 %v781, 0.0
        %v880 = vmax.f32 %v784, 0.0
        %v881 = vmax.f32 %v789, 0.0
        %v882 = vmax.f32 %v792, 0.0
        %v883 = vmax.f32 %v797, 0.0
        %v884 = vmax.f32 %v800, 0.0
        %v885 = vmax.f32 %v805, 0.0
        %v886 = vmax.f32 %v808, 0.0
        %v887 = vmax.f32 %v813, 0.0
        %v888 = vmax.f32 %v816, 0.0
        %v889 = vmax.f32 %v821, 0.0
        %v890 = vmax.f32 %v824, 0.0
        %vm891 = vcmask 523264
        %892 = vst.msk [vmem:[%s185] sm:$0xff] %vm891, %v827
        %893 = vst.msk [vmem:[%s185 + $0x8] sm:$0xff] %vm891, %v828
        %894 = vst.msk [vmem:[%s185 + $0x10] sm:$0xff] %vm891, %v829
        %895 = vst.msk [vmem:[%s185 + $0x18] sm:$0xff] %vm891, %v830
        %896 = vst.msk [vmem:[%s185 + $0x20] sm:$0xff] %vm891, %v831
        %897 = vst.msk [vmem:[%s185 + $0x28] sm:$0xff] %vm891, %v832
        %898 = vst.msk [vmem:[%s185 + $0x30] sm:$0xff] %vm891, %v833
        %899 = vst.msk [vmem:[%s185 + $0x38] sm:$0xff] %vm891, %v834
        %900 = vst.msk [vmem:[%s185 + $0x40] sm:$0xff] %vm891, %v835
        %901 = vst.msk [vmem:[%s185 + $0x48] sm:$0xff] %vm891, %v836
        %902 = vst.msk [vmem:[%s185 + $0x50] sm:$0xff] %vm891, %v837
        %903 = vst.msk [vmem:[%s185 + $0x58] sm:$0xff] %vm891, %v838
        %904 = vst.msk [vmem:[%s185 + $0x60] sm:$0xff] %vm891, %v839
        %905 = vst.msk [vmem:[%s185 + $0x68] sm:$0xff] %vm891, %v840
        %906 = vst.msk [vmem:[%s185 + $0x70] sm:$0xff] %vm891, %v841
        %907 = vst.msk [vmem:[%s185 + $0x78] sm:$0xff] %vm891, %v842
        %908 = vst.msk [vmem:[%s185 + $0x80] sm:$0xff] %vm891, %v843
        %909 = vst.msk [vmem:[%s185 + $0x88] sm:$0xff] %vm891, %v844
        %910 = vst.msk [vmem:[%s185 + $0x90] sm:$0xff] %vm891, %v845
        %911 = vst.msk [vmem:[%s185 + $0x98] sm:$0xff] %vm891, %v846
        %912 = vst.msk [vmem:[%s185 + $0xa0] sm:$0xff] %vm891, %v847
        %913 = vst.msk [vmem:[%s185 + $0xa8] sm:$0xff] %vm891, %v848
        %914 = vst.msk [vmem:[%s185 + $0xb0] sm:$0xff] %vm891, %v849
        %915 = vst.msk [vmem:[%s185 + $0xb8] sm:$0xff] %vm891, %v850
        %916 = vst.msk [vmem:[%s185 + $0xc0] sm:$0xff] %vm891, %v851
        %917 = vst.msk [vmem:[%s185 + $0xc8] sm:$0xff] %vm891, %v852
        %918 = vst.msk [vmem:[%s185 + $0xd0] sm:$0xff] %vm891, %v853
        %919 = vst.msk [vmem:[%s185 + $0xd8] sm:$0xff] %vm891, %v854
        %920 = vst.msk [vmem:[%s185 + $0xe0] sm:$0xff] %vm891, %v855
        %921 = vst.msk [vmem:[%s185 + $0xe8] sm:$0xff] %vm891, %v856
        %922 = vst.msk [vmem:[%s185 + $0xf0] sm:$0xff] %vm891, %v857
        %923 = vst.msk [vmem:[%s185 + $0xf8] sm:$0xff] %vm891, %v858
        %924 = vst.msk [vmem:[%s185 + $0x100] sm:$0xff] %vm891, %v859
        %925 = vst.msk [vmem:[%s185 + $0x108] sm:$0xff] %vm891, %v860
        %926 = vst.msk [vmem:[%s185 + $0x110] sm:$0xff] %vm891, %v861
        %927 = vst.msk [vmem:[%s185 + $0x118] sm:$0xff] %vm891, %v862
        %928 = vst.msk [vmem:[%s185 + $0x120] sm:$0xff] %vm891, %v863
        %929 = vst.msk [vmem:[%s185 + $0x128] sm:$0xff] %vm891, %v864
        %930 = vst.msk [vmem:[%s185 + $0x130] sm:$0xff] %vm891, %v865
        %931 = vst.msk [vmem:[%s185 + $0x138] sm:$0xff] %vm891, %v866
        %932 = vst.msk [vmem:[%s185 + $0x140] sm:$0xff] %vm891, %v867
        %933 = vst.msk [vmem:[%s185 + $0x148] sm:$0xff] %vm891, %v868
        %934 = vst.msk [vmem:[%s185 + $0x150] sm:$0xff] %vm891, %v869
        %935 = vst.msk [vmem:[%s185 + $0x158] sm:$0xff] %vm891, %v870
        %936 = vst.msk [vmem:[%s185 + $0x160] sm:$0xff] %vm891, %v871
        %937 = vst.msk [vmem:[%s185 + $0x168] sm:$0xff] %vm891, %v872
        %938 = vst.msk [vmem:[%s185 + $0x170] sm:$0xff] %vm891, %v873
        %939 = vst.msk [vmem:[%s185 + $0x178] sm:$0xff] %vm891, %v874
        %940 = vst.msk [vmem:[%s185 + $0x180] sm:$0xff] %vm891, %v875
        %941 = vst.msk [vmem:[%s185 + $0x188] sm:$0xff] %vm891, %v876
        %942 = vst.msk [vmem:[%s185 + $0x190] sm:$0xff] %vm891, %v877
        %943 = vst.msk [vmem:[%s185 + $0x198] sm:$0xff] %vm891, %v878
        %944 = vst.msk [vmem:[%s185 + $0x1a0] sm:$0xff] %vm891, %v879
        %945 = vst.msk [vmem:[%s185 + $0x1a8] sm:$0xff] %vm891, %v880
        %946 = vst.msk [vmem:[%s185 + $0x1b0] sm:$0xff] %vm891, %v881
        %947 = vst.msk [vmem:[%s185 + $0x1b8] sm:$0xff] %vm891, %v882
        %948 = vst.msk [vmem:[%s185 + $0x1c0] sm:$0xff] %vm891, %v883
        %949 = vst.msk [vmem:[%s185 + $0x1c8] sm:$0xff] %vm891, %v884
        %950 = vst.msk [vmem:[%s185 + $0x1d0] sm:$0xff] %vm891, %v885
        %951 = vst.msk [vmem:[%s185 + $0x1d8] sm:$0xff] %vm891, %v886
        %952 = vst.msk [vmem:[%s185 + $0x1e0] sm:$0xff] %vm891, %v887
        %953 = vst.msk [vmem:[%s185 + $0x1e8] sm:$0xff] %vm891, %v888
        %954 = vst.msk [vmem:[%s185 + $0x1f0] sm:$0xff] %vm891, %v889
        %955 = vst.msk [vmem:[%s185 + $0x1f8] sm:$0xff] %vm891, %v890
        %s956 = smul.u32 64, %s15
        %p957 = scmp.lt.s32.totalorder %s956, 255
        %s958 = scalar_select %p957, %s956, 255
        %s959 = smul.addr %s958, 8
        %s960 = scalar_lea.vmem %s3, %s959
        // Predicated region
        $region37: #{vgg16_forward.2} parent=31 // pred_check
          %p961 = pneg %p101
        $region38: #{vgg16_forward.2} parent=31 // pred_check_branch
          %963 = sbr.rel (%p961) target = $region40
        $region39: #{vgg16_forward.2} parent=31 // pred_region
          %s964 = smul.u32 64, %s15
        $region40: #{vgg16_forward.2} parent=31 // pred_fallthru
          _
      $region32: #{vgg16_forward.2} parent=5 // pred_fallthru
        _
      %p965 = scmp.le.s32.totalorder 2, %s10
      // Predicated region
      $region41: #{vgg16_forward.2} parent=5 // pred_check
        %p966 = pneg %p965
      $region42: #{vgg16_forward.2} parent=5 // pred_check_branch
        %968 = sbr.rel (%p966) target = $region44
      $region43: #{vgg16_forward.2} parent=5 // pred_region
        %s969 = ssub.s32 %s10, 2
        // Predicated region
        $region45: #{vgg16_forward.2} parent=43 // pred_check
          %p970 = pneg %p107
        $region46: #{vgg16_forward.2} parent=43 // pred_check_branch
          %972 = sbr.rel (%p970) target = $region48
        $region47: #{vgg16_forward.2} parent=43 // pred_region
          %s973 = smul.u32 64, %s16
          %p974 = scmp.lt.s32.totalorder %s973, 255
          %s975 = scalar_select %p974, %s973, 255
          %s976 = smul.addr %s975, 8
          %s977 = scalar_lea.vmem %s3, %s976
        $region48: #{vgg16_forward.2} parent=43 // pred_fallthru
          _
      $region44: #{vgg16_forward.2} parent=5 // pred_fallthru
        _
    $region6: #{vgg16_forward.2} parent=1 // loop_footer
      %s14 = sadd.s32 1, %s10
    $region7: #{vgg16_forward.2} parent=1 // loop_footer_branch
      %9 = sbr.rel target = $region3
    $region8: #{vgg16_forward.2} parent=1 // loop_exit
      _
    %978 = vsyncpa [#allocation3], 1
    %s979 = scalar_lea.sflag [#allocation3], 1
    %980 = vsyncpa %s979, 1

// kernel: vgg16_forward.3
$region0: #{vgg16_forward.3}
  #allocation0 [shape = 'u32[]', space=smem, size = 0x4, offset = 0x4, fixed_abs, tag = 'smem constant byte address 0x4 - core index']
  #allocation1 [shape = 'u32[144,128]{1,0:T(1,128)}', space=vmem, size = 0x12000, scoped, tag = 'internal scratch']
  %s0 = inlined_call_operand.vmem [shape: bf16[2048,576], index: 0, kind: input, shape index: {}]
  %s1 = inlined_call_operand.vmem [shape: bf16[576,64], index: 1, kind: input, shape index: {}]
  %s2 = inlined_call_operand.vmem [shape: f32[1,64], index: 2, kind: input, shape index: {}]
  %s3 = inlined_call_operand.hbm [shape: f32[2048,64], index: 3, kind: output, shape index: {}]
  %s4 = sld [smem:[#allocation0]]
  $region45: #{vgg16_forward.3} parent=0
    _
  %s6 = ssub.s32 1, %s4
  %s7 = scalar_select 0, %s6, %s4
  $region1: #{vgg16_forward.3} parent=0
    #allocation2 [shape = 'u8[524288]{0}', space=vmem, size = 0x80000, scoped, tag = 'output window, operand 0']
    #allocation3 [shape = 's32[2]{0}', space=sflag, size = 0x8, scoped, tag = 'scoped memory for vgg16_forward.3']
    %8 = vsyncpa [#allocation3], 0
    %s9 = scalar_lea.sflag [#allocation3], 1
    %10 = vsyncpa %s9, 0
    loop: start=0, step=1, limit=6
    $region2: #{vgg16_forward.3} parent=1 // loop_pre_header
      _
    $region3: #{vgg16_forward.3} parent=1 // loop_header
      %s12 = sphi 0, %s16
      %p13 = scmp.ge.s32.totalorder %s12, 6
      %s22 = sphi 0, %s24
      %s25 = sphi 0, %s22
      %s26 = sphi 0, %s25
      %s42 = sphi 0, %s26
      %s46 = sphi 0, %s46
      %s48 = sphi 0, %s46
      %s49 = sphi 0, %s48
      %s63 = sphi 0, %s49
      %s67 = sphi 0, %s67
      %s69 = sphi 0, %s67
      %s70 = sphi 0, %s69
      %s84 = sphi 0, %s70
      %s90 = sphi 0, %s92
      %s93 = sphi 0, %s90
      %s94 = sphi 0, %s93
      %s110 = sphi 0, %s94
    $region4: #{vgg16_forward.3} parent=1 // loop_header_branch
      %15 = sbr.rel (%p13) target = $region8
    $region5: #{vgg16_forward.3} parent=1 // loop_body
      %s17 = ssub.s32 %s12, 1
      %s18 = ssub.s32 %s12, 2
      %s19 = sadd.s32 %s12, 1
      %s20 = ssub.s32 %s12, %s19
      %p21 = scmp.eq.s32.totalorder %s20, 0
      %s23 = sadd.s32 %s22, 1
      %s24 = scalar_select %p21, %s22, %s23
      %p27 = pneg %p21
      %p28 = scmp.eq.s32.totalorder %s12, 3
      %p29 = por %p27, %p28
      %p30 = scmp.ne.s32.totalorder %s22, %s25
      %p31 = scmp.eq.s32.totalorder %s12, 0
      %p32 = por %p30, %p31
      %p33 = scmp.ne.s32.totalorder %s22, %s25
      %p34 = scmp.eq.s32.totalorder %s17, 3
      %p35 = por %p33, %p34
      %p36 = scmp.ne.s32.totalorder %s25, %s26
      %p37 = scmp.eq.s32.totalorder %s17, 0
      %p38 = por %p36, %p37
      %p39 = scmp.ne.s32.totalorder %s25, %s26
      %p40 = scmp.eq.s32.totalorder %s18, 3
      %p41 = por %p39, %p40
      %p43 = scmp.ne.s32.totalorder %s26, %s42
      %p44 = scmp.eq.s32.totalorder %s18, 0
      %p45 = por %p43, %p44
      %s47 = sadd.s32 %s46, 1
      %p50 = scmp.eq.s32.totalorder %s12, 3
      %p51 = scmp.ne.s32.totalorder %s46, %s48
      %p52 = scmp.eq.s32.totalorder %s12, 0
      %p53 = por %p51, %p52
      %p54 = scmp.ne.s32.totalorder %s46, %s48
      %p55 = scmp.eq.s32.totalorder %s17, 3
      %p56 = por %p54, %p55
      %p57 = scmp.ne.s32.totalorder %s48, %s49
      %p58 = scmp.eq.s32.totalorder %s17, 0
      %p59 = por %p57, %p58
      %p60 = scmp.ne.s32.totalorder %s48, %s49
      %p61 = scmp.eq.s32.totalorder %s18, 3
      %p62 = por %p60, %p61
      %p64 = scmp.ne.s32.totalorder %s49, %s63
      %p65 = scmp.eq.s32.totalorder %s18, 0
      %p66 = por %p64, %p65
      %s68 = sadd.s32 %s67, 1
      %p71 = scmp.eq.s32.totalorder %s12, 3
      %p72 = scmp.ne.s32.totalorder %s67, %s69
      %p73 = scmp.eq.s32.totalorder %s12, 0
      %p74 = por %p72, %p73
      %p75 = scmp.ne.s32.totalorder %s67, %s69
      %p76 = scmp.eq.s32.totalorder %s17, 3
      %p77 = por %p75, %p76
      %p78 = scmp.ne.s32.totalorder %s69, %s70
      %p79 = scmp.eq.s32.totalorder %s17, 0
      %p80 = por %p78, %p79
      %p81 = scmp.ne.s32.totalorder %s69, %s70
      %p82 = scmp.eq.s32.totalorder %s18, 3
      %p83 = por %p81, %p82
      %p85 = scmp.ne.s32.totalorder %s70, %s84
      %p86 = scmp.eq.s32.totalorder %s18, 0
      %p87 = por %p85, %p86
      %s88 = ssub.s32 %s12, %s19
      %p89 = scmp.eq.s32.totalorder %s88, 0
      %s91 = sadd.s32 %s90, 1
      %s92 = scalar_select %p89, %s90, %s91
      %p95 = pneg %p89
      %p96 = scmp.eq.s32.totalorder %s12, 3
      %p97 = por %p95, %p96
      %p98 = scmp.ne.s32.totalorder %s90, %s93
      %p99 = scmp.eq.s32.totalorder %s12, 0
      %p100 = por %p98, %p99
      %p101 = scmp.ne.s32.totalorder %s90, %s93
      %p102 = scmp.eq.s32.totalorder %s17, 3
      %p103 = por %p101, %p102
      %p104 = scmp.ne.s32.totalorder %s93, %s94
      %p105 = scmp.eq.s32.totalorder %s17, 0
      %p106 = por %p104, %p105
      %p107 = scmp.ne.s32.totalorder %s93, %s94
      %p108 = scmp.eq.s32.totalorder %s18, 3
      %p109 = por %p107, %p108
      %p111 = scmp.ne.s32.totalorder %s94, %s110
      %p112 = scmp.eq.s32.totalorder %s18, 0
      %p113 = por %p111, %p112
      %p114 = scmp.le.s32.totalorder 1, %s12
      %p115 = scmp.lt.s32.totalorder %s12, 5
      %p116 = pnand %p114, %p115
      %p117 = pneg %p116
      // Predicated region
      $region9: #{vgg16_forward.3} parent=5 // pred_check
        _
      $region10: #{vgg16_forward.3} parent=5 // pred_check_branch
        %119 = sbr.rel (%p116) target = $region12
      $region11: #{vgg16_forward.3} parent=5 // pred_region
        %s120 = ssub.s32 %s12, 1
        // Predicated region
        $region13: #{vgg16_forward.3} parent=11 // pred_check
          %p121 = pneg %p59
        $region14: #{vgg16_forward.3} parent=11 // pred_check_branch
          %123 = sbr.rel (%p121) target = $region16
        $region15: #{vgg16_forward.3} parent=11 // pred_region
          _
        $region16: #{vgg16_forward.3} parent=11 // pred_fallthru
          _
        // Predicated region
        $region17: #{vgg16_forward.3} parent=11 // pred_check
          %p124 = pneg %p80
        $region18: #{vgg16_forward.3} parent=11 // pred_check_branch
          %126 = sbr.rel (%p124) target = $region20
        $region19: #{vgg16_forward.3} parent=11 // pred_region
          _
        $region20: #{vgg16_forward.3} parent=11 // pred_fallthru
          _
      $region12: #{vgg16_forward.3} parent=5 // pred_fallthru
        _
      %p127 = scmp.lt.s32.totalorder %s12, 4
      // Predicated region
      $region21: #{vgg16_forward.3} parent=5 // pred_check
        %p128 = pneg %p127
      $region22: #{vgg16_forward.3} parent=5 // pred_check_branch
        %130 = sbr.rel (%p128) target = $region24
      $region23: #{vgg16_forward.3} parent=5 // pred_region
        // Predicated region
        $region25: #{vgg16_forward.3} parent=23 // pred_check
          %p131 = pneg %p32
        $region26: #{vgg16_forward.3} parent=23 // pred_check_branch
          %133 = sbr.rel (%p131) target = $region28
        $region27: #{vgg16_forward.3} parent=23 // pred_region
          %s134 = smul.u32 64, %s12
          %p135 = scmp.lt.s32.totalorder %s134, 255
          %s136 = scalar_select %p135, %s134, 255
          %s137 = smul.addr %s136, 5
          %s138 = smul.addr %s137, 4
          %s139 = scalar_lea.vmem %s0, %s138
          %s140 = smul.u32 64, %s12
        $region28: #{vgg16_forward.3} parent=23 // pred_fallthru
          _
      $region24: #{vgg16_forward.3} parent=5 // pred_fallthru
        _
      %p141 = scmp.le.s32.totalorder 1, %s12
      %p142 = scmp.lt.s32.totalorder %s12, 5
      %p143 = pnand %p141, %p142
      %p144 = pneg %p143
      // Predicated region
      $region29: #{vgg16_forward.3} parent=5 // pred_check
        _
      $region30: #{vgg16_forward.3} parent=5 // pred_check_branch
        %146 = sbr.rel (%p143) target = $region32
      $region31: #{vgg16_forward.3} parent=5 // pred_region
        %s147 = ssub.s32 %s12, 1
        %s148 = smul.u32 64, %s17
        %p149 = scmp.lt.s32.totalorder %s148, 255
        %s150 = scalar_select %p149, %s148, 255
        %s151 = smul.addr %s150, 5
        %s152 = smul.addr %s151, 4
        %s153 = scalar_lea.vmem %s0, %s152
        %p154 = pneg %p38
        %p155 = pneg %p35
        %p156 = pneg %p59
        %p157 = pneg %p56
        %p158 = pneg %p80
        %p159 = pneg %p77
        %p160 = pneg %p106
        %p161 = pneg %p103
        %s162 = sand.u32 %s93, 1
        %s163 = scalar_lea.sflag [#allocation3], %s162
        %s164 = sand.u32 %s93, 1
        %s165 = smul.addr %s164, 512
        %s166 = scalar_lea.vmem [#allocation2], %s165
        %s167 = smul.u32 64, %s17
        %p168 = scmp.lt.s32.totalorder %s167, 255
        %s169 = scalar_select %p168, %s167, 255
        %s170 = smul.addr %s169, 5
        %s171 = smul.addr %s170, 4
        %s172 = scalar_lea.vmem %s0, %s171
        %s173 = smul.u32 64, %s17
        %s174 = smul.u32 64, %s17
        %v176 = vld [vmem:[%s172] sm:$0xff]
        %v177 = vld [vmem:[%s172 + $0x8] sm:$0xff]
        %v178 = vld [vmem:[%s172 + $0x10] sm:$0xf]
        %v179 = vld [vmem:[%s172 + $0x14] sm:$0xff]
        %v180 = vld [vmem:[%s172 + $0x1c] sm:$0xff]
        %v181 = vld [vmem:[%s172 + $0x24] sm:$0xf]
        %v182 = vld [vmem:[%s172 + $0x28] sm:$0xff]
        %v183 = vld [vmem:[%s172 + $0x30] sm:$0xff]
        %v184 = vld [vmem:[%s172 + $0x38] sm:$0xf]
        %v185 = vld [vmem:[%s172 + $0x3c] sm:$0xff]
        %v186 = vld [vmem:[%s172 + $0x44] sm:$0xff]
        %v187 = vld [vmem:[%s172 + $0x4c] sm:$0xf]
        %v188 = vld [vmem:[%s172 + $0x50] sm:$0xff]
        %v189 = vld [vmem:[%s172 + $0x58] sm:$0xff]
        %v190 = vld [vmem:[%s172 + $0x60] sm:$0xf]
        %v191 = vld [vmem:[%s172 + $0x64] sm:$0xff]
        %v192 = vld [vmem:[%s172 + $0x6c] sm:$0xff]
        %v193 = vld [vmem:[%s172 + $0x74] sm:$0xf]
        %v194 = vld [vmem:[%s172 + $0x78] sm:$0xff]
        %v195 = vld [vmem:[%s172 + $0x80] sm:$0xff]
        %v196 = vld [vmem:[%s172 + $0x88] sm:$0xf]
        %v197 = vld [vmem:[%s172 + $0x8c] sm:$0xff]
        %v198 = vld [vmem:[%s172 + $0x94] sm:$0xff]
        %v199 = vld [vmem:[%s172 + $0x9c] sm:$0xf]
        %v200 = vld [vmem:[%s172 + $0xa0] sm:$0xff]
        %v201 = vld [vmem:[%s172 + $0xa8] sm:$0xff]
        %v202 = vld [vmem:[%s172 + $0xb0] sm:$0xf]
        %v203 = vld [vmem:[%s172 + $0xb4] sm:$0xff]
        %v204 = vld [vmem:[%s172 + $0xbc] sm:$0xff]
        %v205 = vld [vmem:[%s172 + $0xc4] sm:$0xf]
        %v206 = vld [vmem:[%s172 + $0xc8] sm:$0xff]
        %v207 = vld [vmem:[%s172 + $0xd0] sm:$0xff]
        %v208 = vld [vmem:[%s172 + $0xd8] sm:$0xf]
        %v209 = vld [vmem:[%s172 + $0xdc] sm:$0xff]
        %v210 = vld [vmem:[%s172 + $0xe4] sm:$0xff]
        %v211 = vld [vmem:[%s172 + $0xec] sm:$0xf]
        %v212 = vld [vmem:[%s172 + $0xf0] sm:$0xff]
        %v213 = vld [vmem:[%s172 + $0xf8] sm:$0xff]
        %v214 = vld [vmem:[%s172 + $0x100] sm:$0xf]
        %v215 = vld [vmem:[%s172 + $0x104] sm:$0xff]
        %v216 = vld [vmem:[%s172 + $0x10c] sm:$0xff]
        %v217 = vld [vmem:[%s172 + $0x114] sm:$0xf]
        %v218 = vld [vmem:[%s172 + $0x118] sm:$0xff]
        %v219 = vld [vmem:[%s172 + $0x120] sm:$0xff]
        %v220 = vld [vmem:[%s172 + $0x128] sm:$0xf]
        %v221 = vld [vmem:[%s172 + $0x12c] sm:$0xff]
        %v222 = vld [vmem:[%s172 + $0x134] sm:$0xff]
        %v223 = vld [vmem:[%s172 + $0x13c] sm:$0xf]
        %v224 = vld [vmem:[%s172 + $0x140] sm:$0xff]
        %v225 = vld [vmem:[%s172 + $0x148] sm:$0xff]
        %v226 = vld [vmem:[%s172 + $0x150] sm:$0xf]
        %v227 = vld [vmem:[%s172 + $0x154] sm:$0xff]
        %v228 = vld [vmem:[%s172 + $0x15c] sm:$0xff]
        %v229 = vld [vmem:[%s172 + $0x164] sm:$0xf]
        %v230 = vld [vmem:[%s172 + $0x168] sm:$0xff]
        %v231 = vld [vmem:[%s172 + $0x170] sm:$0xff]
        %v232 = vld [vmem:[%s172 + $0x178] sm:$0xf]
        %v233 = vld [vmem:[%s172 + $0x17c] sm:$0xff]
        %v234 = vld [vmem:[%s172 + $0x184] sm:$0xff]
        %v235 = vld [vmem:[%s172 + $0x18c] sm:$0xf]
        %v236 = vld [vmem:[%s172 + $0x190] sm:$0xff]
        %v237 = vld [vmem:[%s172 + $0x198] sm:$0xff]
        %v238 = vld [vmem:[%s172 + $0x1a0] sm:$0xf]
        %v239 = vld [vmem:[%s172 + $0x1a4] sm:$0xff]
        %v240 = vld [vmem:[%s172 + $0x1ac] sm:$0xff]
        %v241 = vld [vmem:[%s172 + $0x1b4] sm:$0xf]
        %v242 = vld [vmem:[%s172 + $0x1b8] sm:$0xff]
        %v243 = vld [vmem:[%s172 + $0x1c0] sm:$0xff]
        %v244 = vld [vmem:[%s172 + $0x1c8] sm:$0xf]
        %v245 = vld [vmem:[%s172 + $0x1cc] sm:$0xff]
        %v246 = vld [vmem:[%s172 + $0x1d4] sm:$0xff]
        %v247 = vld [vmem:[%s172 + $0x1dc] sm:$0xf]
        %v248 = vld [vmem:[%s172 + $0x1e0] sm:$0xff]
        %v249 = vld [vmem:[%s172 + $0x1e8] sm:$0xff]
        %v250 = vld [vmem:[%s172 + $0x1f0] sm:$0xf]
        %v251 = vld [vmem:[%s172 + $0x1f4] sm:$0xff]
        %v252 = vld [vmem:[%s172 + $0x1fc] sm:$0xff]
        %v253 = vld [vmem:[%s172 + $0x204] sm:$0xf]
        %v254 = vld [vmem:[%s172 + $0x208] sm:$0xff]
        %v255 = vld [vmem:[%s172 + $0x210] sm:$0xff]
        %v256 = vld [vmem:[%s172 + $0x218] sm:$0xf]
        %v257 = vld [vmem:[%s172 + $0x21c] sm:$0xff]
        %v258 = vld [vmem:[%s172 + $0x224] sm:$0xff]
        %v259 = vld [vmem:[%s172 + $0x22c] sm:$0xf]
        %v260 = vld [vmem:[%s172 + $0x230] sm:$0xff]
        %v261 = vld [vmem:[%s172 + $0x238] sm:$0xff]
        %v262 = vld [vmem:[%s172 + $0x240] sm:$0xf]
        %v263 = vld [vmem:[%s172 + $0x244] sm:$0xff]
        %v264 = vld [vmem:[%s172 + $0x24c] sm:$0xff]
        %v265 = vld [vmem:[%s172 + $0x254] sm:$0xf]
        %v266 = vld [vmem:[%s172 + $0x258] sm:$0xff]
        %v267 = vld [vmem:[%s172 + $0x260] sm:$0xff]
        %v268 = vld [vmem:[%s172 + $0x268] sm:$0xf]
        %v269 = vld [vmem:[%s172 + $0x26c] sm:$0xff]
        %v270 = vld [vmem:[%s172 + $0x274] sm:$0xff]
        %v271 = vld [vmem:[%s172 + $0x27c] sm:$0xf]
        %v272 = vld [vmem:[%s172 + $0x280] sm:$0xff]
        %v273 = vld [vmem:[%s172 + $0x288] sm:$0xff]
        %v274 = vld [vmem:[%s172 + $0x290] sm:$0xf]
        %v275 = vld [vmem:[%s172 + $0x294] sm:$0xff]
        %v276 = vld [vmem:[%s172 + $0x29c] sm:$0xff]
        %v277 = vld [vmem:[%s172 + $0x2a4] sm:$0xf]
        %v278 = vld [vmem:[%s172 + $0x2a8] sm:$0xff]
        %v279 = vld [vmem:[%s172 + $0x2b0] sm:$0xff]
        %v280 = vld [vmem:[%s172 + $0x2b8] sm:$0xf]
        %v281 = vld [vmem:[%s172 + $0x2bc] sm:$0xff]
        %v282 = vld [vmem:[%s172 + $0x2c4] sm:$0xff]
        %v283 = vld [vmem:[%s172 + $0x2cc] sm:$0xf]
        %v284 = vld [vmem:[%s172 + $0x2d0] sm:$0xff]
        %v285 = vld [vmem:[%s172 + $0x2d8] sm:$0xff]
        %v286 = vld [vmem:[%s172 + $0x2e0] sm:$0xf]
        %v287 = vld [vmem:[%s172 + $0x2e4] sm:$0xff]
        %v288 = vld [vmem:[%s172 + $0x2ec] sm:$0xff]
        %v289 = vld [vmem:[%s172 + $0x2f4] sm:$0xf]
        %v290 = vld [vmem:[%s172 + $0x2f8] sm:$0xff]
        %v291 = vld [vmem:[%s172 + $0x300] sm:$0xff]
        %v292 = vld [vmem:[%s172 + $0x308] sm:$0xf]
        %v293 = vld [vmem:[%s172 + $0x30c] sm:$0xff]
        %v294 = vld [vmem:[%s172 + $0x314] sm:$0xff]
        %v295 = vld [vmem:[%s172 + $0x31c] sm:$0xf]
        %v296 = vld [vmem:[%s172 + $0x320] sm:$0xff]
        %v297 = vld [vmem:[%s172 + $0x328] sm:$0xff]
        %v298 = vld [vmem:[%s172 + $0x330] sm:$0xf]
        %v299 = vld [vmem:[%s172 + $0x334] sm:$0xff]
        %v300 = vld [vmem:[%s172 + $0x33c] sm:$0xff]
        %v301 = vld [vmem:[%s172 + $0x344] sm:$0xf]
        %v302 = vld [vmem:[%s172 + $0x348] sm:$0xff]
        %v303 = vld [vmem:[%s172 + $0x350] sm:$0xff]
        %v304 = vld [vmem:[%s172 + $0x358] sm:$0xf]
        %v305 = vld [vmem:[%s172 + $0x35c] sm:$0xff]
        %v306 = vld [vmem:[%s172 + $0x364] sm:$0xff]
        %v307 = vld [vmem:[%s172 + $0x36c] sm:$0xf]
        %v308 = vld [vmem:[%s172 + $0x370] sm:$0xff]
        %v309 = vld [vmem:[%s172 + $0x378] sm:$0xff]
        %v310 = vld [vmem:[%s172 + $0x380] sm:$0xf]
        %v311 = vld [vmem:[%s172 + $0x384] sm:$0xff]
        %v312 = vld [vmem:[%s172 + $0x38c] sm:$0xff]
        %v313 = vld [vmem:[%s172 + $0x394] sm:$0xf]
        %v314 = vld [vmem:[%s172 + $0x398] sm:$0xff]
        %v315 = vld [vmem:[%s172 + $0x3a0] sm:$0xff]
        %v316 = vld [vmem:[%s172 + $0x3a8] sm:$0xf]
        %v317 = vld [vmem:[%s172 + $0x3ac] sm:$0xff]
        %v318 = vld [vmem:[%s172 + $0x3b4] sm:$0xff]
        %v319 = vld [vmem:[%s172 + $0x3bc] sm:$0xf]
        %v320 = vld [vmem:[%s172 + $0x3c0] sm:$0xff]
        %v321 = vld [vmem:[%s172 + $0x3c8] sm:$0xff]
        %v322 = vld [vmem:[%s172 + $0x3d0] sm:$0xf]
        %v323 = vld [vmem:[%s172 + $0x3d4] sm:$0xff]
        %v324 = vld [vmem:[%s172 + $0x3dc] sm:$0xff]
        %v325 = vld [vmem:[%s172 + $0x3e4] sm:$0xf]
        %v326 = vld [vmem:[%s172 + $0x3e8] sm:$0xff]
        %v327 = vld [vmem:[%s172 + $0x3f0] sm:$0xff]
        %v328 = vld [vmem:[%s172 + $0x3f8] sm:$0xf]
        %v329 = vld [vmem:[%s172 + $0x3fc] sm:$0xff]
        %v330 = vld [vmem:[%s172 + $0x404] sm:$0xff]
        %v331 = vld [vmem:[%s172 + $0x40c] sm:$0xf]
        %v332 = vld [vmem:[%s172 + $0x410] sm:$0xff]
        %v333 = vld [vmem:[%s172 + $0x418] sm:$0xff]
        %v334 = vld [vmem:[%s172 + $0x420] sm:$0xf]
        %v335 = vld [vmem:[%s172 + $0x424] sm:$0xff]
        %v336 = vld [vmem:[%s172 + $0x42c] sm:$0xff]
        %v337 = vld [vmem:[%s172 + $0x434] sm:$0xf]
        %v338 = vld [vmem:[%s172 + $0x438] sm:$0xff]
        %v339 = vld [vmem:[%s172 + $0x440] sm:$0xff]
        %v340 = vld [vmem:[%s172 + $0x448] sm:$0xf]
        %v341 = vld [vmem:[%s172 + $0x44c] sm:$0xff]
        %v342 = vld [vmem:[%s172 + $0x454] sm:$0xff]
        %v343 = vld [vmem:[%s172 + $0x45c] sm:$0xf]
        %v344 = vld [vmem:[%s172 + $0x460] sm:$0xff]
        %v345 = vld [vmem:[%s172 + $0x468] sm:$0xff]
        %v346 = vld [vmem:[%s172 + $0x470] sm:$0xf]
        %v347 = vld [vmem:[%s172 + $0x474] sm:$0xff]
        %v348 = vld [vmem:[%s172 + $0x47c] sm:$0xff]
        %v349 = vld [vmem:[%s172 + $0x484] sm:$0xf]
        %v350 = vld [vmem:[%s172 + $0x488] sm:$0xff]
        %v351 = vld [vmem:[%s172 + $0x490] sm:$0xff]
        %v352 = vld [vmem:[%s172 + $0x498] sm:$0xf]
        %v353 = vld [vmem:[%s172 + $0x49c] sm:$0xff]
        %v354 = vld [vmem:[%s172 + $0x4a4] sm:$0xff]
        %v355 = vld [vmem:[%s172 + $0x4ac] sm:$0xf]
        %v356 = vld [vmem:[%s172 + $0x4b0] sm:$0xff]
        %v357 = vld [vmem:[%s172 + $0x4b8] sm:$0xff]
        %v358 = vld [vmem:[%s172 + $0x4c0] sm:$0xf]
        %v359 = vld [vmem:[%s172 + $0x4c4] sm:$0xff]
        %v360 = vld [vmem:[%s172 + $0x4cc] sm:$0xff]
        %v361 = vld [vmem:[%s172 + $0x4d4] sm:$0xf]
        %v362 = vld [vmem:[%s172 + $0x4d8] sm:$0xff]
        %v363 = vld [vmem:[%s172 + $0x4e0] sm:$0xff]
        %v364 = vld [vmem:[%s172 + $0x4e8] sm:$0xf]
        %v365 = vld [vmem:[%s172 + $0x4ec] sm:$0xff]
        %v366 = vld [vmem:[%s172 + $0x4f4] sm:$0xff]
        %v367 = vld [vmem:[%s172 + $0x4fc] sm:$0xf]
        %v368 = vld [vmem:[%s1] sm:$0xf]
        %v369 = vld [vmem:[%s1 + $0x4] sm:$0xf]
        %v370 = vld [vmem:[%s1 + $0x8] sm:$0xf]
        %v371 = vld [vmem:[%s1 + $0xc] sm:$0xf]
        %v372 = vld [vmem:[%s1 + $0x10] sm:$0xf]
        %v373 = vld [vmem:[%s1 + $0x14] sm:$0xf]
        %v374 = vld [vmem:[%s1 + $0x18] sm:$0xf]
        %v375 = vld [vmem:[%s1 + $0x1c] sm:$0xf]
        %v376 = vld [vmem:[%s1 + $0x20] sm:$0xf]
        %v377 = vld [vmem:[%s1 + $0x24] sm:$0xf]
        %v378 = vld [vmem:[%s1 + $0x28] sm:$0xf]
        %v379 = vld [vmem:[%s1 + $0x2c] sm:$0xf]
        %v380 = vld [vmem:[%s1 + $0x30] sm:$0xf]
        %v381 = vld [vmem:[%s1 + $0x34] sm:$0xf]
        %v382 = vld [vmem:[%s1 + $0x38] sm:$0xf]
        %v383 = vld [vmem:[%s1 + $0x3c] sm:$0xf]
        %v384 = vld [vmem:[%s1 + $0x40] sm:$0xf]
        %v385 = vld [vmem:[%s1 + $0x44] sm:$0xf]
        %v386 = vld [vmem:[%s1 + $0x48] sm:$0xf]
        %v387 = vld [vmem:[%s1 + $0x4c] sm:$0xf]
        %v388 = vld [vmem:[%s1 + $0x50] sm:$0xf]
        %v389 = vld [vmem:[%s1 + $0x54] sm:$0xf]
        %v390 = vld [vmem:[%s1 + $0x58] sm:$0xf]
        %v391 = vld [vmem:[%s1 + $0x5c] sm:$0xf]
        %v392 = vld [vmem:[%s1 + $0x60] sm:$0xf]
        %v393 = vld [vmem:[%s1 + $0x64] sm:$0xf]
        %v394 = vld [vmem:[%s1 + $0x68] sm:$0xf]
        %v395 = vld [vmem:[%s1 + $0x6c] sm:$0xf]
        %v396 = vld [vmem:[%s1 + $0x70] sm:$0xf]
        %v397 = vld [vmem:[%s1 + $0x74] sm:$0xf]
        %v398 = vld [vmem:[%s1 + $0x78] sm:$0xf]
        %v399 = vld [vmem:[%s1 + $0x7c] sm:$0xf]
        %v400 = vld [vmem:[%s1 + $0x80] sm:$0xf]
        %v401 = vld [vmem:[%s1 + $0x84] sm:$0xf]
        %v402 = vld [vmem:[%s1 + $0x88] sm:$0xf]
        %v403 = vld [vmem:[%s1 + $0x8c] sm:$0xf]
        %v404 = vld [vmem:[%s1 + $0x90] sm:$0xf]
        %v405 = vld [vmem:[%s1 + $0x94] sm:$0xf]
        %v406 = vld [vmem:[%s1 + $0x98] sm:$0xf]
        %v407 = vld [vmem:[%s1 + $0x9c] sm:$0xf]
        %v408 = vld [vmem:[%s1 + $0xa0] sm:$0xf]
        %v409 = vld [vmem:[%s1 + $0xa4] sm:$0xf]
        %v410 = vld [vmem:[%s1 + $0xa8] sm:$0xf]
        %v411 = vld [vmem:[%s1 + $0xac] sm:$0xf]
        %v412 = vld [vmem:[%s1 + $0xb0] sm:$0xf]
        %v413 = vld [vmem:[%s1 + $0xb4] sm:$0xf]
        %v414 = vld [vmem:[%s1 + $0xb8] sm:$0xf]
        %v415 = vld [vmem:[%s1 + $0xbc] sm:$0xf]
        %v416 = vld [vmem:[%s1 + $0xc0] sm:$0xf]
        %v417 = vld [vmem:[%s1 + $0xc4] sm:$0xf]
        %v418 = vld [vmem:[%s1 + $0xc8] sm:$0xf]
        %v419 = vld [vmem:[%s1 + $0xcc] sm:$0xf]
        %v420 = vld [vmem:[%s1 + $0xd0] sm:$0xf]
        %v421 = vld [vmem:[%s1 + $0xd4] sm:$0xf]
        %v422 = vld [vmem:[%s1 + $0xd8] sm:$0xf]
        %v423 = vld [vmem:[%s1 + $0xdc] sm:$0xf]
        %v424 = vld [vmem:[%s1 + $0xe0] sm:$0xf]
        %v425 = vld [vmem:[%s1 + $0xe4] sm:$0xf]
        %v426 = vld [vmem:[%s1 + $0xe8] sm:$0xf]
        %v427 = vld [vmem:[%s1 + $0xec] sm:$0xf]
        %v428 = vld [vmem:[%s1 + $0xf0] sm:$0xf]
        %v429 = vld [vmem:[%s1 + $0xf4] sm:$0xf]
        %v430 = vld [vmem:[%s1 + $0xf8] sm:$0xf]
        %v431 = vld [vmem:[%s1 + $0xfc] sm:$0xf]
        %v432 = vld [vmem:[%s1 + $0x100] sm:$0xf]
        %v433 = vld [vmem:[%s1 + $0x104] sm:$0xf]
        %v434 = vld [vmem:[%s1 + $0x108] sm:$0xf]
        %v435 = vld [vmem:[%s1 + $0x10c] sm:$0xf]
        %v436 = vld [vmem:[%s1 + $0x110] sm:$0xf]
        %v437 = vld [vmem:[%s1 + $0x114] sm:$0xf]
        %v438 = vld [vmem:[%s1 + $0x118] sm:$0xf]
        %v439 = vld [vmem:[%s1 + $0x11c] sm:$0xf]
        %v440 = vld [vmem:[%s2] sm:$0x1]
        %v442 = vlaneseq
        %v443 = vshrl.u32 %v442, 7
        %v444 = vsub.s32 0, %v443
        %v445 = vrot.slane %v440, %v444
        %v639 = vunpack.c.l.b16 %v176
        %v640 = vunpack.c.h.b16 %v176
        %v641 = vunpack.c.l.b16 %v177
        %v642 = vunpack.c.h.b16 %v177
        %v643 = vunpack.c.l.b16 %v178
        %v644 = vunpack.c.l.b16 %v179
        %v645 = vunpack.c.h.b16 %v179
        %v646 = vunpack.c.l.b16 %v180
        %v647 = vunpack.c.h.b16 %v180
        %v648 = vunpack.c.l.b16 %v181
        %v649 = vunpack.c.l.b16 %v182
        %v650 = vunpack.c.h.b16 %v182
        %v651 = vunpack.c.l.b16 %v183
        %v652 = vunpack.c.h.b16 %v183
        %v653 = vunpack.c.l.b16 %v184
        %v654 = vunpack.c.l.b16 %v185
        %v655 = vunpack.c.h.b16 %v185
        %v656 = vunpack.c.l.b16 %v186
        %v657 = vunpack.c.h.b16 %v186
        %v658 = vunpack.c.l.b16 %v187
        %v659 = vunpack.c.l.b16 %v188
        %v660 = vunpack.c.h.b16 %v188
        %v661 = vunpack.c.l.b16 %v189
        %v662 = vunpack.c.h.b16 %v189
        %v663 = vunpack.c.l.b16 %v190
        %v664 = vunpack.c.l.b16 %v191
        %v665 = vunpack.c.h.b16 %v191
        %v666 = vunpack.c.l.b16 %v192
        %v667 = vunpack.c.h.b16 %v192
        %v668 = vunpack.c.l.b16 %v193
        %v669 = vunpack.c.l.b16 %v194
        %v670 = vunpack.c.h.b16 %v194
        %v671 = vunpack.c.l.b16 %v195
        %v672 = vunpack.c.h.b16 %v195
        %v673 = vunpack.c.l.b16 %v196
        %v674 = vunpack.c.l.b16 %v197
        %v675 = vunpack.c.h.b16 %v197
        %v676 = vunpack.c.l.b16 %v198
        %v677 = vunpack.c.h.b16 %v198
        %v678 = vunpack.c.l.b16 %v199
        %v679 = vunpack.c.l.b16 %v200
        %v680 = vunpack.c.h.b16 %v200
        %v681 = vunpack.c.l.b16 %v201
        %v682 = vunpack.c.h.b16 %v201
        %v683 = vunpack.c.l.b16 %v202
        %v684 = vunpack.c.l.b16 %v203
        %v685 = vunpack.c.h.b16 %v203
        %v686 = vunpack.c.l.b16 %v204
        %v687 = vunpack.c.h.b16 %v204
        %v688 = vunpack.c.l.b16 %v205
        %v689 = vunpack.c.l.b16 %v206
        %v690 = vunpack.c.h.b16 %v206
        %v691 = vunpack.c.l.b16 %v207
        %v692 = vunpack.c.h.b16 %v207
        %v693 = vunpack.c.l.b16 %v208
        %v694 = vunpack.c.l.b16 %v209
        %v695 = vunpack.c.h.b16 %v209
        %v696 = vunpack.c.l.b16 %v210
        %v697 = vunpack.c.h.b16 %v210
        %v698 = vunpack.c.l.b16 %v211
        %v699 = vunpack.c.l.b16 %v212
        %v700 = vunpack.c.h.b16 %v212
        %v701 = vunpack.c.l.b16 %v213
        %v702 = vunpack.c.h.b16 %v213
        %v703 = vunpack.c.l.b16 %v214
        %v704 = vunpack.c.l.b16 %v215
        %v705 = vunpack.c.h.b16 %v215
        %v706 = vunpack.c.l.b16 %v216
        %v707 = vunpack.c.h.b16 %v216
        %v708 = vunpack.c.l.b16 %v217
        %v709 = vunpack.c.l.b16 %v218
        %v710 = vunpack.c.h.b16 %v218
        %v711 = vunpack.c.l.b16 %v219
        %v712 = vunpack.c.h.b16 %v219
        %v713 = vunpack.c.l.b16 %v220
        %v714 = vunpack.c.l.b16 %v221
        %v715 = vunpack.c.h.b16 %v221
        %v716 = vunpack.c.l.b16 %v222
        %v717 = vunpack.c.h.b16 %v222
        %v718 = vunpack.c.l.b16 %v223
        %v719 = vunpack.c.l.b16 %v224
        %v720 = vunpack.c.h.b16 %v224
        %v721 = vunpack.c.l.b16 %v225
        %v722 = vunpack.c.h.b16 %v225
        %v723 = vunpack.c.l.b16 %v226
        %v724 = vunpack.c.l.b16 %v227
        %v725 = vunpack.c.h.b16 %v227
        %v726 = vunpack.c.l.b16 %v228
        %v727 = vunpack.c.h.b16 %v228
        %v728 = vunpack.c.l.b16 %v229
        %v729 = vunpack.c.l.b16 %v230
        %v730 = vunpack.c.h.b16 %v230
        %v731 = vunpack.c.l.b16 %v231
        %v732 = vunpack.c.h.b16 %v231
        %v733 = vunpack.c.l.b16 %v232
        %v734 = vunpack.c.l.b16 %v233
        %v735 = vunpack.c.h.b16 %v233
        %v736 = vunpack.c.l.b16 %v234
        %v737 = vunpack.c.h.b16 %v234
        %v738 = vunpack.c.l.b16 %v235
        %v739 = vunpack.c.l.b16 %v236
        %v740 = vunpack.c.h.b16 %v236
        %v741 = vunpack.c.l.b16 %v237
        %v742 = vunpack.c.h.b16 %v237
        %v743 = vunpack.c.l.b16 %v238
        %v744 = vunpack.c.l.b16 %v239
        %v745 = vunpack.c.h.b16 %v239
        %v746 = vunpack.c.l.b16 %v240
        %v747 = vunpack.c.h.b16 %v240
        %v748 = vunpack.c.l.b16 %v241
        %v749 = vunpack.c.l.b16 %v242
        %v750 = vunpack.c.h.b16 %v242
        %v751 = vunpack.c.l.b16 %v243
        %v752 = vunpack.c.h.b16 %v243
        %v753 = vunpack.c.l.b16 %v244
        %v754 = vunpack.c.l.b16 %v245
        %v755 = vunpack.c.h.b16 %v245
        %v756 = vunpack.c.l.b16 %v246
        %v757 = vunpack.c.h.b16 %v246
        %v758 = vunpack.c.l.b16 %v247
        %v759 = vunpack.c.l.b16 %v248
        %v760 = vunpack.c.h.b16 %v248
        %v761 = vunpack.c.l.b16 %v249
        %v762 = vunpack.c.h.b16 %v249
        %v763 = vunpack.c.l.b16 %v250
        %v764 = vunpack.c.l.b16 %v251
        %v765 = vunpack.c.h.b16 %v251
        %v766 = vunpack.c.l.b16 %v252
        %v767 = vunpack.c.h.b16 %v252
        %v768 = vunpack.c.l.b16 %v253
        %v769 = vunpack.c.l.b16 %v254
        %v770 = vunpack.c.h.b16 %v254
        %v771 = vunpack.c.l.b16 %v255
        %v772 = vunpack.c.h.b16 %v255
        %v773 = vunpack.c.l.b16 %v256
        %v774 = vunpack.c.l.b16 %v257
        %v775 = vunpack.c.h.b16 %v257
        %v776 = vunpack.c.l.b16 %v258
        %v777 = vunpack.c.h.b16 %v258
        %v778 = vunpack.c.l.b16 %v259
        %v779 = vunpack.c.l.b16 %v260
        %v780 = vunpack.c.h.b16 %v260
        %v781 = vunpack.c.l.b16 %v261
        %v782 = vunpack.c.h.b16 %v261
        %v783 = vunpack.c.l.b16 %v262
        %v784 = vunpack.c.l.b16 %v263
        %v785 = vunpack.c.h.b16 %v263
        %v786 = vunpack.c.l.b16 %v264
        %v787 = vunpack.c.h.b16 %v264
        %v788 = vunpack.c.l.b16 %v265
        %v789 = vunpack.c.l.b16 %v266
        %v790 = vunpack.c.h.b16 %v266
        %v791 = vunpack.c.l.b16 %v267
        %v792 = vunpack.c.h.b16 %v267
        %v793 = vunpack.c.l.b16 %v268
        %v794 = vunpack.c.l.b16 %v269
        %v795 = vunpack.c.h.b16 %v269
        %v796 = vunpack.c.l.b16 %v270
        %v797 = vunpack.c.h.b16 %v270
        %v798 = vunpack.c.l.b16 %v271
        %v799 = vunpack.c.l.b16 %v272
        %v800 = vunpack.c.h.b16 %v272
        %v801 = vunpack.c.l.b16 %v273
        %v802 = vunpack.c.h.b16 %v273
        %v803 = vunpack.c.l.b16 %v274
        %v804 = vunpack.c.l.b16 %v275
        %v805 = vunpack.c.h.b16 %v275
        %v806 = vunpack.c.l.b16 %v276
        %v807 = vunpack.c.h.b16 %v276
        %v808 = vunpack.c.l.b16 %v277
        %v809 = vunpack.c.l.b16 %v278
        %v810 = vunpack.c.h.b16 %v278
        %v811 = vunpack.c.l.b16 %v279
        %v812 = vunpack.c.h.b16 %v279
        %v813 = vunpack.c.l.b16 %v280
        %v814 = vunpack.c.l.b16 %v281
        %v815 = vunpack.c.h.b16 %v281
        %v816 = vunpack.c.l.b16 %v282
        %v817 = vunpack.c.h.b16 %v282
        %v818 = vunpack.c.l.b16 %v283
        %v819 = vunpack.c.l.b16 %v284
        %v820 = vunpack.c.h.b16 %v284
        %v821 = vunpack.c.l.b16 %v285
        %v822 = vunpack.c.h.b16 %v285
        %v823 = vunpack.c.l.b16 %v286
        %v824 = vunpack.c.l.b16 %v287
        %v825 = vunpack.c.h.b16 %v287
        %v826 = vunpack.c.l.b16 %v288
        %v827 = vunpack.c.h.b16 %v288
        %v828 = vunpack.c.l.b16 %v289
        %v829 = vunpack.c.l.b16 %v290
        %v830 = vunpack.c.h.b16 %v290
        %v831 = vunpack.c.l.b16 %v291
        %v832 = vunpack.c.h.b16 %v291
        %v833 = vunpack.c.l.b16 %v292
        %v834 = vunpack.c.l.b16 %v293
        %v835 = vunpack.c.h.b16 %v293
        %v836 = vunpack.c.l.b16 %v294
        %v837 = vunpack.c.h.b16 %v294
        %v838 = vunpack.c.l.b16 %v295
        %v839 = vunpack.c.l.b16 %v296
        %v840 = vunpack.c.h.b16 %v296
        %v841 = vunpack.c.l.b16 %v297
        %v842 = vunpack.c.h.b16 %v297
        %v843 = vunpack.c.l.b16 %v298
        %v844 = vunpack.c.l.b16 %v299
        %v845 = vunpack.c.h.b16 %v299
        %v846 = vunpack.c.l.b16 %v300
        %v847 = vunpack.c.h.b16 %v300
        %v848 = vunpack.c.l.b16 %v301
        %v849 = vunpack.c.l.b16 %v302
        %v850 = vunpack.c.h.b16 %v302
        %v851 = vunpack.c.l.b16 %v303
        %v852 = vunpack.c.h.b16 %v303
        %v853 = vunpack.c.l.b16 %v304
        %v854 = vunpack.c.l.b16 %v305
        %v855 = vunpack.c.h.b16 %v305
        %v856 = vunpack.c.l.b16 %v306
        %v857 = vunpack.c.h.b16 %v306
        %v858 = vunpack.c.l.b16 %v307
        %v859 = vunpack.c.l.b16 %v308
        %v860 = vunpack.c.h.b16 %v308
        %v861 = vunpack.c.l.b16 %v309
        %v862 = vunpack.c.h.b16 %v309
        %v863 = vunpack.c.l.b16 %v310
        %v864 = vunpack.c.l.b16 %v311
        %v865 = vunpack.c.h.b16 %v311
        %v866 = vunpack.c.l.b16 %v312
        %v867 = vunpack.c.h.b16 %v312
        %v868 = vunpack.c.l.b16 %v313
        %v869 = vunpack.c.l.b16 %v314
        %v870 = vunpack.c.h.b16 %v314
        %v871 = vunpack.c.l.b16 %v315
        %v872 = vunpack.c.h.b16 %v315
        %v873 = vunpack.c.l.b16 %v316
        %v874 = vunpack.c.l.b16 %v317
        %v875 = vunpack.c.h.b16 %v317
        %v876 = vunpack.c.l.b16 %v318
        %v877 = vunpack.c.h.b16 %v318
        %v878 = vunpack.c.l.b16 %v319
        %v879 = vunpack.c.l.b16 %v320
        %v880 = vunpack.c.h.b16 %v320
        %v881 = vunpack.c.l.b16 %v321
        %v882 = vunpack.c.h.b16 %v321
        %v883 = vunpack.c.l.b16 %v322
        %v884 = vunpack.c.l.b16 %v323
        %v885 = vunpack.c.h.b16 %v323
        %v886 = vunpack.c.l.b16 %v324
        %v887 = vunpack.c.h.b16 %v324
        %v888 = vunpack.c.l.b16 %v325
        %v889 = vunpack.c.l.b16 %v326
        %v890 = vunpack.c.h.b16 %v326
        %v891 = vunpack.c.l.b16 %v327
        %v892 = vunpack.c.h.b16 %v327
        %v893 = vunpack.c.l.b16 %v328
        %v894 = vunpack.c.l.b16 %v329
        %v895 = vunpack.c.h.b16 %v329
        %v896 = vunpack.c.l.b16 %v330
        %v897 = vunpack.c.h.b16 %v330
        %v898 = vunpack.c.l.b16 %v331
        %v899 = vunpack.c.l.b16 %v332
        %v900 = vunpack.c.h.b16 %v332
        %v901 = vunpack.c.l.b16 %v333
        %v902 = vunpack.c.h.b16 %v333
        %v903 = vunpack.c.l.b16 %v334
        %v904 = vunpack.c.l.b16 %v335
        %v905 = vunpack.c.h.b16 %v335
        %v906 = vunpack.c.l.b16 %v336
        %v907 = vunpack.c.h.b16 %v336
        %v908 = vunpack.c.l.b16 %v337
        %v909 = vunpack.c.l.b16 %v338
        %v910 = vunpack.c.h.b16 %v338
        %v911 = vunpack.c.l.b16 %v339
        %v912 = vunpack.c.h.b16 %v339
        %v913 = vunpack.c.l.b16 %v340
        %v914 = vunpack.c.l.b16 %v341
        %v915 = vunpack.c.h.b16 %v341
        %v916 = vunpack.c.l.b16 %v342
        %v917 = vunpack.c.h.b16 %v342
        %v918 = vunpack.c.l.b16 %v343
        %v919 = vunpack.c.l.b16 %v344
        %v920 = vunpack.c.h.b16 %v344
        %v921 = vunpack.c.l.b16 %v345
        %v922 = vunpack.c.h.b16 %v345
        %v923 = vunpack.c.l.b16 %v346
        %v924 = vunpack.c.l.b16 %v347
        %v925 = vunpack.c.h.b16 %v347
        %v926 = vunpack.c.l.b16 %v348
        %v927 = vunpack.c.h.b16 %v348
        %v928 = vunpack.c.l.b16 %v349
        %v929 = vunpack.c.l.b16 %v350
        %v930 = vunpack.c.h.b16 %v350
        %v931 = vunpack.c.l.b16 %v351
        %v932 = vunpack.c.h.b16 %v351
        %v933 = vunpack.c.l.b16 %v352
        %v934 = vunpack.c.l.b16 %v353
        %v935 = vunpack.c.h.b16 %v353
        %v936 = vunpack.c.l.b16 %v354
        %v937 = vunpack.c.h.b16 %v354
        %v938 = vunpack.c.l.b16 %v355
        %v939 = vunpack.c.l.b16 %v356
        %v940 = vunpack.c.h.b16 %v356
        %v941 = vunpack.c.l.b16 %v357
        %v942 = vunpack.c.h.b16 %v357
        %v943 = vunpack.c.l.b16 %v358
        %v944 = vunpack.c.l.b16 %v359
        %v945 = vunpack.c.h.b16 %v359
        %v946 = vunpack.c.l.b16 %v360
        %v947 = vunpack.c.h.b16 %v360
        %v948 = vunpack.c.l.b16 %v361
        %v949 = vunpack.c.l.b16 %v362
        %v950 = vunpack.c.h.b16 %v362
        %v951 = vunpack.c.l.b16 %v363
        %v952 = vunpack.c.h.b16 %v363
        %v953 = vunpack.c.l.b16 %v364
        %v954 = vunpack.c.l.b16 %v365
        %v955 = vunpack.c.h.b16 %v365
        %v956 = vunpack.c.l.b16 %v366
        %v957 = vunpack.c.h.b16 %v366
        %v958 = vunpack.c.l.b16 %v367
        %v959 = vpack.c.b16 %v644, %v639
        %v960 = vpack.c.b16 %v645, %v640
        %v961 = vpack.c.b16 %v646, %v641
        %v962 = vpack.c.b16 %v647, %v642
        %v963 = vpack.c.b16 %v648, %v643
        %v964 = vpack.c.b16 %v654, %v649
        %v965 = vpack.c.b16 %v655, %v650
        %v966 = vpack.c.b16 %v656, %v651
        %v967 = vpack.c.b16 %v657, %v652
        %v968 = vpack.c.b16 %v658, %v653
        %v969 = vpack.c.b16 %v664, %v659
        %v970 = vpack.c.b16 %v665, %v660
        %v971 = vpack.c.b16 %v666, %v661
        %v972 = vpack.c.b16 %v667, %v662
        %v973 = vpack.c.b16 %v668, %v663
        %v974 = vpack.c.b16 %v674, %v669
        %v975 = vpack.c.b16 %v675, %v670
        %v976 = vpack.c.b16 %v676, %v671
        %v977 = vpack.c.b16 %v677, %v672
        %v978 = vpack.c.b16 %v678, %v673
        %v979 = vpack.c.b16 %v684, %v679
        %v980 = vpack.c.b16 %v685, %v680
        %v981 = vpack.c.b16 %v686, %v681
        %v982 = vpack.c.b16 %v687, %v682
        %v983 = vpack.c.b16 %v688, %v683
        %v984 = vpack.c.b16 %v694, %v689
        %v985 = vpack.c.b16 %v695, %v690
        %v986 = vpack.c.b16 %v696, %v691
        %v987 = vpack.c.b16 %v697, %v692
        %v988 = vpack.c.b16 %v698, %v693
        %v989 = vpack.c.b16 %v704, %v699
        %v990 = vpack.c.b16 %v705, %v700
        %v991 = vpack.c.b16 %v706, %v701
        %v992 = vpack.c.b16 %v707, %v702
        %v993 = vpack.c.b16 %v708, %v703
        %v994 = vpack.c.b16 %v714, %v709
        %v995 = vpack.c.b16 %v715, %v710
        %v996 = vpack.c.b16 %v716, %v711
        %v997 = vpack.c.b16 %v717, %v712
        %v998 = vpack.c.b16 %v718, %v713
        %v999 = vpack.c.b16 %v724, %v719
        %v1000 = vpack.c.b16 %v725, %v720
        %v1001 = vpack.c.b16 %v726, %v721
        %v1002 = vpack.c.b16 %v727, %v722
        %v1003 = vpack.c.b16 %v728, %v723
        %v1004 = vpack.c.b16 %v734, %v729
        %v1005 = vpack.c.b16 %v735, %v730
        %v1006 = vpack.c.b16 %v736, %v731
        %v1007 = vpack.c.b16 %v737, %v732
        %v1008 = vpack.c.b16 %v738, %v733
        %v1009 = vpack.c.b16 %v744, %v739
        %v1010 = vpack.c.b16 %v745, %v740
        %v1011 = vpack.c.b16 %v746, %v741
        %v1012 = vpack.c.b16 %v747, %v742
        %v1013 = vpack.c.b16 %v748, %v743
        %v1014 = vpack.c.b16 %v754, %v749
        %v1015 = vpack.c.b16 %v755, %v750
        %v1016 = vpack.c.b16 %v756, %v751
        %v1017 = vpack.c.b16 %v757, %v752
        %v1018 = vpack.c.b16 %v758, %v753
        %v1019 = vpack.c.b16 %v764, %v759
        %v1020 = vpack.c.b16 %v765, %v760
        %v1021 = vpack.c.b16 %v766, %v761
        %v1022 = vpack.c.b16 %v767, %v762
        %v1023 = vpack.c.b16 %v768, %v763
        %v1024 = vpack.c.b16 %v774, %v769
        %v1025 = vpack.c.b16 %v775, %v770
        %v1026 = vpack.c.b16 %v776, %v771
        %v1027 = vpack.c.b16 %v777, %v772
        %v1028 = vpack.c.b16 %v778, %v773
        %v1029 = vpack.c.b16 %v784, %v779
        %v1030 = vpack.c.b16 %v785, %v780
        %v1031 = vpack.c.b16 %v786, %v781
        %v1032 = vpack.c.b16 %v787, %v782
        %v1033 = vpack.c.b16 %v788, %v783
        %v1034 = vpack.c.b16 %v794, %v789
        %v1035 = vpack.c.b16 %v795, %v790
        %v1036 = vpack.c.b16 %v796, %v791
        %v1037 = vpack.c.b16 %v797, %v792
        %v1038 = vpack.c.b16 %v798, %v793
        %v1039 = vpack.c.b16 %v804, %v799
        %v1040 = vpack.c.b16 %v805, %v800
        %v1041 = vpack.c.b16 %v806, %v801
        %v1042 = vpack.c.b16 %v807, %v802
        %v1043 = vpack.c.b16 %v808, %v803
        %v1044 = vpack.c.b16 %v814, %v809
        %v1045 = vpack.c.b16 %v815, %v810
        %v1046 = vpack.c.b16 %v816, %v811
        %v1047 = vpack.c.b16 %v817, %v812
        %v1048 = vpack.c.b16 %v818, %v813
        %v1049 = vpack.c.b16 %v824, %v819
        %v1050 = vpack.c.b16 %v825, %v820
        %v1051 = vpack.c.b16 %v826, %v821
        %v1052 = vpack.c.b16 %v827, %v822
        %v1053 = vpack.c.b16 %v828, %v823
        %v1054 = vpack.c.b16 %v834, %v829
        %v1055 = vpack.c.b16 %v835, %v830
        %v1056 = vpack.c.b16 %v836, %v831
        %v1057 = vpack.c.b16 %v837, %v832
        %v1058 = vpack.c.b16 %v838, %v833
        %v1059 = vpack.c.b16 %v844, %v839
        %v1060 = vpack.c.b16 %v845, %v840
        %v1061 = vpack.c.b16 %v846, %v841
        %v1062 = vpack.c.b16 %v847, %v842
        %v1063 = vpack.c.b16 %v848, %v843
        %v1064 = vpack.c.b16 %v854, %v849
        %v1065 = vpack.c.b16 %v855, %v850
        %v1066 = vpack.c.b16 %v856, %v851
        %v1067 = vpack.c.b16 %v857, %v852
        %v1068 = vpack.c.b16 %v858, %v853
        %v1069 = vpack.c.b16 %v864, %v859
        %v1070 = vpack.c.b16 %v865, %v860
        %v1071 = vpack.c.b16 %v866, %v861
        %v1072 = vpack.c.b16 %v867, %v862
        %v1073 = vpack.c.b16 %v868, %v863
        %v1074 = vpack.c.b16 %v874, %v869
        %v1075 = vpack.c.b16 %v875, %v870
        %v1076 = vpack.c.b16 %v876, %v871
        %v1077 = vpack.c.b16 %v877, %v872
        %v1078 = vpack.c.b16 %v878, %v873
        %v1079 = vpack.c.b16 %v884, %v879
        %v1080 = vpack.c.b16 %v885, %v880
        %v1081 = vpack.c.b16 %v886, %v881
        %v1082 = vpack.c.b16 %v887, %v882
        %v1083 = vpack.c.b16 %v888, %v883
        %v1084 = vpack.c.b16 %v894, %v889
        %v1085 = vpack.c.b16 %v895, %v890
        %v1086 = vpack.c.b16 %v896, %v891
        %v1087 = vpack.c.b16 %v897, %v892
        %v1088 = vpack.c.b16 %v898, %v893
        %v1089 = vpack.c.b16 %v904, %v899
        %v1090 = vpack.c.b16 %v905, %v900
        %v1091 = vpack.c.b16 %v906, %v901
        %v1092 = vpack.c.b16 %v907, %v902
        %v1093 = vpack.c.b16 %v908, %v903
        %v1094 = vpack.c.b16 %v914, %v909
        %v1095 = vpack.c.b16 %v915, %v910
        %v1096 = vpack.c.b16 %v916, %v911
        %v1097 = vpack.c.b16 %v917, %v912
        %v1098 = vpack.c.b16 %v918, %v913
        %v1099 = vpack.c.b16 %v924, %v919
        %v1100 = vpack.c.b16 %v925, %v920
        %v1101 = vpack.c.b16 %v926, %v921
        %v1102 = vpack.c.b16 %v927, %v922
        %v1103 = vpack.c.b16 %v928, %v923
        %v1104 = vpack.c.b16 %v934, %v929
        %v1105 = vpack.c.b16 %v935, %v930
        %v1106 = vpack.c.b16 %v936, %v931
        %v1107 = vpack.c.b16 %v937, %v932
        %v1108 = vpack.c.b16 %v938, %v933
        %v1109 = vpack.c.b16 %v944, %v939
        %v1110 = vpack.c.b16 %v945, %v940
        %v1111 = vpack.c.b16 %v946, %v941
        %v1112 = vpack.c.b16 %v947, %v942
        %v1113 = vpack.c.b16 %v948, %v943
        %v1114 = vpack.c.b16 %v954, %v949
        %v1115 = vpack.c.b16 %v955, %v950
        %v1116 = vpack.c.b16 %v956, %v951
        %v1117 = vpack.c.b16 %v957, %v952
        %v1118 = vpack.c.b16 %v958, %v953
        %v1319 = vunpack.c.l.b16 %v368
        %v1320 = vunpack.c.l.b16 %v369
        %v1321 = vunpack.c.l.b16 %v370
        %v1322 = vunpack.c.l.b16 %v371
        %v1323 = vunpack.c.l.b16 %v372
        %v1324 = vunpack.c.l.b16 %v373
        %v1325 = vunpack.c.l.b16 %v374
        %v1326 = vunpack.c.l.b16 %v375
        %v1327 = vunpack.c.l.b16 %v376
        %v1328 = vunpack.c.l.b16 %v377
        %v1329 = vunpack.c.l.b16 %v378
        %v1330 = vunpack.c.l.b16 %v379
        %v1331 = vunpack.c.l.b16 %v380
        %v1332 = vunpack.c.l.b16 %v381
        %v1333 = vunpack.c.l.b16 %v382
        %v1334 = vunpack.c.l.b16 %v383
        %v1335 = vunpack.c.l.b16 %v384
        %v1336 = vunpack.c.l.b16 %v385
        %v1337 = vunpack.c.l.b16 %v386
        %v1338 = vunpack.c.l.b16 %v387
        %v1339 = vunpack.c.l.b16 %v388
        %v1340 = vunpack.c.l.b16 %v389
        %v1341 = vunpack.c.l.b16 %v390
        %v1342 = vunpack.c.l.b16 %v391
        %v1343 = vunpack.c.l.b16 %v392
        %v1344 = vunpack.c.l.b16 %v393
        %v1345 = vunpack.c.l.b16 %v394
        %v1346 = vunpack.c.l.b16 %v395
        %v1347 = vunpack.c.l.b16 %v396
        %v1348 = vunpack.c.l.b16 %v397
        %v1349 = vunpack.c.l.b16 %v398
        %v1350 = vunpack.c.l.b16 %v399
        %v1351 = vunpack.c.l.b16 %v400
        %v1352 = vunpack.c.l.b16 %v401
        %v1353 = vunpack.c.l.b16 %v402
        %v1354 = vunpack.c.l.b16 %v403
        %v1355 = vunpack.c.l.b16 %v404
        %v1356 = vunpack.c.l.b16 %v405
        %v1357 = vunpack.c.l.b16 %v406
        %v1358 = vunpack.c.l.b16 %v407
        %v1359 = vunpack.c.l.b16 %v408
        %v1360 = vunpack.c.l.b16 %v409
        %v1361 = vunpack.c.l.b16 %v410
        %v1362 = vunpack.c.l.b16 %v411
        %v1363 = vunpack.c.l.b16 %v412
        %v1364 = vunpack.c.l.b16 %v413
        %v1365 = vunpack.c.l.b16 %v414
        %v1366 = vunpack.c.l.b16 %v415
        %v1367 = vunpack.c.l.b16 %v416
        %v1368 = vunpack.c.l.b16 %v417
        %v1369 = vunpack.c.l.b16 %v418
        %v1370 = vunpack.c.l.b16 %v419
        %v1371 = vunpack.c.l.b16 %v420
        %v1372 = vunpack.c.l.b16 %v421
        %v1373 = vunpack.c.l.b16 %v422
        %v1374 = vunpack.c.l.b16 %v423
        %v1375 = vunpack.c.l.b16 %v424
        %v1376 = vunpack.c.l.b16 %v425
        %v1377 = vunpack.c.l.b16 %v426
        %v1378 = vunpack.c.l.b16 %v427
        %v1379 = vunpack.c.l.b16 %v428
        %v1380 = vunpack.c.l.b16 %v429
        %v1381 = vunpack.c.l.b16 %v430
        %v1382 = vunpack.c.l.b16 %v431
        %v1383 = vunpack.c.l.b16 %v432
        %v1384 = vunpack.c.l.b16 %v433
        %v1385 = vunpack.c.l.b16 %v434
        %v1386 = vunpack.c.l.b16 %v435
        %v1387 = vunpack.c.l.b16 %v436
        %v1388 = vunpack.c.l.b16 %v437
        %v1389 = vunpack.c.l.b16 %v438
        %v1390 = vunpack.c.l.b16 %v439
        %v1391 = vpack.c.b16 %v1320, %v1319
        %v1392 = vpack.c.b16 %v1322, %v1321
        %v1393 = vpack.c.b16 %v1324, %v1323
        %v1394 = vpack.c.b16 %v1326, %v1325
        %v1395 = vpack.c.b16 %v1328, %v1327
        %v1396 = vpack.c.b16 %v1330, %v1329
        %v1397 = vpack.c.b16 %v1332, %v1331
        %v1398 = vpack.c.b16 %v1334, %v1333
        %v1399 = vpack.c.b16 %v1336, %v1335
        %v1400 = vpack.c.b16 %v1338, %v1337
        %v1401 = vpack.c.b16 %v1340, %v1339
        %v1402 = vpack.c.b16 %v1342, %v1341
        %v1403 = vpack.c.b16 %v1344, %v1343
        %v1404 = vpack.c.b16 %v1346, %v1345
        %v1405 = vpack.c.b16 %v1348, %v1347
        %v1406 = vpack.c.b16 %v1350, %v1349
        %v1407 = vpack.c.b16 %v1352, %v1351
        %v1408 = vpack.c.b16 %v1354, %v1353
        %v1409 = vpack.c.b16 %v1356, %v1355
        %v1410 = vpack.c.b16 %v1358, %v1357
        %v1411 = vpack.c.b16 %v1360, %v1359
        %v1412 = vpack.c.b16 %v1362, %v1361
        %v1413 = vpack.c.b16 %v1364, %v1363
        %v1414 = vpack.c.b16 %v1366, %v1365
        %v1415 = vpack.c.b16 %v1368, %v1367
        %v1416 = vpack.c.b16 %v1370, %v1369
        %v1417 = vpack.c.b16 %v1372, %v1371
        %v1418 = vpack.c.b16 %v1374, %v1373
        %v1419 = vpack.c.b16 %v1376, %v1375
        %v1420 = vpack.c.b16 %v1378, %v1377
        %v1421 = vpack.c.b16 %v1380, %v1379
        %v1422 = vpack.c.b16 %v1382, %v1381
        %v1423 = vpack.c.b16 %v1384, %v1383
        %v1424 = vpack.c.b16 %v1386, %v1385
        %v1425 = vpack.c.b16 %v1388, %v1387
        %v1426 = vpack.c.b16 %v1390, %v1389
        %vm1463 = vcmask 523264
        %v1465 = vsel %vm1463, %v963, 0
        %v1468 = vsel %vm1463, %v968, 0
        %v1471 = vsel %vm1463, %v973, 0
        %v1474 = vsel %vm1463, %v978, 0
        %v1477 = vsel %vm1463, %v983, 0
        %v1480 = vsel %vm1463, %v988, 0
        %v1483 = vsel %vm1463, %v993, 0
        %v1486 = vsel %vm1463, %v998, 0
        %v1489 = vsel %vm1463, %v1003, 0
        %v1492 = vsel %vm1463, %v1008, 0
        %v1495 = vsel %vm1463, %v1013, 0
        %v1498 = vsel %vm1463, %v1018, 0
        %v1501 = vsel %vm1463, %v1023, 0
        %v1504 = vsel %vm1463, %v1028, 0
        %v1507 = vsel %vm1463, %v1033, 0
        %v1510 = vsel %vm1463, %v1038, 0
        %v1513 = vsel %vm1463, %v1043, 0
        %v1516 = vsel %vm1463, %v1048, 0
        %v1519 = vsel %vm1463, %v1053, 0
        %v1522 = vsel %vm1463, %v1058, 0
        %v1525 = vsel %vm1463, %v1063, 0
        %v1528 = vsel %vm1463, %v1068, 0
        %v1531 = vsel %vm1463, %v1073, 0
        %v1534 = vsel %vm1463, %v1078, 0
        %v1537 = vsel %vm1463, %v1083, 0
        %v1540 = vsel %vm1463, %v1088, 0
        %v1543 = vsel %vm1463, %v1093, 0
        %v1546 = vsel %vm1463, %v1098, 0
        %v1549 = vsel %vm1463, %v1103, 0
        %v1552 = vsel %vm1463, %v1108, 0
        %v1555 = vsel %vm1463, %v1113, 0
        %v1558 = vsel %vm1463, %v1118, 0
        %1560 = vmatprep.subr.bf16.mxu0 0
        %1561 = vmatpush1.bf16.msra.mxu0 %v1391
        %1562 = vmatprep.subr.bf16.mxu0 0
        %1563 = vmatpush1.bf16.msra.mxu0 %v1392
        %1564 = vmatprep.subr.bf16.mxu0 0
        %1565 = vmatpush1.bf16.msra.mxu0 %v1393
        %1566 = vmatprep.subr.bf16.mxu0 0
        %1567 = vmatpush1.bf16.msra.mxu0 %v1394
        %1568 = vmatprep.subr.bf16.mxu0 0
        %1569 = vmatpush1.bf16.msra.mxu0 %v1395
        %1570 = vmatprep.subr.bf16.mxu0 0
        %1571 = vmatpush1.bf16.msra.mxu0 %v1396
        %1572 = vmatprep.subr.bf16.mxu0 0
        %1573 = vmatpush1.bf16.msra.mxu0 %v1397
        %1574 = vmatprep.subr.bf16.mxu0 0
        %1575 = vmatpush1.bf16.msra.mxu0 %v1398
        %1576 = vmatprep.subr.bf16.mxu0 0
        %1577 = vmatpush1.bf16.msra.mxu0 %v1399
        %1578 = vmatprep.subr.bf16.mxu0 0
        %1579 = vmatpush1.bf16.msra.mxu0 %v1400
        %1580 = vmatprep.subr.bf16.mxu0 0
        %1581 = vmatpush1.bf16.msra.mxu0 %v1401
        %1582 = vmatprep.subr.bf16.mxu0 0
        %1583 = vmatpush1.bf16.msra.mxu0 %v1402
        %1584 = vmatprep.subr.bf16.mxu0 0
        %1585 = vmatpush1.bf16.msra.mxu0 %v1403
        %1586 = vmatprep.subr.bf16.mxu0 0
        %1587 = vmatpush1.bf16.msra.mxu0 %v1404
        %1588 = vmatprep.subr.bf16.mxu0 0
        %1589 = vmatpush1.bf16.msra.mxu0 %v1405
        %1590 = vmatprep.subr.bf16.mxu0 0
        %1591 = vmatpush1.bf16.msra.mxu0 %v1406
        %1592 = vmatprep.mubr.bf16.mxu0 %v960
        %1593 = vmatmul.mubr.bf16.gmra.mrb[0].mxu0 %v959
        %v1594 = vpop.f32.mrb[0].mxu0
        %v1595 = vadd.f32 %v445, %v1594
        %v1596 = vpop.f32.mrb[0].mxu0
        %v1597 = vpop.f32.mrb[0].mxu0
        %v1598 = vadd.f32 %v445, %v1597
        %v1599 = vpop.f32.mrb[0].mxu0
        %1600 = vmatprep.mubr.bf16.mxu0 %v965
        %1601 = vmatmul.mubr.bf16.gmra.mrb[0].mxu0 %v964
        %v1602 = vpop.f32.mrb[0].mxu0
        %v1603 = vadd.f32 %v445, %v1602
        %v1604 = vpop.f32.mrb[0].mxu0
        %v1605 = vpop.f32.mrb[0].mxu0
        %v1606 = vadd.f32 %v445, %v1605
        %v1607 = vpop.f32.mrb[0].mxu0
        %1608 = vmatprep.mubr.bf16.mxu0 %v970
        %1609 = vmatmul.mubr.bf16.gmra.mrb[0].mxu0 %v969
        %v1610 = vpop.f32.mrb[0].mxu0
        %v1611 = vadd.f32 %v445, %v1610
        %v1612 = vpop.f32.mrb[0].mxu0
        %v1613 = vpop.f32.mrb[0].mxu0
        %v1614 = vadd.f32 %v445, %v1613
        %v1615 = vpop.f32.mrb[0].mxu0
        %1616 = vmatprep.mubr.bf16.mxu0 %v975
        %1617 = vmatmul.mubr.bf16.gmra.mrb[0].mxu0 %v974
        %v1618 = vpop.f32.mrb[0].mxu0
        %v1619 = vadd.f32 %v445, %v1618
        %v1620 = vpop.f32.mrb[0].mxu0
        %v1621 = vpop.f32.mrb[0].mxu0
        %v1622 = vadd.f32 %v445, %v1621
        %v1623 = vpop.f32.mrb[0].mxu0
        %1624 = vmatprep.mubr.bf16.mxu0 %v980
        %1625 = vmatmul.mubr.bf16.gmra.mrb[0].mxu0 %v979
        %v1626 = vpop.f32.mrb[0].mxu0
        %v1627 = vadd.f32 %v445, %v1626
        %v1628 = vpop.f32.mrb[0].mxu0
        %v1629 = vpop.f32.mrb[0].mxu0
        %v1630 = vadd.f32 %v445, %v1629
        %v1631 = vpop.f32.mrb[0].mxu0
        %1632 = vmatprep.mubr.bf16.mxu0 %v985
        %1633 = vmatmul.mubr.bf16.gmra.mrb[0].mxu0 %v984
        %v1634 = vpop.f32.mrb[0].mxu0
        %v1635 = vadd.f32 %v445, %v1634
        %v1636 = vpop.f32.mrb[0].mxu0
        %v1637 = vpop.f32.mrb[0].mxu0
        %v1638 = vadd.f32 %v445, %v1637
        %v1639 = vpop.f32.mrb[0].mxu0
        %1640 = vmatprep.mubr.bf16.mxu0 %v990
        %1641 = vmatmul.mubr.bf16.gmra.mrb[0].mxu0 %v989
        %v1642 = vpop.f32.mrb[0].mxu0
        %v1643 = vadd.f32 %v445, %v1642
        %v1644 = vpop.f32.mrb[0].mxu0
        %v1645 = vpop.f32.mrb[0].mxu0
        %v1646 = vadd.f32 %v445, %v1645
        %v1647 = vpop.f32.mrb[0].mxu0
        %1648 = vmatprep.mubr.bf16.mxu0 %v995
        %1649 = vmatmul.mubr.bf16.gmra.mrb[0].mxu0 %v994
        %v1650 = vpop.f32.mrb[0].mxu0
        %v1651 = vadd.f32 %v445, %v1650
        %v1652 = vpop.f32.mrb[0].mxu0
        %v1653 = vpop.f32.mrb[0].mxu0
        %v1654 = vadd.f32 %v445, %v1653
        %v1655 = vpop.f32.mrb[0].mxu0
        %1656 = vmatprep.mubr.bf16.mxu0 %v1000
        %1657 = vmatmul.mubr.bf16.gmra.mrb[0].mxu0 %v999
        %v1658 = vpop.f32.mrb[0].mxu0
        %v1659 = vadd.f32 %v445, %v1658
        %v1660 = vpop.f32.mrb[0].mxu0
        %v1661 = vpop.f32.mrb[0].mxu0
        %v1662 = vadd.f32 %v445, %v1661
        %v1663 = vpop.f32.mrb[0].mxu0
        %1664 = vmatprep.mubr.bf16.mxu0 %v1005
        %1665 = vmatmul.mubr.bf16.gmra.mrb[0].mxu0 %v1004
        %v1666 = vpop.f32.mrb[0].mxu0
        %v1667 = vadd.f32 %v445, %v1666
        %v1668 = vpop.f32.mrb[0].mxu0
        %v1669 = vpop.f32.mrb[0].mxu0
        %v1670 = vadd.f32 %v445, %v1669
        %v1671 = vpop.f32.mrb[0].mxu0
        %1672 = vmatprep.mubr.bf16.mxu0 %v1010
        %1673 = vmatmul.mubr.bf16.gmra.mrb[0].mxu0 %v1009
        %v1674 = vpop.f32.mrb[0].mxu0
        %v1675 = vadd.f32 %v445, %v1674
        %v1676 = vpop.f32.mrb[0].mxu0
        %v1677 = vpop.f32.mrb[0].mxu0
        %v1678 = vadd.f32 %v445, %v1677
        %v1679 = vpop.f32.mrb[0].mxu0
        %1680 = vmatprep.mubr.bf16.mxu0 %v1015
        %1681 = vmatmul.mubr.bf16.gmra.mrb[0].mxu0 %v1014
        %v1682 = vpop.f32.mrb[0].mxu0
        %v1683 = vadd.f32 %v445, %v1682
        %v1684 = vpop.f32.mrb[0].mxu0
        %v1685 = vpop.f32.mrb[0].mxu0
        %v1686 = vadd.f32 %v445, %v1685
        %v1687 = vpop.f32.mrb[0].mxu0
        %1688 = vmatprep.mubr.bf16.mxu0 %v1020
        %1689 = vmatmul.mubr.bf16.gmra.mrb[0].mxu0 %v1019
        %v1690 = vpop.f32.mrb[0].mxu0
        %v1691 = vadd.f32 %v445, %v1690
        %v1692 = vpop.f32.mrb[0].mxu0
        %v1693 = vpop.f32.mrb[0].mxu0
        %v1694 = vadd.f32 %v445, %v1693
        %v1695 = vpop.f32.mrb[0].mxu0
        %1696 = vmatprep.mubr.bf16.mxu0 %v1025
        %1697 = vmatmul.mubr.bf16.gmra.mrb[0].mxu0 %v1024
        %v1698 = vpop.f32.mrb[0].mxu0
        %v1699 = vadd.f32 %v445, %v1698
        %v1700 = vpop.f32.mrb[0].mxu0
        %v1701 = vpop.f32.mrb[0].mxu0
        %v1702 = vadd.f32 %v445, %v1701
        %v1703 = vpop.f32.mrb[0].mxu0
        %1704 = vmatprep.mubr.bf16.mxu0 %v1030
        %1705 = vmatmul.mubr.bf16.gmra.mrb[0].mxu0 %v1029
        %v1706 = vpop.f32.mrb[0].mxu0
        %v1707 = vadd.f32 %v445, %v1706
        %v1708 = vpop.f32.mrb[0].mxu0
        %v1709 = vpop.f32.mrb[0].mxu0
        %v1710 = vadd.f32 %v445, %v1709
        %v1711 = vpop.f32.mrb[0].mxu0
        %1712 = vmatprep.mubr.bf16.mxu0 %v1035
        %1713 = vmatmul.mubr.bf16.gmra.mrb[0].mxu0 %v1034
        %v1714 = vpop.f32.mrb[0].mxu0
        %v1715 = vadd.f32 %v445, %v1714
        %v1716 = vpop.f32.mrb[0].mxu0
        %v1717 = vpop.f32.mrb[0].mxu0
        %v1718 = vadd.f32 %v445, %v1717
        %v1719 = vpop.f32.mrb[0].mxu0
        %1720 = vmatprep.mubr.bf16.mxu0 %v1040
        %1721 = vmatmul.mubr.bf16.gmra.mrb[0].mxu0 %v1039
        %v1722 = vpop.f32.mrb[0].mxu0
        %v1723 = vadd.f32 %v445, %v1722
        %v1724 = vpop.f32.mrb[0].mxu0
        %v1725 = vpop.f32.mrb[0].mxu0
        %v1726 = vadd.f32 %v445, %v1725
        %v1727 = vpop.f32.mrb[0].mxu0
        %1728 = vmatprep.mubr.bf16.mxu0 %v1045
        %1729 = vmatmul.mubr.bf16.gmra.mrb[0].mxu0 %v1044
        %v1730 = vpop.f32.mrb[0].mxu0
        %v1731 = vadd.f32 %v445, %v1730
        %v1732 = vpop.f32.mrb[0].mxu0
        %v1733 = vpop.f32.mrb[0].mxu0
        %v1734 = vadd.f32 %v445, %v1733
        %v1735 = vpop.f32.mrb[0].mxu0
        %1736 = vmatprep.mubr.bf16.mxu0 %v1050
        %1737 = vmatmul.mubr.bf16.gmra.mrb[0].mxu0 %v1049
        %v1738 = vpop.f32.mrb[0].mxu0
        %v1739 = vadd.f32 %v445, %v1738
        %v1740 = vpop.f32.mrb[0].mxu0
        %v1741 = vpop.f32.mrb[0].mxu0
        %v1742 = vadd.f32 %v445, %v1741
        %v1743 = vpop.f32.mrb[0].mxu0
        %1744 = vmatprep.mubr.bf16.mxu0 %v1055
        %1745 = vmatmul.mubr.bf16.gmra.mrb[0].mxu0 %v1054
        %v1746 = vpop.f32.mrb[0].mxu0
        %v1747 = vadd.f32 %v445, %v1746
        %v1748 = vpop.f32.mrb[0].mxu0
        %v1749 = vpop.f32.mrb[0].mxu0
        %v1750 = vadd.f32 %v445, %v1749
        %v1751 = vpop.f32.mrb[0].mxu0
        %1752 = vmatprep.mubr.bf16.mxu0 %v1060
        %1753 = vmatmul.mubr.bf16.gmra.mrb[0].mxu0 %v1059
        %v1754 = vpop.f32.mrb[0].mxu0
        %v1755 = vadd.f32 %v445, %v1754
        %v1756 = vpop.f32.mrb[0].mxu0
        %v1757 = vpop.f32.mrb[0].mxu0
        %v1758 = vadd.f32 %v445, %v1757
        %v1759 = vpop.f32.mrb[0].mxu0
        %1760 = vmatprep.mubr.bf16.mxu0 %v1065
        %1761 = vmatmul.mubr.bf16.gmra.mrb[0].mxu0 %v1064
        %v1762 = vpop.f32.mrb[0].mxu0
        %v1763 = vadd.f32 %v445, %v1762
        %v1764 = vpop.f32.mrb[0].mxu0
        %v1765 = vpop.f32.mrb[0].mxu0
        %v1766 = vadd.f32 %v445, %v1765
        %v1767 = vpop.f32.mrb[0].mxu0
        %1768 = vmatprep.mubr.bf16.mxu0 %v1070
        %1769 = vmatmul.mubr.bf16.gmra.mrb[0].mxu0 %v1069
        %v1770 = vpop.f32.mrb[0].mxu0
        %v1771 = vadd.f32 %v445, %v1770
        %v1772 = vpop.f32.mrb[0].mxu0
        %v1773 = vpop.f32.mrb[0].mxu0
        %v1774 = vadd.f32 %v445, %v1773
        %v1775 = vpop.f32.mrb[0].mxu0
        %1776 = vmatprep.mubr.bf16.mxu0 %v1075
        %1777 = vmatmul.mubr.bf16.gmra.mrb[0].mxu0 %v1074
        %v1778 = vpop.f32.mrb[0].mxu0
        %v1779 = vadd.f32 %v445, %v1778
        %v1780 = vpop.f32.mrb[0].mxu0
        %v1781 = vpop.f32.mrb[0].mxu0
        %v1782 = vadd.f32 %v445, %v1781
        %v1783 = vpop.f32.mrb[0].mxu0
        %1784 = vmatprep.mubr.bf16.mxu0 %v1080
        %1785 = vmatmul.mubr.bf16.gmra.mrb[0].mxu0 %v1079
        %v1786 = vpop.f32.mrb[0].mxu0
        %v1787 = vadd.f32 %v445, %v1786
        %v1788 = vpop.f32.mrb[0].mxu0
        %v1789 = vpop.f32.mrb[0].mxu0
        %v1790 = vadd.f32 %v445, %v1789
        %v1791 = vpop.f32.mrb[0].mxu0
        %1792 = vmatprep.mubr.bf16.mxu0 %v1085
        %1793 = vmatmul.mubr.bf16.gmra.mrb[0].mxu0 %v1084
        %v1794 = vpop.f32.mrb[0].mxu0
        %v1795 = vadd.f32 %v445, %v1794
        %v1796 = vpop.f32.mrb[0].mxu0
        %v1797 = vpop.f32.mrb[0].mxu0
        %v1798 = vadd.f32 %v445, %v1797
        %v1799 = vpop.f32.mrb[0].mxu0
        %1800 = vmatprep.mubr.bf16.mxu0 %v1090
        %1801 = vmatmul.mubr.bf16.gmra.mrb[0].mxu0 %v1089
        %v1802 = vpop.f32.mrb[0].mxu0
        %v1803 = vadd.f32 %v445, %v1802
        %v1804 = vpop.f32.mrb[0].mxu0
        %v1805 = vpop.f32.mrb[0].mxu0
        %v1806 = vadd.f32 %v445, %v1805
        %v1807 = vpop.f32.mrb[0].mxu0
        %1808 = vmatprep.mubr.bf16.mxu0 %v1095
        %1809 = vmatmul.mubr.bf16.gmra.mrb[0].mxu0 %v1094
        %v1810 = vpop.f32.mrb[0].mxu0
        %v1811 = vadd.f32 %v445, %v1810
        %v1812 = vpop.f32.mrb[0].mxu0
        %v1813 = vpop.f32.mrb[0].mxu0
        %v1814 = vadd.f32 %v445, %v1813
        %v1815 = vpop.f32.mrb[0].mxu0
        %1816 = vmatprep.mubr.bf16.mxu0 %v1100
        %1817 = vmatmul.mubr.bf16.gmra.mrb[0].mxu0 %v1099
        %v1818 = vpop.f32.mrb[0].mxu0
        %v1819 = vadd.f32 %v445, %v1818
        %v1820 = vpop.f32.mrb[0].mxu0
        %v1821 = vpop.f32.mrb[0].mxu0
        %v1822 = vadd.f32 %v445, %v1821
        %v1823 = vpop.f32.mrb[0].mxu0
        %1824 = vmatprep.mubr.bf16.mxu0 %v1105
        %1825 = vmatmul.mubr.bf16.gmra.mrb[0].mxu0 %v1104
        %v1826 = vpop.f32.mrb[0].mxu0
        %v1827 = vadd.f32 %v445, %v1826
        %v1828 = vpop.f32.mrb[0].mxu0
        %v1829 = vpop.f32.mrb[0].mxu0
        %v1830 = vadd.f32 %v445, %v1829
        %v1831 = vpop.f32.mrb[0].mxu0
        %1832 = vmatprep.mubr.bf16.mxu0 %v1110
        %1833 = vmatmul.mubr.bf16.gmra.mrb[0].mxu0 %v1109
        %v1834 = vpop.f32.mrb[0].mxu0
        %v1835 = vadd.f32 %v445, %v1834
        %v1836 = vpop.f32.mrb[0].mxu0
        %v1837 = vpop.f32.mrb[0].mxu0
        %v1838 = vadd.f32 %v445, %v1837
        %v1839 = vpop.f32.mrb[0].mxu0
        %1840 = vmatprep.mubr.bf16.mxu0 %v1115
        %1841 = vmatmul.mubr.bf16.gmra.mrb[0].mxu0 %v1114
        %v1842 = vpop.f32.mrb[0].mxu0
        %v1843 = vadd.f32 %v445, %v1842
        %v1844 = vpop.f32.mrb[0].mxu0
        %v1845 = vpop.f32.mrb[0].mxu0
        %v1846 = vadd.f32 %v445, %v1845
        %v1847 = vpop.f32.mrb[0].mxu0
        %1848 = vdwg.mxu0
        %1849 = vmatprep.subr.bf16.mxu0 0
        %1850 = vmatpush1.bf16.msra.mxu0 %v1407
        %1851 = vmatprep.subr.bf16.mxu0 0
        %1852 = vmatpush1.bf16.msra.mxu0 %v1408
        %1853 = vmatprep.subr.bf16.mxu0 0
        %1854 = vmatpush1.bf16.msra.mxu0 %v1409
        %1855 = vmatprep.subr.bf16.mxu0 0
        %1856 = vmatpush1.bf16.msra.mxu0 %v1410
        %1857 = vmatprep.subr.bf16.mxu0 0
        %1858 = vmatpush1.bf16.msra.mxu0 %v1411
        %1859 = vmatprep.subr.bf16.mxu0 0
        %1860 = vmatpush1.bf16.msra.mxu0 %v1412
        %1861 = vmatprep.subr.bf16.mxu0 0
        %1862 = vmatpush1.bf16.msra.mxu0 %v1413
        %1863 = vmatprep.subr.bf16.mxu0 0
        %1864 = vmatpush1.bf16.msra.mxu0 %v1414
        %1865 = vmatprep.subr.bf16.mxu0 0
        %1866 = vmatpush1.bf16.msra.mxu0 %v1415
        %1867 = vmatprep.subr.bf16.mxu0 0
        %1868 = vmatpush1.bf16.msra.mxu0 %v1416
        %1869 = vmatprep.subr.bf16.mxu0 0
        %1870 = vmatpush1.bf16.msra.mxu0 %v1417
        %1871 = vmatprep.subr.bf16.mxu0 0
        %1872 = vmatpush1.bf16.msra.mxu0 %v1418
        %1873 = vmatprep.subr.bf16.mxu0 0
        %1874 = vmatpush1.bf16.msra.mxu0 %v1419
        %1875 = vmatprep.subr.bf16.mxu0 0
        %1876 = vmatpush1.bf16.msra.mxu0 %v1420
        %1877 = vmatprep.subr.bf16.mxu0 0
        %1878 = vmatpush1.bf16.msra.mxu0 %v1421
        %1879 = vmatprep.subr.bf16.mxu0 0
        %1880 = vmatpush1.bf16.msra.mxu0 %v1422
        %1881 = vmatprep.mubr.bf16.mxu0 %v962
        %1882 = vmatmul.mubr.bf16.gmra.mrb[0].mxu0 %v961
        %v1883 = vpop.f32.mrb[0].mxu0
        %v1884 = vadd.f32 %v1595, %v1883
        %v1885 = vpop.f32.mrb[0].mxu0
        %v1886 = vpop.f32.mrb[0].mxu0
        %v1887 = vadd.f32 %v1598, %v1886
        %v1888 = vpop.f32.mrb[0].mxu0
        %1889 = vmatprep.mubr.bf16.mxu0 %v967
        %1890 = vmatmul.mubr.bf16.gmra.mrb[0].mxu0 %v966
        %v1891 = vpop.f32.mrb[0].mxu0
        %v1892 = vadd.f32 %v1603, %v1891
        %v1893 = vpop.f32.mrb[0].mxu0
        %v1894 = vpop.f32.mrb[0].mxu0
        %v1895 = vadd.f32 %v1606, %v1894
        %v1896 = vpop.f32.mrb[0].mxu0
        %1897 = vmatprep.mubr.bf16.mxu0 %v972
        %1898 = vmatmul.mubr.bf16.gmra.mrb[0].mxu0 %v971
        %v1899 = vpop.f32.mrb[0].mxu0
        %v1900 = vadd.f32 %v1611, %v1899
        %v1901 = vpop.f32.mrb[0].mxu0
        %v1902 = vpop.f32.mrb[0].mxu0
        %v1903 = vadd.f32 %v1614, %v1902
        %v1904 = vpop.f32.mrb[0].mxu0
        %1905 = vmatprep.mubr.bf16.mxu0 %v977
        %1906 = vmatmul.mubr.bf16.gmra.mrb[0].mxu0 %v976
        %v1907 = vpop.f32.mrb[0].mxu0
        %v1908 = vadd.f32 %v1619, %v1907
        %v1909 = vpop.f32.mrb[0].mxu0
        %v1910 = vpop.f32.mrb[0].mxu0
        %v1911 = vadd.f32 %v1622, %v1910
        %v1912 = vpop.f32.mrb[0].mxu0
        %1913 = vmatprep.mubr.bf16.mxu0 %v982
        %1914 = vmatmul.mubr.bf16.gmra.mrb[0].mxu0 %v981
        %v1915 = vpop.f32.mrb[0].mxu0
        %v1916 = vadd.f32 %v1627, %v1915
        %v1917 = vpop.f32.mrb[0].mxu0
        %v1918 = vpop.f32.mrb[0].mxu0
        %v1919 = vadd.f32 %v1630, %v1918
        %v1920 = vpop.f32.mrb[0].mxu0
        %1921 = vmatprep.mubr.bf16.mxu0 %v987
        %1922 = vmatmul.mubr.bf16.gmra.mrb[0].mxu0 %v986
        %v1923 = vpop.f32.mrb[0].mxu0
        %v1924 = vadd.f32 %v1635, %v1923
        %v1925 = vpop.f32.mrb[0].mxu0
        %v1926 = vpop.f32.mrb[0].mxu0
        %v1927 = vadd.f32 %v1638, %v1926
        %v1928 = vpop.f32.mrb[0].mxu0
        %1929 = vmatprep.mubr.bf16.mxu0 %v992
        %1930 = vmatmul.mubr.bf16.gmra.mrb[0].mxu0 %v991
        %v1931 = vpop.f32.mrb[0].mxu0
        %v1932 = vadd.f32 %v1643, %v1931
        %v1933 = vpop.f32.mrb[0].mxu0
        %v1934 = vpop.f32.mrb[0].mxu0
        %v1935 = vadd.f32 %v1646, %v1934
        %v1936 = vpop.f32.mrb[0].mxu0
        %1937 = vmatprep.mubr.bf16.mxu0 %v997
        %1938 = vmatmul.mubr.bf16.gmra.mrb[0].mxu0 %v996
        %v1939 = vpop.f32.mrb[0].mxu0
        %v1940 = vadd.f32 %v1651, %v1939
        %v1941 = vpop.f32.mrb[0].mxu0
        %v1942 = vpop.f32.mrb[0].mxu0
        %v1943 = vadd.f32 %v1654, %v1942
        %v1944 = vpop.f32.mrb[0].mxu0
        %1945 = vmatprep.mubr.bf16.mxu0 %v1002
        %1946 = vmatmul.mubr.bf16.gmra.mrb[0].mxu0 %v1001
        %v1947 = vpop.f32.mrb[0].mxu0
        %v1948 = vadd.f32 %v1659, %v1947
        %v1949 = vpop.f32.mrb[0].mxu0
        %v1950 = vpop.f32.mrb[0].mxu0
        %v1951 = vadd.f32 %v1662, %v1950
        %v1952 = vpop.f32.mrb[0].mxu0
        %1953 = vmatprep.mubr.bf16.mxu0 %v1007
        %1954 = vmatmul.mubr.bf16.gmra.mrb[0].mxu0 %v1006
        %v1955 = vpop.f32.mrb[0].mxu0
        %v1956 = vadd.f32 %v1667, %v1955
        %v1957 = vpop.f32.mrb[0].mxu0
        %v1958 = vpop.f32.mrb[0].mxu0
        %v1959 = vadd.f32 %v1670, %v1958
        %v1960 = vpop.f32.mrb[0].mxu0
        %1961 = vmatprep.mubr.bf16.mxu0 %v1012
        %1962 = vmatmul.mubr.bf16.gmra.mrb[0].mxu0 %v1011
        %v1963 = vpop.f32.mrb[0].mxu0
        %v1964 = vadd.f32 %v1675, %v1963
        %v1965 = vpop.f32.mrb[0].mxu0
        %v1966 = vpop.f32.mrb[0].mxu0
        %v1967 = vadd.f32 %v1678, %v1966
        %v1968 = vpop.f32.mrb[0].mxu0
        %1969 = vmatprep.mubr.bf16.mxu0 %v1017
        %1970 = vmatmul.mubr.bf16.gmra.mrb[0].mxu0 %v1016
        %v1971 = vpop.f32.mrb[0].mxu0
        %v1972 = vadd.f32 %v1683, %v1971
        %v1973 = vpop.f32.mrb[0].mxu0
        %v1974 = vpop.f32.mrb[0].mxu0
        %v1975 = vadd.f32 %v1686, %v1974
        %v1976 = vpop.f32.mrb[0].mxu0
        %1977 = vmatprep.mubr.bf16.mxu0 %v1022
        %1978 = vmatmul.mubr.bf16.gmra.mrb[0].mxu0 %v1021
        %v1979 = vpop.f32.mrb[0].mxu0
        %v1980 = vadd.f32 %v1691, %v1979
        %v1981 = vpop.f32.mrb[0].mxu0
        %v1982 = vpop.f32.mrb[0].mxu0
        %v1983 = vadd.f32 %v1694, %v1982
        %v1984 = vpop.f32.mrb[0].mxu0
        %1985 = vmatprep.mubr.bf16.mxu0 %v1027
        %1986 = vmatmul.mubr.bf16.gmra.mrb[0].mxu0 %v1026
        %v1987 = vpop.f32.mrb[0].mxu0
        %v1988 = vadd.f32 %v1699, %v1987
        %v1989 = vpop.f32.mrb[0].mxu0
        %v1990 = vpop.f32.mrb[0].mxu0
        %v1991 = vadd.f32 %v1702, %v1990
        %v1992 = vpop.f32.mrb[0].mxu0
        %1993 = vmatprep.mubr.bf16.mxu0 %v1032
        %1994 = vmatmul.mubr.bf16.gmra.mrb[0].mxu0 %v1031
        %v1995 = vpop.f32.mrb[0].mxu0
        %v1996 = vadd.f32 %v1707, %v1995
        %v1997 = vpop.f32.mrb[0].mxu0
        %v1998 = vpop.f32.mrb[0].mxu0
        %v1999 = vadd.f32 %v1710, %v1998
        %v2000 = vpop.f32.mrb[0].mxu0
        %2001 = vmatprep.mubr.bf16.mxu0 %v1037
        %2002 = vmatmul.mubr.bf16.gmra.mrb[0].mxu0 %v1036
        %v2003 = vpop.f32.mrb[0].mxu0
        %v2004 = vadd.f32 %v1715, %v2003
        %v2005 = vpop.f32.mrb[0].mxu0
        %v2006 = vpop.f32.mrb[0].mxu0
        %v2007 = vadd.f32 %v1718, %v2006
        %v2008 = vpop.f32.mrb[0].mxu0
        %2009 = vmatprep.mubr.bf16.mxu0 %v1042
        %2010 = vmatmul.mubr.bf16.gmra.mrb[0].mxu0 %v1041
        %v2011 = vpop.f32.mrb[0].mxu0
        %v2012 = vadd.f32 %v1723, %v2011
        %v2013 = vpop.f32.mrb[0].mxu0
        %v2014 = vpop.f32.mrb[0].mxu0
        %v2015 = vadd.f32 %v1726, %v2014
        %v2016 = vpop.f32.mrb[0].mxu0
        %2017 = vmatprep.mubr.bf16.mxu0 %v1047
        %2018 = vmatmul.mubr.bf16.gmra.mrb[0].mxu0 %v1046
        %v2019 = vpop.f32.mrb[0].mxu0
        %v2020 = vadd.f32 %v1731, %v2019
        %v2021 = vpop.f32.mrb[0].mxu0
        %v2022 = vpop.f32.mrb[0].mxu0
        %v2023 = vadd.f32 %v1734, %v2022
        %v2024 = vpop.f32.mrb[0].mxu0
        %2025 = vmatprep.mubr.bf16.mxu0 %v1052
        %2026 = vmatmul.mubr.bf16.gmra.mrb[0].mxu0 %v1051
        %v2027 = vpop.f32.mrb[0].mxu0
        %v2028 = vadd.f32 %v1739, %v2027
        %v2029 = vpop.f32.mrb[0].mxu0
        %v2030 = vpop.f32.mrb[0].mxu0
        %v2031 = vadd.f32 %v1742, %v2030
        %v2032 = vpop.f32.mrb[0].mxu0
        %2033 = vmatprep.mubr.bf16.mxu0 %v1057
        %2034 = vmatmul.mubr.bf16.gmra.mrb[0].mxu0 %v1056
        %v2035 = vpop.f32.mrb[0].mxu0
        %v2036 = vadd.f32 %v1747, %v2035
        %v2037 = vpop.f32.mrb[0].mxu0
        %v2038 = vpop.f32.mrb[0].mxu0
        %v2039 = vadd.f32 %v1750, %v2038
        %v2040 = vpop.f32.mrb[0].mxu0
        %2041 = vmatprep.mubr.bf16.mxu0 %v1062
        %2042 = vmatmul.mubr.bf16.gmra.mrb[0].mxu0 %v1061
        %v2043 = vpop.f32.mrb[0].mxu0
        %v2044 = vadd.f32 %v1755, %v2043
        %v2045 = vpop.f32.mrb[0].mxu0
        %v2046 = vpop.f32.mrb[0].mxu0
        %v2047 = vadd.f32 %v1758, %v2046
        %v2048 = vpop.f32.mrb[0].mxu0
        %2049 = vmatprep.mubr.bf16.mxu0 %v1067
        %2050 = vmatmul.mubr.bf16.gmra.mrb[0].mxu0 %v1066
        %v2051 = vpop.f32.mrb[0].mxu0
        %v2052 = vadd.f32 %v1763, %v2051
        %v2053 = vpop.f32.mrb[0].mxu0
        %v2054 = vpop.f32.mrb[0].mxu0
        %v2055 = vadd.f32 %v1766, %v2054
        %v2056 = vpop.f32.mrb[0].mxu0
        %2057 = vmatprep.mubr.bf16.mxu0 %v1072
        %2058 = vmatmul.mubr.bf16.gmra.mrb[0].mxu0 %v1071
        %v2059 = vpop.f32.mrb[0].mxu0
        %v2060 = vadd.f32 %v1771, %v2059
        %v2061 = vpop.f32.mrb[0].mxu0
        %v2062 = vpop.f32.mrb[0].mxu0
        %v2063 = vadd.f32 %v1774, %v2062
        %v2064 = vpop.f32.mrb[0].mxu0
        %2065 = vmatprep.mubr.bf16.mxu0 %v1077
        %2066 = vmatmul.mubr.bf16.gmra.mrb[0].mxu0 %v1076
        %v2067 = vpop.f32.mrb[0].mxu0
        %v2068 = vadd.f32 %v1779, %v2067
        %v2069 = vpop.f32.mrb[0].mxu0
        %v2070 = vpop.f32.mrb[0].mxu0
        %v2071 = vadd.f32 %v1782, %v2070
        %v2072 = vpop.f32.mrb[0].mxu0
        %2073 = vmatprep.mubr.bf16.mxu0 %v1082
        %2074 = vmatmul.mubr.bf16.gmra.mrb[0].mxu0 %v1081
        %v2075 = vpop.f32.mrb[0].mxu0
        %v2076 = vadd.f32 %v1787, %v2075
        %v2077 = vpop.f32.mrb[0].mxu0
        %v2078 = vpop.f32.mrb[0].mxu0
        %v2079 = vadd.f32 %v1790, %v2078
        %v2080 = vpop.f32.mrb[0].mxu0
        %2081 = vmatprep.mubr.bf16.mxu0 %v1087
        %2082 = vmatmul.mubr.bf16.gmra.mrb[0].mxu0 %v1086
        %v2083 = vpop.f32.mrb[0].mxu0
        %v2084 = vadd.f32 %v1795, %v2083
        %v2085 = vpop.f32.mrb[0].mxu0
        %v2086 = vpop.f32.mrb[0].mxu0
        %v2087 = vadd.f32 %v1798, %v2086
        %v2088 = vpop.f32.mrb[0].mxu0
        %2089 = vmatprep.mubr.bf16.mxu0 %v1092
        %2090 = vmatmul.mubr.bf16.gmra.mrb[0].mxu0 %v1091
        %v2091 = vpop.f32.mrb[0].mxu0
        %v2092 = vadd.f32 %v1803, %v2091
        %v2093 = vpop.f32.mrb[0].mxu0
        %v2094 = vpop.f32.mrb[0].mxu0
        %v2095 = vadd.f32 %v1806, %v2094
        %v2096 = vpop.f32.mrb[0].mxu0
        %2097 = vmatprep.mubr.bf16.mxu0 %v1097
        %2098 = vmatmul.mubr.bf16.gmra.mrb[0].mxu0 %v1096
        %v2099 = vpop.f32.mrb[0].mxu0
        %v2100 = vadd.f32 %v1811, %v2099
        %v2101 = vpop.f32.mrb[0].mxu0
        %v2102 = vpop.f32.mrb[0].mxu0
        %v2103 = vadd.f32 %v1814, %v2102
        %v2104 = vpop.f32.mrb[0].mxu0
        %2105 = vmatprep.mubr.bf16.mxu0 %v1102
        %2106 = vmatmul.mubr.bf16.gmra.mrb[0].mxu0 %v1101
        %v2107 = vpop.f32.mrb[0].mxu0
        %v2108 = vadd.f32 %v1819, %v2107
        %v2109 = vpop.f32.mrb[0].mxu0
        %v2110 = vpop.f32.mrb[0].mxu0
        %v2111 = vadd.f32 %v1822, %v2110
        %v2112 = vpop.f32.mrb[0].mxu0
        %2113 = vmatprep.mubr.bf16.mxu0 %v1107
        %2114 = vmatmul.mubr.bf16.gmra.mrb[0].mxu0 %v1106
        %v2115 = vpop.f32.mrb[0].mxu0
        %v2116 = vadd.f32 %v1827, %v2115
        %v2117 = vpop.f32.mrb[0].mxu0
        %v2118 = vpop.f32.mrb[0].mxu0
        %v2119 = vadd.f32 %v1830, %v2118
        %v2120 = vpop.f32.mrb[0].mxu0
        %2121 = vmatprep.mubr.bf16.mxu0 %v1112
        %2122 = vmatmul.mubr.bf16.gmra.mrb[0].mxu0 %v1111
        %v2123 = vpop.f32.mrb[0].mxu0
        %v2124 = vadd.f32 %v1835, %v2123
        %v2125 = vpop.f32.mrb[0].mxu0
        %v2126 = vpop.f32.mrb[0].mxu0
        %v2127 = vadd.f32 %v1838, %v2126
        %v2128 = vpop.f32.mrb[0].mxu0
        %2129 = vmatprep.mubr.bf16.mxu0 %v1117
        %2130 = vmatmul.mubr.bf16.gmra.mrb[0].mxu0 %v1116
        %v2131 = vpop.f32.mrb[0].mxu0
        %v2132 = vadd.f32 %v1843, %v2131
        %v2133 = vpop.f32.mrb[0].mxu0
        %v2134 = vpop.f32.mrb[0].mxu0
        %v2135 = vadd.f32 %v1846, %v2134
        %v2136 = vpop.f32.mrb[0].mxu0
        %2137 = vdwg.mxu0
        %2138 = vmatprep.subr.bf16.mxu0 0
        %2139 = vmatpush1.bf16.msra.mxu0 %v1423
        %2140 = vmatprep.subr.bf16.mxu0 0
        %2141 = vmatpush1.bf16.msra.mxu0 %v1424
        %2142 = vmatprep.subr.bf16.mxu0 0
        %2143 = vmatpush1.bf16.msra.mxu0 %v1425
        %2144 = vmatprep.subr.bf16.mxu0 0
        %2145 = vmatpush1.bf16.msra.mxu0 %v1426
        %2146 = vmatprep.subr.bf16.mxu0 0
        %2147 = vmatpush1.bf16.msra.mxu0 0
        %2148 = vmatprep.subr.bf16.mxu0 0
        %2149 = vmatpush1.bf16.msra.mxu0 0
        %2150 = vmatprep.subr.bf16.mxu0 0
        %2151 = vmatpush1.bf16.msra.mxu0 0
        %2152 = vmatprep.subr.bf16.mxu0 0
        %2153 = vmatpush1.bf16.msra.mxu0 0
        %2154 = vmatprep.subr.bf16.mxu0 0
        %2155 = vmatpush1.bf16.msra.mxu0 0
        %2156 = vmatprep.subr.bf16.mxu0 0
        %2157 = vmatpush1.bf16.msra.mxu0 0
        %2158 = vmatprep.subr.bf16.mxu0 0
        %2159 = vmatpush1.bf16.msra.mxu0 0
        %2160 = vmatprep.subr.bf16.mxu0 0
        %2161 = vmatpush1.bf16.msra.mxu0 0
        %2162 = vmatprep.subr.bf16.mxu0 0
        %2163 = vmatpush1.bf16.msra.mxu0 0
        %2164 = vmatprep.subr.bf16.mxu0 0
        %2165 = vmatpush1.bf16.msra.mxu0 0
        %2166 = vmatprep.subr.bf16.mxu0 0
        %2167 = vmatpush1.bf16.msra.mxu0 0
        %2168 = vmatprep.subr.bf16.mxu0 0
        %2169 = vmatpush1.bf16.msra.mxu0 0
        %2170 = vmatprep.mubr.bf16.mxu0 0
        %2171 = vmatmul.mubr.bf16.gmra.mrb[0].mxu0 %v1465
        %v2172 = vpop.f32.mrb[0].mxu0
        %v2173 = vadd.f32 %v1884, %v2172
        %v2174 = vpop.f32.mrb[0].mxu0
        %v2175 = vpop.f32.mrb[0].mxu0
        %v2176 = vadd.f32 %v1887, %v2175
        %v2177 = vpop.f32.mrb[0].mxu0
        %2178 = vmatprep.mubr.bf16.mxu0 0
        %2179 = vmatmul.mubr.bf16.gmra.mrb[0].mxu0 %v1468
        %v2180 = vpop.f32.mrb[0].mxu0
        %v2181 = vadd.f32 %v1892, %v2180
        %v2182 = vpop.f32.mrb[0].mxu0
        %v2183 = vpop.f32.mrb[0].mxu0
        %v2184 = vadd.f32 %v1895, %v2183
        %v2185 = vpop.f32.mrb[0].mxu0
        %2186 = vmatprep.mubr.bf16.mxu0 0
        %2187 = vmatmul.mubr.bf16.gmra.mrb[0].mxu0 %v1471
        %v2188 = vpop.f32.mrb[0].mxu0
        %v2189 = vadd.f32 %v1900, %v2188
        %v2190 = vpop.f32.mrb[0].mxu0
        %v2191 = vpop.f32.mrb[0].mxu0
        %v2192 = vadd.f32 %v1903, %v2191
        %v2193 = vpop.f32.mrb[0].mxu0
        %2194 = vmatprep.mubr.bf16.mxu0 0
        %2195 = vmatmul.mubr.bf16.gmra.mrb[0].mxu0 %v1474
        %v2196 = vpop.f32.mrb[0].mxu0
        %v2197 = vadd.f32 %v1908, %v2196
        %v2198 = vpop.f32.mrb[0].mxu0
        %v2199 = vpop.f32.mrb[0].mxu0
        %v2200 = vadd.f32 %v1911, %v2199
        %v2201 = vpop.f32.mrb[0].mxu0
        %2202 = vmatprep.mubr.bf16.mxu0 0
        %2203 = vmatmul.mubr.bf16.gmra.mrb[0].mxu0 %v1477
        %v2204 = vpop.f32.mrb[0].mxu0
        %v2205 = vadd.f32 %v1916, %v2204
        %v2206 = vpop.f32.mrb[0].mxu0
        %v2207 = vpop.f32.mrb[0].mxu0
        %v2208 = vadd.f32 %v1919, %v2207
        %v2209 = vpop.f32.mrb[0].mxu0
        %2210 = vmatprep.mubr.bf16.mxu0 0
        %2211 = vmatmul.mubr.bf16.gmra.mrb[0].mxu0 %v1480
        %v2212 = vpop.f32.mrb[0].mxu0
        %v2213 = vadd.f32 %v1924, %v2212
        %v2214 = vpop.f32.mrb[0].mxu0
        %v2215 = vpop.f32.mrb[0].mxu0
        %v2216 = vadd.f32 %v1927, %v2215
        %v2217 = vpop.f32.mrb[0].mxu0
        %2218 = vmatprep.mubr.bf16.mxu0 0
        %2219 = vmatmul.mubr.bf16.gmra.mrb[0].mxu0 %v1483
        %v2220 = vpop.f32.mrb[0].mxu0
        %v2221 = vadd.f32 %v1932, %v2220
        %v2222 = vpop.f32.mrb[0].mxu0
        %v2223 = vpop.f32.mrb[0].mxu0
        %v2224 = vadd.f32 %v1935, %v2223
        %v2225 = vpop.f32.mrb[0].mxu0
        %2226 = vmatprep.mubr.bf16.mxu0 0
        %2227 = vmatmul.mubr.bf16.gmra.mrb[0].mxu0 %v1486
        %v2228 = vpop.f32.mrb[0].mxu0
        %v2229 = vadd.f32 %v1940, %v2228
        %v2230 = vpop.f32.mrb[0].mxu0
        %v2231 = vpop.f32.mrb[0].mxu0
        %v2232 = vadd.f32 %v1943, %v2231
        %v2233 = vpop.f32.mrb[0].mxu0
        %2234 = vmatprep.mubr.bf16.mxu0 0
        %2235 = vmatmul.mubr.bf16.gmra.mrb[0].mxu0 %v1489
        %v2236 = vpop.f32.mrb[0].mxu0
        %v2237 = vadd.f32 %v1948, %v2236
        %v2238 = vpop.f32.mrb[0].mxu0
        %v2239 = vpop.f32.mrb[0].mxu0
        %v2240 = vadd.f32 %v1951, %v2239
        %v2241 = vpop.f32.mrb[0].mxu0
        %2242 = vmatprep.mubr.bf16.mxu0 0
        %2243 = vmatmul.mubr.bf16.gmra.mrb[0].mxu0 %v1492
        %v2244 = vpop.f32.mrb[0].mxu0
        %v2245 = vadd.f32 %v1956, %v2244
        %v2246 = vpop.f32.mrb[0].mxu0
        %v2247 = vpop.f32.mrb[0].mxu0
        %v2248 = vadd.f32 %v1959, %v2247
        %v2249 = vpop.f32.mrb[0].mxu0
        %2250 = vmatprep.mubr.bf16.mxu0 0
        %2251 = vmatmul.mubr.bf16.gmra.mrb[0].mxu0 %v1495
        %v2252 = vpop.f32.mrb[0].mxu0
        %v2253 = vadd.f32 %v1964, %v2252
        %v2254 = vpop.f32.mrb[0].mxu0
        %v2255 = vpop.f32.mrb[0].mxu0
        %v2256 = vadd.f32 %v1967, %v2255
        %v2257 = vpop.f32.mrb[0].mxu0
        %2258 = vmatprep.mubr.bf16.mxu0 0
        %2259 = vmatmul.mubr.bf16.gmra.mrb[0].mxu0 %v1498
        %v2260 = vpop.f32.mrb[0].mxu0
        %v2261 = vadd.f32 %v1972, %v2260
        %v2262 = vpop.f32.mrb[0].mxu0
        %v2263 = vpop.f32.mrb[0].mxu0
        %v2264 = vadd.f32 %v1975, %v2263
        %v2265 = vpop.f32.mrb[0].mxu0
        %2266 = vmatprep.mubr.bf16.mxu0 0
        %2267 = vmatmul.mubr.bf16.gmra.mrb[0].mxu0 %v1501
        %v2268 = vpop.f32.mrb[0].mxu0
        %v2269 = vadd.f32 %v1980, %v2268
        %v2270 = vpop.f32.mrb[0].mxu0
        %v2271 = vpop.f32.mrb[0].mxu0
        %v2272 = vadd.f32 %v1983, %v2271
        %v2273 = vpop.f32.mrb[0].mxu0
        %2274 = vmatprep.mubr.bf16.mxu0 0
        %2275 = vmatmul.mubr.bf16.gmra.mrb[0].mxu0 %v1504
        %v2276 = vpop.f32.mrb[0].mxu0
        %v2277 = vadd.f32 %v1988, %v2276
        %v2278 = vpop.f32.mrb[0].mxu0
        %v2279 = vpop.f32.mrb[0].mxu0
        %v2280 = vadd.f32 %v1991, %v2279
        %v2281 = vpop.f32.mrb[0].mxu0
        %2282 = vmatprep.mubr.bf16.mxu0 0
        %2283 = vmatmul.mubr.bf16.gmra.mrb[0].mxu0 %v1507
        %v2284 = vpop.f32.mrb[0].mxu0
        %v2285 = vadd.f32 %v1996, %v2284
        %v2286 = vpop.f32.mrb[0].mxu0
        %v2287 = vpop.f32.mrb[0].mxu0
        %v2288 = vadd.f32 %v1999, %v2287
        %v2289 = vpop.f32.mrb[0].mxu0
        %2290 = vmatprep.mubr.bf16.mxu0 0
        %2291 = vmatmul.mubr.bf16.gmra.mrb[0].mxu0 %v1510
        %v2292 = vpop.f32.mrb[0].mxu0
        %v2293 = vadd.f32 %v2004, %v2292
        %v2294 = vpop.f32.mrb[0].mxu0
        %v2295 = vpop.f32.mrb[0].mxu0
        %v2296 = vadd.f32 %v2007, %v2295
        %v2297 = vpop.f32.mrb[0].mxu0
        %2298 = vmatprep.mubr.bf16.mxu0 0
        %2299 = vmatmul.mubr.bf16.gmra.mrb[0].mxu0 %v1513
        %v2300 = vpop.f32.mrb[0].mxu0
        %v2301 = vadd.f32 %v2012, %v2300
        %v2302 = vpop.f32.mrb[0].mxu0
        %v2303 = vpop.f32.mrb[0].mxu0
        %v2304 = vadd.f32 %v2015, %v2303
        %v2305 = vpop.f32.mrb[0].mxu0
        %2306 = vmatprep.mubr.bf16.mxu0 0
        %2307 = vmatmul.mubr.bf16.gmra.mrb[0].mxu0 %v1516
        %v2308 = vpop.f32.mrb[0].mxu0
        %v2309 = vadd.f32 %v2020, %v2308
        %v2310 = vpop.f32.mrb[0].mxu0
        %v2311 = vpop.f32.mrb[0].mxu0
        %v2312 = vadd.f32 %v2023, %v2311
        %v2313 = vpop.f32.mrb[0].mxu0
        %2314 = vmatprep.mubr.bf16.mxu0 0
        %2315 = vmatmul.mubr.bf16.gmra.mrb[0].mxu0 %v1519
        %v2316 = vpop.f32.mrb[0].mxu0
        %v2317 = vadd.f32 %v2028, %v2316
        %v2318 = vpop.f32.mrb[0].mxu0
        %v2319 = vpop.f32.mrb[0].mxu0
        %v2320 = vadd.f32 %v2031, %v2319
        %v2321 = vpop.f32.mrb[0].mxu0
        %2322 = vmatprep.mubr.bf16.mxu0 0
        %2323 = vmatmul.mubr.bf16.gmra.mrb[0].mxu0 %v1522
        %v2324 = vpop.f32.mrb[0].mxu0
        %v2325 = vadd.f32 %v2036, %v2324
        %v2326 = vpop.f32.mrb[0].mxu0
        %v2327 = vpop.f32.mrb[0].mxu0
        %v2328 = vadd.f32 %v2039, %v2327
        %v2329 = vpop.f32.mrb[0].mxu0
        %2330 = vmatprep.mubr.bf16.mxu0 0
        %2331 = vmatmul.mubr.bf16.gmra.mrb[0].mxu0 %v1525
        %v2332 = vpop.f32.mrb[0].mxu0
        %v2333 = vadd.f32 %v2044, %v2332
        %v2334 = vpop.f32.mrb[0].mxu0
        %v2335 = vpop.f32.mrb[0].mxu0
        %v2336 = vadd.f32 %v2047, %v2335
        %v2337 = vpop.f32.mrb[0].mxu0
        %2338 = vmatprep.mubr.bf16.mxu0 0
        %2339 = vmatmul.mubr.bf16.gmra.mrb[0].mxu0 %v1528
        %v2340 = vpop.f32.mrb[0].mxu0
        %v2341 = vadd.f32 %v2052, %v2340
        %v2342 = vpop.f32.mrb[0].mxu0
        %v2343 = vpop.f32.mrb[0].mxu0
        %v2344 = vadd.f32 %v2055, %v2343
        %v2345 = vpop.f32.mrb[0].mxu0
        %2346 = vmatprep.mubr.bf16.mxu0 0
        %2347 = vmatmul.mubr.bf16.gmra.mrb[0].mxu0 %v1531
        %v2348 = vpop.f32.mrb[0].mxu0
        %v2349 = vadd.f32 %v2060, %v2348
        %v2350 = vpop.f32.mrb[0].mxu0
        %v2351 = vpop.f32.mrb[0].mxu0
        %v2352 = vadd.f32 %v2063, %v2351
        %v2353 = vpop.f32.mrb[0].mxu0
        %2354 = vmatprep.mubr.bf16.mxu0 0
        %2355 = vmatmul.mubr.bf16.gmra.mrb[0].mxu0 %v1534
        %v2356 = vpop.f32.mrb[0].mxu0
        %v2357 = vadd.f32 %v2068, %v2356
        %v2358 = vpop.f32.mrb[0].mxu0
        %v2359 = vpop.f32.mrb[0].mxu0
        %v2360 = vadd.f32 %v2071, %v2359
        %v2361 = vpop.f32.mrb[0].mxu0
        %2362 = vmatprep.mubr.bf16.mxu0 0
        %2363 = vmatmul.mubr.bf16.gmra.mrb[0].mxu0 %v1537
        %v2364 = vpop.f32.mrb[0].mxu0
        %v2365 = vadd.f32 %v2076, %v2364
        %v2366 = vpop.f32.mrb[0].mxu0
        %v2367 = vpop.f32.mrb[0].mxu0
        %v2368 = vadd.f32 %v2079, %v2367
        %v2369 = vpop.f32.mrb[0].mxu0
        %2370 = vmatprep.mubr.bf16.mxu0 0
        %2371 = vmatmul.mubr.bf16.gmra.mrb[0].mxu0 %v1540
        %v2372 = vpop.f32.mrb[0].mxu0
        %v2373 = vadd.f32 %v2084, %v2372
        %v2374 = vpop.f32.mrb[0].mxu0
        %v2375 = vpop.f32.mrb[0].mxu0
        %v2376 = vadd.f32 %v2087, %v2375
        %v2377 = vpop.f32.mrb[0].mxu0
        %2378 = vmatprep.mubr.bf16.mxu0 0
        %2379 = vmatmul.mubr.bf16.gmra.mrb[0].mxu0 %v1543
        %v2380 = vpop.f32.mrb[0].mxu0
        %v2381 = vadd.f32 %v2092, %v2380
        %v2382 = vpop.f32.mrb[0].mxu0
        %v2383 = vpop.f32.mrb[0].mxu0
        %v2384 = vadd.f32 %v2095, %v2383
        %v2385 = vpop.f32.mrb[0].mxu0
        %2386 = vmatprep.mubr.bf16.mxu0 0
        %2387 = vmatmul.mubr.bf16.gmra.mrb[0].mxu0 %v1546
        %v2388 = vpop.f32.mrb[0].mxu0
        %v2389 = vadd.f32 %v2100, %v2388
        %v2390 = vpop.f32.mrb[0].mxu0
        %v2391 = vpop.f32.mrb[0].mxu0
        %v2392 = vadd.f32 %v2103, %v2391
        %v2393 = vpop.f32.mrb[0].mxu0
        %2394 = vmatprep.mubr.bf16.mxu0 0
        %2395 = vmatmul.mubr.bf16.gmra.mrb[0].mxu0 %v1549
        %v2396 = vpop.f32.mrb[0].mxu0
        %v2397 = vadd.f32 %v2108, %v2396
        %v2398 = vpop.f32.mrb[0].mxu0
        %v2399 = vpop.f32.mrb[0].mxu0
        %v2400 = vadd.f32 %v2111, %v2399
        %v2401 = vpop.f32.mrb[0].mxu0
        %2402 = vmatprep.mubr.bf16.mxu0 0
        %2403 = vmatmul.mubr.bf16.gmra.mrb[0].mxu0 %v1552
        %v2404 = vpop.f32.mrb[0].mxu0
        %v2405 = vadd.f32 %v2116, %v2404
        %v2406 = vpop.f32.mrb[0].mxu0
        %v2407 = vpop.f32.mrb[0].mxu0
        %v2408 = vadd.f32 %v2119, %v2407
        %v2409 = vpop.f32.mrb[0].mxu0
        %2410 = vmatprep.mubr.bf16.mxu0 0
        %2411 = vmatmul.mubr.bf16.gmra.mrb[0].mxu0 %v1555
        %v2412 = vpop.f32.mrb[0].mxu0
        %v2413 = vadd.f32 %v2124, %v2412
        %v2414 = vpop.f32.mrb[0].mxu0
        %v2415 = vpop.f32.mrb[0].mxu0
        %v2416 = vadd.f32 %v2127, %v2415
        %v2417 = vpop.f32.mrb[0].mxu0
        %2418 = vmatprep.mubr.bf16.mxu0 0
        %2419 = vmatmul.mubr.bf16.gmra.mrb[0].mxu0 %v1558
        %v2420 = vpop.f32.mrb[0].mxu0
        %v2421 = vadd.f32 %v2132, %v2420
        %v2422 = vpop.f32.mrb[0].mxu0
        %v2423 = vpop.f32.mrb[0].mxu0
        %v2424 = vadd.f32 %v2135, %v2423
        %v2425 = vpop.f32.mrb[0].mxu0
        %2426 = vdwg.mxu0
        %v2427 = vmax.f32 %v2173, 0.0
        %v2428 = vmax.f32 %v2176, 0.0
        %v2429 = vmax.f32 %v2181, 0.0
        %v2430 = vmax.f32 %v2184, 0.0
        %v2431 = vmax.f32 %v2189, 0.0
        %v2432 = vmax.f32 %v2192, 0.0
        %v2433 = vmax.f32 %v2197, 0.0
        %v2434 = vmax.f32 %v2200, 0.0
        %v2435 = vmax.f32 %v2205, 0.0
        %v2436 = vmax.f32 %v2208, 0.0
        %v2437 = vmax.f32 %v2213, 0.0
        %v2438 = vmax.f32 %v2216, 0.0
        %v2439 = vmax.f32 %v2221, 0.0
        %v2440 = vmax.f32 %v2224, 0.0
        %v2441 = vmax.f32 %v2229, 0.0
        %v2442 = vmax.f32 %v2232, 0.0
        %v2443 = vmax.f32 %v2237, 0.0
        %v2444 = vmax.f32 %v2240, 0.0
        %v2445 = vmax.f32 %v2245, 0.0
        %v2446 = vmax.f32 %v2248, 0.0
        %v2447 = vmax.f32 %v2253, 0.0
        %v2448 = vmax.f32 %v2256, 0.0
        %v2449 = vmax.f32 %v2261, 0.0
        %v2450 = vmax.f32 %v2264, 0.0
        %v2451 = vmax.f32 %v2269, 0.0
        %v2452 = vmax.f32 %v2272, 0.0
        %v2453 = vmax.f32 %v2277, 0.0
        %v2454 = vmax.f32 %v2280, 0.0
        %v2455 = vmax.f32 %v2285, 0.0
        %v2456 = vmax.f32 %v2288, 0.0
        %v2457 = vmax.f32 %v2293, 0.0
        %v2458 = vmax.f32 %v2296, 0.0
        %v2459 = vmax.f32 %v2301, 0.0
        %v2460 = vmax.f32 %v2304, 0.0
        %v2461 = vmax.f32 %v2309, 0.0
        %v2462 = vmax.f32 %v2312, 0.0
        %v2463 = vmax.f32 %v2317, 0.0
        %v2464 = vmax.f32 %v2320, 0.0
        %v2465 = vmax.f32 %v2325, 0.0
        %v2466 = vmax.f32 %v2328, 0.0
        %v2467 = vmax.f32 %v2333, 0.0
        %v2468 = vmax.f32 %v2336, 0.0
        %v2469 = vmax.f32 %v2341, 0.0
        %v2470 = vmax.f32 %v2344, 0.0
        %v2471 = vmax.f32 %v2349, 0.0
        %v2472 = vmax.f32 %v2352, 0.0
        %v2473 = vmax.f32 %v2357, 0.0
        %v2474 = vmax.f32 %v2360, 0.0
        %v2475 = vmax.f32 %v2365, 0.0
        %v2476 = vmax.f32 %v2368, 0.0
        %v2477 = vmax.f32 %v2373, 0.0
        %v2478 = vmax.f32 %v2376, 0.0
        %v2479 = vmax.f32 %v2381, 0.0
        %v2480 = vmax.f32 %v2384, 0.0
        %v2481 = vmax.f32 %v2389, 0.0
        %v2482 = vmax.f32 %v2392, 0.0
        %v2483 = vmax.f32 %v2397, 0.0
        %v2484 = vmax.f32 %v2400, 0.0
        %v2485 = vmax.f32 %v2405, 0.0
        %v2486 = vmax.f32 %v2408, 0.0
        %v2487 = vmax.f32 %v2413, 0.0
        %v2488 = vmax.f32 %v2416, 0.0
        %v2489 = vmax.f32 %v2421, 0.0
        %v2490 = vmax.f32 %v2424, 0.0
        %2491 = vst.msk [vmem:[%s166] sm:$0xff] %vm1463, %v2427
        %2492 = vst.msk [vmem:[%s166 + $0x8] sm:$0xff] %vm1463, %v2428
        %2493 = vst.msk [vmem:[%s166 + $0x10] sm:$0xff] %vm1463, %v2429
        %2494 = vst.msk [vmem:[%s166 + $0x18] sm:$0xff] %vm1463, %v2430
        %2495 = vst.msk [vmem:[%s166 + $0x20] sm:$0xff] %vm1463, %v2431
        %2496 = vst.msk [vmem:[%s166 + $0x28] sm:$0xff] %vm1463, %v2432
        %2497 = vst.msk [vmem:[%s166 + $0x30] sm:$0xff] %vm1463, %v2433
        %2498 = vst.msk [vmem:[%s166 + $0x38] sm:$0xff] %vm1463, %v2434
        %2499 = vst.msk [vmem:[%s166 + $0x40] sm:$0xff] %vm1463, %v2435
        %2500 = vst.msk [vmem:[%s166 + $0x48] sm:$0xff] %vm1463, %v2436
        %2501 = vst.msk [vmem:[%s166 + $0x50] sm:$0xff] %vm1463, %v2437
        %2502 = vst.msk [vmem:[%s166 + $0x58] sm:$0xff] %vm1463, %v2438
        %2503 = vst.msk [vmem:[%s166 + $0x60] sm:$0xff] %vm1463, %v2439
        %2504 = vst.msk [vmem:[%s166 + $0x68] sm:$0xff] %vm1463, %v2440
        %2505 = vst.msk [vmem:[%s166 + $0x70] sm:$0xff] %vm1463, %v2441
        %2506 = vst.msk [vmem:[%s166 + $0x78] sm:$0xff] %vm1463, %v2442
        %2507 = vst.msk [vmem:[%s166 + $0x80] sm:$0xff] %vm1463, %v2443
        %2508 = vst.msk [vmem:[%s166 + $0x88] sm:$0xff] %vm1463, %v2444
        %2509 = vst.msk [vmem:[%s166 + $0x90] sm:$0xff] %vm1463, %v2445
        %2510 = vst.msk [vmem:[%s166 + $0x98] sm:$0xff] %vm1463, %v2446
        %2511 = vst.msk [vmem:[%s166 + $0xa0] sm:$0xff] %vm1463, %v2447
        %2512 = vst.msk [vmem:[%s166 + $0xa8] sm:$0xff] %vm1463, %v2448
        %2513 = vst.msk [vmem:[%s166 + $0xb0] sm:$0xff] %vm1463, %v2449
        %2514 = vst.msk [vmem:[%s166 + $0xb8] sm:$0xff] %vm1463, %v2450
        %2515 = vst.msk [vmem:[%s166 + $0xc0] sm:$0xff] %vm1463, %v2451
        %2516 = vst.msk [vmem:[%s166 + $0xc8] sm:$0xff] %vm1463, %v2452
        %2517 = vst.msk [vmem:[%s166 + $0xd0] sm:$0xff] %vm1463, %v2453
        %2518 = vst.msk [vmem:[%s166 + $0xd8] sm:$0xff] %vm1463, %v2454
        %2519 = vst.msk [vmem:[%s166 + $0xe0] sm:$0xff] %vm1463, %v2455
        %2520 = vst.msk [vmem:[%s166 + $0xe8] sm:$0xff] %vm1463, %v2456
        %2521 = vst.msk [vmem:[%s166 + $0xf0] sm:$0xff] %vm1463, %v2457
        %2522 = vst.msk [vmem:[%s166 + $0xf8] sm:$0xff] %vm1463, %v2458
        %2523 = vst.msk [vmem:[%s166 + $0x100] sm:$0xff] %vm1463, %v2459
        %2524 = vst.msk [vmem:[%s166 + $0x108] sm:$0xff] %vm1463, %v2460
        %2525 = vst.msk [vmem:[%s166 + $0x110] sm:$0xff] %vm1463, %v2461
        %2526 = vst.msk [vmem:[%s166 + $0x118] sm:$0xff] %vm1463, %v2462
        %2527 = vst.msk [vmem:[%s166 + $0x120] sm:$0xff] %vm1463, %v2463
        %2528 = vst.msk [vmem:[%s166 + $0x128] sm:$0xff] %vm1463, %v2464
        %2529 = vst.msk [vmem:[%s166 + $0x130] sm:$0xff] %vm1463, %v2465
        %2530 = vst.msk [vmem:[%s166 + $0x138] sm:$0xff] %vm1463, %v2466
        %2531 = vst.msk [vmem:[%s166 + $0x140] sm:$0xff] %vm1463, %v2467
        %2532 = vst.msk [vmem:[%s166 + $0x148] sm:$0xff] %vm1463, %v2468
        %2533 = vst.msk [vmem:[%s166 + $0x150] sm:$0xff] %vm1463, %v2469
        %2534 = vst.msk [vmem:[%s166 + $0x158] sm:$0xff] %vm1463, %v2470
        %2535 = vst.msk [vmem:[%s166 + $0x160] sm:$0xff] %vm1463, %v2471
        %2536 = vst.msk [vmem:[%s166 + $0x168] sm:$0xff] %vm1463, %v2472
        %2537 = vst.msk [vmem:[%s166 + $0x170] sm:$0xff] %vm1463, %v2473
        %2538 = vst.msk [vmem:[%s166 + $0x178] sm:$0xff] %vm1463, %v2474
        %2539 = vst.msk [vmem:[%s166 + $0x180] sm:$0xff] %vm1463, %v2475
        %2540 = vst.msk [vmem:[%s166 + $0x188] sm:$0xff] %vm1463, %v2476
        %2541 = vst.msk [vmem:[%s166 + $0x190] sm:$0xff] %vm1463, %v2477
        %2542 = vst.msk [vmem:[%s166 + $0x198] sm:$0xff] %vm1463, %v2478
        %2543 = vst.msk [vmem:[%s166 + $0x1a0] sm:$0xff] %vm1463, %v2479
        %2544 = vst.msk [vmem:[%s166 + $0x1a8] sm:$0xff] %vm1463, %v2480
        %2545 = vst.msk [vmem:[%s166 + $0x1b0] sm:$0xff] %vm1463, %v2481
        %2546 = vst.msk [vmem:[%s166 + $0x1b8] sm:$0xff] %vm1463, %v2482
        %2547 = vst.msk [vmem:[%s166 + $0x1c0] sm:$0xff] %vm1463, %v2483
        %2548 = vst.msk [vmem:[%s166 + $0x1c8] sm:$0xff] %vm1463, %v2484
        %2549 = vst.msk [vmem:[%s166 + $0x1d0] sm:$0xff] %vm1463, %v2485
        %2550 = vst.msk [vmem:[%s166 + $0x1d8] sm:$0xff] %vm1463, %v2486
        %2551 = vst.msk [vmem:[%s166 + $0x1e0] sm:$0xff] %vm1463, %v2487
        %2552 = vst.msk [vmem:[%s166 + $0x1e8] sm:$0xff] %vm1463, %v2488
        %2553 = vst.msk [vmem:[%s166 + $0x1f0] sm:$0xff] %vm1463, %v2489
        %2554 = vst.msk [vmem:[%s166 + $0x1f8] sm:$0xff] %vm1463, %v2490
        %s2555 = sand.u32 %s93, 1
        %s2556 = scalar_lea.sflag [#allocation3], %s2555
        %s2557 = sand.u32 %s93, 1
        %s2558 = smul.addr %s2557, 512
        %s2559 = scalar_lea.vmem [#allocation2], %s2558
        // Predicated region
        $region33: #{vgg16_forward.3} parent=31 // pred_check
          %p2560 = pneg %p103
        $region34: #{vgg16_forward.3} parent=31 // pred_check_branch
          %2562 = sbr.rel (%p2560) target = $region36
        $region35: #{vgg16_forward.3} parent=31 // pred_region
          %s2563 = smul.u32 64, %s17
          %s2565 = ssub.s32 8192, 8192
          %2566 = vsyncadd %s2556, %s2565
          %s2567 = smul.addr %s2563, 128
          %s2568 = scalar_lea.hbm %s3, %s2567
          %s2569 = sshll.u32 %s2559, 4
          %s2570 = int_to_ptr.vmem [resolvable:$true] %s2569
          %2575 = dma.vmem_to_hbm [thread:$0]  %s2570, 8192, %s2568, %s2556, 128, 128, 8
        $region36: #{vgg16_forward.3} parent=31 // pred_fallthru
          _
      $region32: #{vgg16_forward.3} parent=5 // pred_fallthru
        _
      %p2576 = scmp.le.s32.totalorder 2, %s12
      // Predicated region
      $region37: #{vgg16_forward.3} parent=5 // pred_check
        %p2577 = pneg %p2576
      $region38: #{vgg16_forward.3} parent=5 // pred_check_branch
        %2579 = sbr.rel (%p2577) target = $region40
      $region39: #{vgg16_forward.3} parent=5 // pred_region
        %s2580 = ssub.s32 %s12, 2
        // Predicated region
        $region41: #{vgg16_forward.3} parent=39 // pred_check
          %p2581 = pneg %p109
        $region42: #{vgg16_forward.3} parent=39 // pred_check_branch
          %2583 = sbr.rel (%p2581) target = $region44
        $region43: #{vgg16_forward.3} parent=39 // pred_region
          %s2584 = sand.u32 %s94, 1
          %s2585 = scalar_lea.sflag [#allocation3], %s2584
          %s2586 = sand.u32 %s94, 1
          %s2587 = smul.addr %s2586, 512
          %s2588 = scalar_lea.vmem [#allocation2], %s2587
          %2589 = dma.done %s2585, 8192
        $region44: #{vgg16_forward.3} parent=39 // pred_fallthru
          _
      $region40: #{vgg16_forward.3} parent=5 // pred_fallthru
        _
    $region6: #{vgg16_forward.3} parent=1 // loop_footer
      %s16 = sadd.s32 1, %s12
    $region7: #{vgg16_forward.3} parent=1 // loop_footer_branch
      %11 = sbr.rel target = $region3
    $region8: #{vgg16_forward.3} parent=1 // loop_exit
      _
    %2590 = vsyncpa [#allocation3], 1
    %s2591 = scalar_lea.sflag [#allocation3], 1
    %2592 = vsyncpa %s2591, 1

</llo_original>
